<compile_context>
chip_gen: v7x
topology: tpu7x:2x2x1
jax: 0.10.0
libtpu: 0.0.40
codegen_flags: <defaults>
</compile_context>

<pallas_src>
import functools

import jax
import jax.numpy as jnp
from jax.experimental import pallas as pl
from jax.experimental.pallas import tpu as pltpu

HIDDEN = 512
LANE = 128
SUBLANE = 8


def _round_up(n, m):
    return ((n + m - 1) // m) * m


def _vae_kernel(
    x_ref, eps_ref,
    w1_ref, b1_ref,
    whead_ref, bhead_ref,
    wd1_ref, bd1_ref,
    wd2_ref, bd2_ref,
    recon_ref, mulv_ref,
    *, lp, lv_offset,
):
    f32 = jnp.float32
    x = x_ref[...]                       # (TB, ID) bf16
    eps = eps_ref[...]                   # (TB, LP) f32 (zero beyond latent_dim)

    # --- encoder: Linear(input_dim, 512) + ReLU (bf16 in, f32 MXU acc) ------
    h = jnp.dot(x, w1_ref[...], preferred_element_type=f32) + b1_ref[...]
    h = jnp.maximum(h, 0.0)              # (TB, 512) f32

    # --- fused mu|logvar head: single MXU push ------------------------------
    mulv = (
        jnp.dot(h.astype(jnp.bfloat16), whead_ref[...],
                preferred_element_type=f32)
        + bhead_ref[...]
    )                                    # (TB, head_w) f32
    head_w = mulv.shape[-1]

    mu = mulv[:, :lp]                    # 128-aligned static slice
    if lv_offset == lp:
        # unpacked layout: logvar occupies the upper lp lanes
        logvar = mulv[:, lp:]
    else:
        # packed layout (latent_dim <= lp//2): logvar lives at lanes
        # [lv_offset, lv_offset+latent); rotate onto lanes [0, ...) on the XLU
        # (free slot). shift == head_w/2, so rotation direction is irrelevant.
        logvar = pltpu.roll(mulv, shift=head_w - lv_offset, axis=1)[:, :lp]

    # --- reparameterize: z = mu + eps * exp(0.5*logvar) (EUP exp) -----------
    # Lanes >= latent_dim carry junk-but-finite values; they are killed either
    # by eps == 0 or by the zero rows of wd1 below.
    z = mu + eps * jnp.exp(0.5 * logvar)

    # --- decoder: Linear(latent, 512) + ReLU, Linear(512, input_dim) --------
    h2 = (
        jnp.dot(z.astype(jnp.bfloat16), wd1_ref[...],
                preferred_element_type=f32)
        + bd1_ref[...]
    )
    h2 = jnp.maximum(h2, 0.0)            # (TB, 512)
    logits = (
        jnp.dot(h2.astype(jnp.bfloat16), wd2_ref[...],
                preferred_element_type=f32)
        + bd2_ref[...]
    )                                    # (TB, ID)

    # sigmoid(x) == 0.5*(tanh(x/2)+1): one EUP transcendental, exact.
    recon_ref[...] = 0.5 * (jnp.tanh(0.5 * logits) + 1.0)
    mulv_ref[...] = mulv


def prepare_params(params, input_dim, latent_dim):
    """Fuse the mu/logvar heads, lane-pad only the latent dim, cast to bf16.

    Done once, outside the per-call path, so it costs nothing at generation
    time. Returns (prep_dict, lp, lv_offset).
    """
    lp = _round_up(latent_dim, LANE)
    if 2 * latent_dim <= lp:
        # packed head: mu at lanes [0, latent), logvar at lanes [lp//2, ...)
        head_w, lv_offset = lp, lp // 2
    else:
        head_w, lv_offset = 2 * lp, lp

    whead = jnp.zeros((HIDDEN, head_w), jnp.float32)
    whead = whead.at[:, :latent_dim].set(params["wmu"])
    whead = whead.at[:, lv_offset:lv_offset + latent_dim].set(params["wlv"])
    bhead = jnp.zeros((1, head_w), jnp.float32)
    bhead = bhead.at[:, :latent_dim].set(params["bmu"])
    bhead = bhead.at[:, lv_offset:lv_offset + latent_dim].set(params["blv"])

    wd1 = jnp.zeros((lp, HIDDEN), jnp.float32).at[:latent_dim].set(params["wd1"])

    prep = dict(
        w1=params["w1"].astype(jnp.bfloat16), b1=params["b1"],
        whead=whead.astype(jnp.bfloat16), bhead=bhead,
        wd1=wd1.astype(jnp.bfloat16), bd1=params["bd1"],
        wd2=params["wd2"].astype(jnp.bfloat16), bd2=params["bd2"],
    )
    return prep, lp, lv_offset


def _pick_batch_tile(b_ceil):
    """Pick a batch tile (multiple of 8, <= 256 rows).

    Prefers a tile that (a) divides the batch exactly (no padding copy) and
    (b) yields >= 2 grid steps so ("parallel",) feeds both TensorCores on v7x.
    """
    for cand in range(min(256, b_ceil), 63, -SUBLANE):
        if b_ceil % cand == 0 and b_ceil // cand >= 2:
            return cand
    if b_ceil <= SUBLANE:
        return SUBLANE
    if b_ceil <= 512:
        return _round_up((b_ceil + 1) // 2, SUBLANE)   # exactly 2 steps
    return 256


def _vmem_limit_bytes():
    cap = 128 << 20
    try:
        cap = int(pltpu.get_tpu_info().vmem_capacity_bytes)
    except Exception:
        pass
    # ~85% of physical VMEM (v7x: ~54 MiB of 64), capped for v5e/v6e (128 MiB).
    return max(32 << 20, min(int(cap * 0.85), 112 << 20))


@functools.partial(
    jax.jit,
    static_argnames=("channels", "width", "height", "latent_dim", "lp",
                     "lv_offset", "single_buffer_weights"),
)
def vae_forward(x, eps, prep, *, channels, width, height, latent_dim, lp,
                lv_offset, single_buffer_weights=True):
    """x: (B, C, H, W) float32.  eps: (B, latent_dim) float32."""
    B = x.shape[0]
    input_dim = channels * width * height
    head_w = prep["whead"].shape[1]

    b_ceil = _round_up(B, SUBLANE)
    tb = _pick_batch_tile(b_ceil)
    b_pad = _round_up(B, tb)

    # No feature-dim padding: input_dim is used as-is (lane-dense when it is a
    # multiple of 128, e.g. power-of-two images; otherwise Mosaic masks the
    # ragged lane tail). Batch tail is zero-padded only when tb doesn't divide B.
    x_flat = x.reshape(B, input_dim).astype(jnp.bfloat16)
    if b_pad != B:
        x_flat = jnp.pad(x_flat, ((0, b_pad - B), (0, 0)))
    eps_p = jnp.zeros((b_pad, lp), jnp.float32).at[:B, :latent_dim].set(
        eps.astype(jnp.float32))
    # TODO(synk): optionally generate eps in-kernel with pltpu.prng_* when
    # bitwise determinism against an externally supplied eps is not required.

    batch_map = lambda i: (i, 0)
    const_map = lambda i: (0, 0)        # weights stay VMEM-resident across grid

    def wspec(shape):
        if single_buffer_weights:
            # Constant-index operands only need one buffer; halves their VMEM
            # footprint (matters on v7x's 64 MiB VMEM).
            return pl.BlockSpec(shape, const_map, pipeline_mode=pl.Buffered(1))
        return pl.BlockSpec(shape, const_map)

    recon_p, mulv_p = pl.pallas_call(
        functools.partial(_vae_kernel, lp=lp, lv_offset=lv_offset),
        out_shape=(
            jax.ShapeDtypeStruct((b_pad, input_dim), jnp.float32),
            jax.ShapeDtypeStruct((b_pad, head_w), jnp.float32),
        ),
        grid=(b_pad // tb,),
        in_specs=[
            pl.BlockSpec((tb, input_dim), batch_map),     # x (bf16)
            pl.BlockSpec((tb, lp), batch_map),            # eps (f32)
            wspec((input_dim, HIDDEN)),                   # w1 (bf16)
            wspec((1, HIDDEN)),                           # b1 (f32)
            wspec((HIDDEN, head_w)),                      # whead (bf16)
            wspec((1, head_w)),                           # bhead (f32)
            wspec((lp, HIDDEN)),                          # wd1 (bf16)
            wspec((1, HIDDEN)),                           # bd1 (f32)
            wspec((HIDDEN, input_dim)),                   # wd2 (bf16)
            wspec((1, input_dim)),                        # bd2 (f32)
        ],
        out_specs=(
            pl.BlockSpec((tb, input_dim), batch_map),     # recon
            pl.BlockSpec((tb, head_w), batch_map),        # packed mu|logvar
        ),
        compiler_params=pltpu.CompilerParams(
            dimension_semantics=("parallel",),            # megacore on v7x
            vmem_limit_bytes=_vmem_limit_bytes(),
        ),
    )(
        x_flat, eps_p,
        prep["w1"], prep["b1"],
        prep["whead"], prep["bhead"],
        prep["wd1"], prep["bd1"],
        prep["wd2"], prep["bd2"],
    )

    # PyTorch: self.decoder(z).view(-1, channels, width, height)
    recon = recon_p[:B].reshape(B, channels, width, height)
    mu = mulv_p[:B, :latent_dim]
    logvar = mulv_p[:B, lv_offset:lv_offset + latent_dim]
    return recon, mu, logvar


def init_params(key, input_dim, hidden=HIDDEN, latent_dim=20):
    """Deterministic init; weights stored as (in, out) for x @ W."""
    ks = jax.random.split(key, 10)

    def lin(kw, kb, fan_in, fan_out):
        bound = 1.0 / jnp.sqrt(fan_in)
        w = jax.random.uniform(kw, (fan_in, fan_out), jnp.float32, -bound, bound)
        b = jax.random.uniform(kb, (1, fan_out), jnp.float32, -bound, bound)
        return w, b

    w1, b1 = lin(ks[0], ks[1], input_dim, hidden)
    wmu, bmu = lin(ks[2], ks[3], hidden, latent_dim)
    wlv, blv = lin(ks[4], ks[5], hidden, latent_dim)
    wd1, bd1 = lin(ks[6], ks[7], latent_dim, hidden)
    wd2, bd2 = lin(ks[8], ks[9], hidden, input_dim)
    return dict(
        w1=w1, b1=b1, wmu=wmu, bmu=bmu, wlv=wlv, blv=blv,
        wd1=wd1, bd1=bd1, wd2=wd2, bd2=bd2,
    )


def _reference(x, eps, params, channels, width, height):
    """Pure-JAX f32 reference for correctness checking."""
    B = x.shape[0]
    xf = x.reshape(B, -1)
    h = jnp.maximum(xf @ params["w1"] + params["b1"], 0.0)
    mu = h @ params["wmu"] + params["bmu"]
    logvar = h @ params["wlv"] + params["blv"]
    z = mu + eps * jnp.exp(0.5 * logvar)
    h2 = jnp.maximum(z @ params["wd1"] + params["bd1"], 0.0)
    recon = jax.nn.sigmoid(h2 @ params["wd2"] + params["bd2"])
    return recon.reshape(B, channels, width, height), mu, logvar


if __name__ == "__main__":
    # Small shapes consistent with the module: grayscale 16x16 images.
    batch, channels, width, height = 2, 1, 16, 16
    latent_dim = 20
    input_dim = channels * width * height

    key = jax.random.PRNGKey(0)
    k_x, k_eps, k_p = jax.random.split(key, 3)

    x = jax.random.normal(k_x, (batch, channels, height, width), jnp.float32)
    # eps corresponds to torch.randn_like(std) in reparameterize; passed in so
    # the kernel is deterministic.
    eps = jax.random.normal(k_eps, (batch, latent_dim), jnp.float32)
    params = init_params(k_p, input_dim, hidden=HIDDEN, latent_dim=latent_dim)

    prep, lp, lv_offset = prepare_params(params, input_dim, latent_dim)
    kwargs = dict(channels=channels, width=width, height=height,
                  latent_dim=latent_dim, lp=lp, lv_offset=lv_offset)

    try:
        recon, mu, logvar = vae_forward(x, eps, prep,
                                        single_buffer_weights=True, **kwargs)
        jax.block_until_ready((recon, mu, logvar))
    except Exception:
        # pipeline_mode=pl.Buffered(1) unsupported on this jax/libtpu combo:
        # fall back to default double-buffered weights (still correct).
        recon, mu, logvar = vae_forward(x, eps, prep,
                                        single_buffer_weights=False, **kwargs)
        jax.block_until_ready((recon, mu, logvar))

    # Correctness check against a pure-JAX f32 reference (bf16 weight/activation
    # streaming => loosened tolerance).
    r_ref, mu_ref, lv_ref = _reference(x, eps, params, channels, width, height)
    assert recon.shape == (batch, channels, width, height)
    assert mu.shape == (batch, latent_dim) and logvar.shape == (batch, latent_dim)
    assert jnp.allclose(recon, r_ref, atol=2e-2), jnp.max(jnp.abs(recon - r_ref))
    assert jnp.allclose(mu, mu_ref, atol=2e-2), jnp.max(jnp.abs(mu - mu_ref))
    assert jnp.allclose(logvar, lv_ref, atol=2e-2), jnp.max(jnp.abs(logvar - lv_ref))

    print("KERNEL_OK")
</pallas_src>

<mosaic_0001>
module attributes {stable_mosaic.version = 11 : i64} {
  func.func @_vae_kernel(%arg0: i32, %arg1: memref<8x256xbf16, #tpu.memory_space<vmem>>, %arg2: memref<8x128xf32, #tpu.memory_space<vmem>>, %arg3: memref<256x512xbf16, #tpu.memory_space<vmem>>, %arg4: memref<1x512xf32, #tpu.memory_space<vmem>>, %arg5: memref<512x128xbf16, #tpu.memory_space<vmem>>, %arg6: memref<1x128xf32, #tpu.memory_space<vmem>>, %arg7: memref<128x512xbf16, #tpu.memory_space<vmem>>, %arg8: memref<1x512xf32, #tpu.memory_space<vmem>>, %arg9: memref<512x256xbf16, #tpu.memory_space<vmem>>, %arg10: memref<1x256xf32, #tpu.memory_space<vmem>>, %arg11: memref<8x256xf32, #tpu.memory_space<vmem>>, %arg12: memref<8x128xf32, #tpu.memory_space<vmem>>) attributes {dimension_semantics = [#tpu.dimension_semantics<parallel>], iteration_bounds = array<i64: 1>, scalar_prefetch = 0 : i64, scratch_operands = 0 : i64, tpu.core_type = #tpu.core_type<tc>, window_params = [{transform_indices = @transform_0, window_bounds = array<i64: 8, 256>}, {transform_indices = @transform_1, window_bounds = array<i64: 8, 128>}, {pipeline_mode = #tpu.pipeline_mode<synchronous>, transform_indices = @transform_2, window_bounds = array<i64: 256, 512>}, {pipeline_mode = #tpu.pipeline_mode<synchronous>, transform_indices = @transform_3, window_bounds = array<i64: 1, 512>}, {pipeline_mode = #tpu.pipeline_mode<synchronous>, transform_indices = @transform_4, window_bounds = array<i64: 512, 128>}, {pipeline_mode = #tpu.pipeline_mode<synchronous>, transform_indices = @transform_5, window_bounds = array<i64: 1, 128>}, {pipeline_mode = #tpu.pipeline_mode<synchronous>, transform_indices = @transform_6, window_bounds = array<i64: 128, 512>}, {pipeline_mode = #tpu.pipeline_mode<synchronous>, transform_indices = @transform_7, window_bounds = array<i64: 1, 512>}, {pipeline_mode = #tpu.pipeline_mode<synchronous>, transform_indices = @transform_8, window_bounds = array<i64: 512, 256>}, {pipeline_mode = #tpu.pipeline_mode<synchronous>, transform_indices = @transform_9, window_bounds = array<i64: 1, 256>}, {transform_indices = @transform_10, window_bounds = array<i64: 8, 256>}, {transform_indices = @transform_11, window_bounds = array<i64: 8, 128>}]} {
    %c0 = arith.constant 0 : index
    %c0_0 = arith.constant 0 : index
    %0 = vector.load %arg1[%c0, %c0_0] : memref<8x256xbf16, #tpu.memory_space<vmem>>, vector<8x256xbf16>
    %c0_1 = arith.constant 0 : index
    %c0_2 = arith.constant 0 : index
    %1 = vector.load %arg2[%c0_1, %c0_2] : memref<8x128xf32, #tpu.memory_space<vmem>>, vector<8x128xf32>
    %c0_3 = arith.constant 0 : index
    %c0_4 = arith.constant 0 : index
    %2 = vector.load %arg3[%c0_3, %c0_4] : memref<256x512xbf16, #tpu.memory_space<vmem>>, vector<256x512xbf16>
    %cst = arith.constant dense<0.000000e+00> : vector<8x512xf32>
    %3 = tpu.matmul %0, %2, %cst {dimension_numbers = #tpu.dot_dimension_numbers<[1], [0], [0], [1], [0, 0, 1, 1], [], []>} : vector<8x256xbf16>, vector<256x512xbf16>, vector<8x512xf32> -> vector<8x512xf32>
    %c0_5 = arith.constant 0 : index
    %c0_6 = arith.constant 0 : index
    %4 = vector.load %arg4[%c0_5, %c0_6] : memref<1x512xf32, #tpu.memory_space<vmem>>, vector<1x512xf32>
    %5 = vector.broadcast %4 : vector<1x512xf32> to vector<8x512xf32>
    %6 = arith.addf %3, %5 : vector<8x512xf32>
    %cst_7 = arith.constant 0.000000e+00 : f32
    %7 = vector.broadcast %cst_7 : f32 to vector<8x512xf32>
    %8 = arith.maximumf %6, %7 : vector<8x512xf32>
    %9 = arith.truncf %8 : vector<8x512xf32> to vector<8x512xbf16>
    %c0_8 = arith.constant 0 : index
    %c0_9 = arith.constant 0 : index
    %10 = vector.load %arg5[%c0_8, %c0_9] : memref<512x128xbf16, #tpu.memory_space<vmem>>, vector<512x128xbf16>
    %cst_10 = arith.constant dense<0.000000e+00> : vector<8x128xf32>
    %11 = tpu.matmul %9, %10, %cst_10 {dimension_numbers = #tpu.dot_dimension_numbers<[1], [0], [0], [1], [0, 0, 1, 1], [], []>} : vector<8x512xbf16>, vector<512x128xbf16>, vector<8x128xf32> -> vector<8x128xf32>
    %c0_11 = arith.constant 0 : index
    %c0_12 = arith.constant 0 : index
    %12 = vector.load %arg6[%c0_11, %c0_12] : memref<1x128xf32, #tpu.memory_space<vmem>>, vector<1x128xf32>
    %13 = vector.broadcast %12 : vector<1x128xf32> to vector<8x128xf32>
    %14 = arith.addf %11, %13 : vector<8x128xf32>
    %c64_i32 = arith.constant 64 : i32
    %15 = tpu.dynamic_rotate %14 by %c64_i32 dim 1 : vector<8x128xf32>, i32 -> vector<8x128xf32>
    %cst_13 = arith.constant 5.000000e-01 : f32
    %16 = vector.broadcast %cst_13 : f32 to vector<8x128xf32>
    %17 = arith.mulf %16, %15 : vector<8x128xf32>
    %18 = math.exp %17 : vector<8x128xf32>
    %19 = arith.mulf %1, %18 : vector<8x128xf32>
    %20 = arith.addf %14, %19 : vector<8x128xf32>
    %21 = arith.truncf %20 : vector<8x128xf32> to vector<8x128xbf16>
    %c0_14 = arith.constant 0 : index
    %c0_15 = arith.constant 0 : index
    %22 = vector.load %arg7[%c0_14, %c0_15] : memref<128x512xbf16, #tpu.memory_space<vmem>>, vector<128x512xbf16>
    %cst_16 = arith.constant dense<0.000000e+00> : vector<8x512xf32>
    %23 = tpu.matmul %21, %22, %cst_16 {dimension_numbers = #tpu.dot_dimension_numbers<[1], [0], [0], [1], [0, 0, 1, 1], [], []>} : vector<8x128xbf16>, vector<128x512xbf16>, vector<8x512xf32> -> vector<8x512xf32>
    %c0_17 = arith.constant 0 : index
    %c0_18 = arith.constant 0 : index
    %24 = vector.load %arg8[%c0_17, %c0_18] : memref<1x512xf32, #tpu.memory_space<vmem>>, vector<1x512xf32>
    %25 = vector.broadcast %24 : vector<1x512xf32> to vector<8x512xf32>
    %26 = arith.addf %23, %25 : vector<8x512xf32>
    %cst_19 = arith.constant 0.000000e+00 : f32
    %27 = vector.broadcast %cst_19 : f32 to vector<8x512xf32>
    %28 = arith.maximumf %26, %27 : vector<8x512xf32>
    %29 = arith.truncf %28 : vector<8x512xf32> to vector<8x512xbf16>
    %c0_20 = arith.constant 0 : index
    %c0_21 = arith.constant 0 : index
    %30 = vector.load %arg9[%c0_20, %c0_21] : memref<512x256xbf16, #tpu.memory_space<vmem>>, vector<512x256xbf16>
    %cst_22 = arith.constant dense<0.000000e+00> : vector<8x256xf32>
    %31 = tpu.matmul %29, %30, %cst_22 {dimension_numbers = #tpu.dot_dimension_numbers<[1], [0], [0], [1], [0, 0, 1, 1], [], []>} : vector<8x512xbf16>, vector<512x256xbf16>, vector<8x256xf32> -> vector<8x256xf32>
    %c0_23 = arith.constant 0 : index
    %c0_24 = arith.constant 0 : index
    %32 = vector.load %arg10[%c0_23, %c0_24] : memref<1x256xf32, #tpu.memory_space<vmem>>, vector<1x256xf32>
    %33 = vector.broadcast %32 : vector<1x256xf32> to vector<8x256xf32>
    %34 = arith.addf %31, %33 : vector<8x256xf32>
    %cst_25 = arith.constant 5.000000e-01 : f32
    %35 = vector.broadcast %cst_25 : f32 to vector<8x256xf32>
    %36 = arith.mulf %35, %34 : vector<8x256xf32>
    %37 = math.tanh %36 : vector<8x256xf32>
    %cst_26 = arith.constant 1.000000e+00 : f32
    %38 = vector.broadcast %cst_26 : f32 to vector<8x256xf32>
    %39 = arith.addf %37, %38 : vector<8x256xf32>
    %cst_27 = arith.constant 5.000000e-01 : f32
    %40 = vector.broadcast %cst_27 : f32 to vector<8x256xf32>
    %41 = arith.mulf %40, %39 : vector<8x256xf32>
    %c0_28 = arith.constant 0 : index
    %c0_29 = arith.constant 0 : index
    %42 = vector.load %arg11[%c0_28, %c0_29] : memref<8x256xf32, #tpu.memory_space<vmem>>, vector<8x256xf32>
    tpu.vector_store %arg11[%c0_28, %c0_29], %41 {strides = array<i32>} : memref<8x256xf32, #tpu.memory_space<vmem>>, vector<8x256xf32>,
    %c0_30 = arith.constant 0 : index
    %c0_31 = arith.constant 0 : index
    %43 = vector.load %arg12[%c0_30, %c0_31] : memref<8x128xf32, #tpu.memory_space<vmem>>, vector<8x128xf32>
    tpu.vector_store %arg12[%c0_30, %c0_31], %14 {strides = array<i32>} : memref<8x128xf32, #tpu.memory_space<vmem>>, vector<8x128xf32>,
    return
  }
  func.func @transform_0(%arg0: i32) -> (i32, i32) {
    %c0_i32 = arith.constant 0 : i32
    %c0_i32_0 = arith.constant 0 : i32
    return %arg0, %c0_i32 : i32, i32
  }
  func.func @transform_1(%arg0: i32) -> (i32, i32) {
    %c0_i32 = arith.constant 0 : i32
    %c0_i32_0 = arith.constant 0 : i32
    return %arg0, %c0_i32 : i32, i32
  }
  func.func @transform_2(%arg0: i32) -> (i32, i32) {
    %c0_i32 = arith.constant 0 : i32
    %c0_i32_0 = arith.constant 0 : i32
    %c0_i32_1 = arith.constant 0 : i32
    return %c0_i32, %c0_i32_0 : i32, i32
  }
  func.func @transform_3(%arg0: i32) -> (i32, i32) {
    %c0_i32 = arith.constant 0 : i32
    %c0_i32_0 = arith.constant 0 : i32
    %c0_i32_1 = arith.constant 0 : i32
    return %c0_i32, %c0_i32_0 : i32, i32
  }
  func.func @transform_4(%arg0: i32) -> (i32, i32) {
    %c0_i32 = arith.constant 0 : i32
    %c0_i32_0 = arith.constant 0 : i32
    %c0_i32_1 = arith.constant 0 : i32
    return %c0_i32, %c0_i32_0 : i32, i32
  }
  func.func @transform_5(%arg0: i32) -> (i32, i32) {
    %c0_i32 = arith.constant 0 : i32
    %c0_i32_0 = arith.constant 0 : i32
    %c0_i32_1 = arith.constant 0 : i32
    return %c0_i32, %c0_i32_0 : i32, i32
  }
  func.func @transform_6(%arg0: i32) -> (i32, i32) {
    %c0_i32 = arith.constant 0 : i32
    %c0_i32_0 = arith.constant 0 : i32
    %c0_i32_1 = arith.constant 0 : i32
    return %c0_i32, %c0_i32_0 : i32, i32
  }
  func.func @transform_7(%arg0: i32) -> (i32, i32) {
    %c0_i32 = arith.constant 0 : i32
    %c0_i32_0 = arith.constant 0 : i32
    %c0_i32_1 = arith.constant 0 : i32
    return %c0_i32, %c0_i32_0 : i32, i32
  }
  func.func @transform_8(%arg0: i32) -> (i32, i32) {
    %c0_i32 = arith.constant 0 : i32
    %c0_i32_0 = arith.constant 0 : i32
    %c0_i32_1 = arith.constant 0 : i32
    return %c0_i32, %c0_i32_0 : i32, i32
  }
  func.func @transform_9(%arg0: i32) -> (i32, i32) {
    %c0_i32 = arith.constant 0 : i32
    %c0_i32_0 = arith.constant 0 : i32
    %c0_i32_1 = arith.constant 0 : i32
    return %c0_i32, %c0_i32_0 : i32, i32
  }
  func.func @transform_10(%arg0: i32) -> (i32, i32) {
    %c0_i32 = arith.constant 0 : i32
    %c0_i32_0 = arith.constant 0 : i32
    return %arg0, %c0_i32 : i32, i32
  }
  func.func @transform_11(%arg0: i32) -> (i32, i32) {
    %c0_i32 = arith.constant 0 : i32
    %c0_i32_0 = arith.constant 0 : i32
    return %arg0, %c0_i32 : i32, i32
  }
}

module attributes {stable_mosaic.version = 11 : i64} {
  func.func @_vae_kernel(%arg0: i32, %arg1: memref<8x256xbf16, #tpu.memory_space<vmem>>, %arg2: memref<8x128xf32, #tpu.memory_space<vmem>>, %arg3: memref<256x512xbf16, #tpu.memory_space<vmem>>, %arg4: memref<1x512xf32, #tpu.memory_space<vmem>>, %arg5: memref<512x128xbf16, #tpu.memory_space<vmem>>, %arg6: memref<1x128xf32, #tpu.memory_space<vmem>>, %arg7: memref<128x512xbf16, #tpu.memory_space<vmem>>, %arg8: memref<1x512xf32, #tpu.memory_space<vmem>>, %arg9: memref<512x256xbf16, #tpu.memory_space<vmem>>, %arg10: memref<1x256xf32, #tpu.memory_space<vmem>>, %arg11: memref<8x256xf32, #tpu.memory_space<vmem>>, %arg12: memref<8x128xf32, #tpu.memory_space<vmem>>) attributes {dimension_semantics = [#tpu.dimension_semantics<parallel>], iteration_bounds = array<i64: 1>, scalar_prefetch = 0 : i64, scratch_operands = 0 : i64, tpu.core_type = #tpu.core_type<tc>, window_params = [{transform_indices = @transform_0, window_bounds = array<i64: 8, 256>}, {transform_indices = @transform_1, window_bounds = array<i64: 8, 128>}, {pipeline_mode = #tpu.pipeline_mode<synchronous>, transform_indices = @transform_2, window_bounds = array<i64: 256, 512>}, {pipeline_mode = #tpu.pipeline_mode<synchronous>, transform_indices = @transform_3, window_bounds = array<i64: 1, 512>}, {pipeline_mode = #tpu.pipeline_mode<synchronous>, transform_indices = @transform_4, window_bounds = array<i64: 512, 128>}, {pipeline_mode = #tpu.pipeline_mode<synchronous>, transform_indices = @transform_5, window_bounds = array<i64: 1, 128>}, {pipeline_mode = #tpu.pipeline_mode<synchronous>, transform_indices = @transform_6, window_bounds = array<i64: 128, 512>}, {pipeline_mode = #tpu.pipeline_mode<synchronous>, transform_indices = @transform_7, window_bounds = array<i64: 1, 512>}, {pipeline_mode = #tpu.pipeline_mode<synchronous>, transform_indices = @transform_8, window_bounds = array<i64: 512, 256>}, {pipeline_mode = #tpu.pipeline_mode<synchronous>, transform_indices = @transform_9, window_bounds = array<i64: 1, 256>}, {transform_indices = @transform_10, window_bounds = array<i64: 8, 256>}, {transform_indices = @transform_11, window_bounds = array<i64: 8, 128>}]} {
    %c0 = arith.constant 0 : index
    %c0_0 = arith.constant 0 : index
    %0 = vector.load %arg1[%c0, %c0_0] : memref<8x256xbf16, #tpu.memory_space<vmem>>, vector<8x256xbf16>
    %c0_1 = arith.constant 0 : index
    %c0_2 = arith.constant 0 : index
    %1 = vector.load %arg2[%c0_1, %c0_2] : memref<8x128xf32, #tpu.memory_space<vmem>>, vector<8x128xf32>
    %c0_3 = arith.constant 0 : index
    %c0_4 = arith.constant 0 : index
    %2 = vector.load %arg3[%c0_3, %c0_4] : memref<256x512xbf16, #tpu.memory_space<vmem>>, vector<256x512xbf16>
    %cst = arith.constant dense<0.000000e+00> : vector<8x512xf32>
    %3 = tpu.matmul %0, %2, %cst {dimension_numbers = #tpu.dot_dimension_numbers<[1], [0], [0], [1], [0, 0, 1, 1], [], []>} : vector<8x256xbf16>, vector<256x512xbf16>, vector<8x512xf32> -> vector<8x512xf32>
    %c0_5 = arith.constant 0 : index
    %c0_6 = arith.constant 0 : index
    %4 = vector.load %arg4[%c0_5, %c0_6] : memref<1x512xf32, #tpu.memory_space<vmem>>, vector<1x512xf32>
    %5 = vector.broadcast %4 : vector<1x512xf32> to vector<8x512xf32>
    %6 = arith.addf %3, %5 : vector<8x512xf32>
    %cst_7 = arith.constant 0.000000e+00 : f32
    %7 = vector.broadcast %cst_7 : f32 to vector<8x512xf32>
    %8 = arith.maximumf %6, %7 : vector<8x512xf32>
    %9 = arith.truncf %8 : vector<8x512xf32> to vector<8x512xbf16>
    %c0_8 = arith.constant 0 : index
    %c0_9 = arith.constant 0 : index
    %10 = vector.load %arg5[%c0_8, %c0_9] : memref<512x128xbf16, #tpu.memory_space<vmem>>, vector<512x128xbf16>
    %cst_10 = arith.constant dense<0.000000e+00> : vector<8x128xf32>
    %11 = tpu.matmul %9, %10, %cst_10 {dimension_numbers = #tpu.dot_dimension_numbers<[1], [0], [0], [1], [0, 0, 1, 1], [], []>} : vector<8x512xbf16>, vector<512x128xbf16>, vector<8x128xf32> -> vector<8x128xf32>
    %c0_11 = arith.constant 0 : index
    %c0_12 = arith.constant 0 : index
    %12 = vector.load %arg6[%c0_11, %c0_12] : memref<1x128xf32, #tpu.memory_space<vmem>>, vector<1x128xf32>
    %13 = vector.broadcast %12 : vector<1x128xf32> to vector<8x128xf32>
    %14 = arith.addf %11, %13 : vector<8x128xf32>
    %c64_i32 = arith.constant 64 : i32
    %15 = tpu.dynamic_rotate %14 by %c64_i32 dim 1 : vector<8x128xf32>, i32 -> vector<8x128xf32>
    %cst_13 = arith.constant 5.000000e-01 : f32
    %16 = vector.broadcast %cst_13 : f32 to vector<8x128xf32>
    %17 = arith.mulf %16, %15 : vector<8x128xf32>
    %18 = math.exp %17 : vector<8x128xf32>
    %19 = arith.mulf %1, %18 : vector<8x128xf32>
    %20 = arith.addf %14, %19 : vector<8x128xf32>
    %21 = arith.truncf %20 : vector<8x128xf32> to vector<8x128xbf16>
    %c0_14 = arith.constant 0 : index
    %c0_15 = arith.constant 0 : index
    %22 = vector.load %arg7[%c0_14, %c0_15] : memref<128x512xbf16, #tpu.memory_space<vmem>>, vector<128x512xbf16>
    %cst_16 = arith.constant dense<0.000000e+00> : vector<8x512xf32>
    %23 = tpu.matmul %21, %22, %cst_16 {dimension_numbers = #tpu.dot_dimension_numbers<[1], [0], [0], [1], [0, 0, 1, 1], [], []>} : vector<8x128xbf16>, vector<128x512xbf16>, vector<8x512xf32> -> vector<8x512xf32>
    %c0_17 = arith.constant 0 : index
    %c0_18 = arith.constant 0 : index
    %24 = vector.load %arg8[%c0_17, %c0_18] : memref<1x512xf32, #tpu.memory_space<vmem>>, vector<1x512xf32>
    %25 = vector.broadcast %24 : vector<1x512xf32> to vector<8x512xf32>
    %26 = arith.addf %23, %25 : vector<8x512xf32>
    %cst_19 = arith.constant 0.000000e+00 : f32
    %27 = vector.broadcast %cst_19 : f32 to vector<8x512xf32>
    %28 = arith.maximumf %26, %27 : vector<8x512xf32>
    %29 = arith.truncf %28 : vector<8x512xf32> to vector<8x512xbf16>
    %c0_20 = arith.constant 0 : index
    %c0_21 = arith.constant 0 : index
    %30 = vector.load %arg9[%c0_20, %c0_21] : memref<512x256xbf16, #tpu.memory_space<vmem>>, vector<512x256xbf16>
    %cst_22 = arith.constant dense<0.000000e+00> : vector<8x256xf32>
    %31 = tpu.matmul %29, %30, %cst_22 {dimension_numbers = #tpu.dot_dimension_numbers<[1], [0], [0], [1], [0, 0, 1, 1], [], []>} : vector<8x512xbf16>, vector<512x256xbf16>, vector<8x256xf32> -> vector<8x256xf32>
    %c0_23 = arith.constant 0 : index
    %c0_24 = arith.constant 0 : index
    %32 = vector.load %arg10[%c0_23, %c0_24] : memref<1x256xf32, #tpu.memory_space<vmem>>, vector<1x256xf32>
    %33 = vector.broadcast %32 : vector<1x256xf32> to vector<8x256xf32>
    %34 = arith.addf %31, %33 : vector<8x256xf32>
    %cst_25 = arith.constant 5.000000e-01 : f32
    %35 = vector.broadcast %cst_25 : f32 to vector<8x256xf32>
    %36 = arith.mulf %35, %34 : vector<8x256xf32>
    %37 = math.tanh %36 : vector<8x256xf32>
    %cst_26 = arith.constant 1.000000e+00 : f32
    %38 = vector.broadcast %cst_26 : f32 to vector<8x256xf32>
    %39 = arith.addf %37, %38 : vector<8x256xf32>
    %cst_27 = arith.constant 5.000000e-01 : f32
    %40 = vector.broadcast %cst_27 : f32 to vector<8x256xf32>
    %41 = arith.mulf %40, %39 : vector<8x256xf32>
    %c0_28 = arith.constant 0 : index
    %c0_29 = arith.constant 0 : index
    %42 = vector.load %arg11[%c0_28, %c0_29] : memref<8x256xf32, #tpu.memory_space<vmem>>, vector<8x256xf32>
    tpu.vector_store %arg11[%c0_28, %c0_29], %41 {strides = array<i32>} : memref<8x256xf32, #tpu.memory_space<vmem>>, vector<8x256xf32>,
    %c0_30 = arith.constant 0 : index
    %c0_31 = arith.constant 0 : index
    %43 = vector.load %arg12[%c0_30, %c0_31] : memref<8x128xf32, #tpu.memory_space<vmem>>, vector<8x128xf32>
    tpu.vector_store %arg12[%c0_30, %c0_31], %14 {strides = array<i32>} : memref<8x128xf32, #tpu.memory_space<vmem>>, vector<8x128xf32>,
    return
  }
  func.func @transform_0(%arg0: i32) -> (i32, i32) {
    %c0_i32 = arith.constant 0 : i32
    %c0_i32_0 = arith.constant 0 : i32
    return %arg0, %c0_i32 : i32, i32
  }
  func.func @transform_1(%arg0: i32) -> (i32, i32) {
    %c0_i32 = arith.constant 0 : i32
    %c0_i32_0 = arith.constant 0 : i32
    return %arg0, %c0_i32 : i32, i32
  }
  func.func @transform_2(%arg0: i32) -> (i32, i32) {
    %c0_i32 = arith.constant 0 : i32
    %c0_i32_0 = arith.constant 0 : i32
    %c0_i32_1 = arith.constant 0 : i32
    return %c0_i32, %c0_i32_0 : i32, i32
  }
  func.func @transform_3(%arg0: i32) -> (i32, i32) {
    %c0_i32 = arith.constant 0 : i32
    %c0_i32_0 = arith.constant 0 : i32
    %c0_i32_1 = arith.constant 0 : i32
    return %c0_i32, %c0_i32_0 : i32, i32
  }
  func.func @transform_4(%arg0: i32) -> (i32, i32) {
    %c0_i32 = arith.constant 0 : i32
    %c0_i32_0 = arith.constant 0 : i32
    %c0_i32_1 = arith.constant 0 : i32
    return %c0_i32, %c0_i32_0 : i32, i32
  }
  func.func @transform_5(%arg0: i32) -> (i32, i32) {
    %c0_i32 = arith.constant 0 : i32
    %c0_i32_0 = arith.constant 0 : i32
    %c0_i32_1 = arith.constant 0 : i32
    return %c0_i32, %c0_i32_0 : i32, i32
  }
  func.func @transform_6(%arg0: i32) -> (i32, i32) {
    %c0_i32 = arith.constant 0 : i32
    %c0_i32_0 = arith.constant 0 : i32
    %c0_i32_1 = arith.constant 0 : i32
    return %c0_i32, %c0_i32_0 : i32, i32
  }
  func.func @transform_7(%arg0: i32) -> (i32, i32) {
    %c0_i32 = arith.constant 0 : i32
    %c0_i32_0 = arith.constant 0 : i32
    %c0_i32_1 = arith.constant 0 : i32
    return %c0_i32, %c0_i32_0 : i32, i32
  }
  func.func @transform_8(%arg0: i32) -> (i32, i32) {
    %c0_i32 = arith.constant 0 : i32
    %c0_i32_0 = arith.constant 0 : i32
    %c0_i32_1 = arith.constant 0 : i32
    return %c0_i32, %c0_i32_0 : i32, i32
  }
  func.func @transform_9(%arg0: i32) -> (i32, i32) {
    %c0_i32 = arith.constant 0 : i32
    %c0_i32_0 = arith.constant 0 : i32
    %c0_i32_1 = arith.constant 0 : i32
    return %c0_i32, %c0_i32_0 : i32, i32
  }
  func.func @transform_10(%arg0: i32) -> (i32, i32) {
    %c0_i32 = arith.constant 0 : i32
    %c0_i32_0 = arith.constant 0 : i32
    return %arg0, %c0_i32 : i32, i32
  }
  func.func @transform_11(%arg0: i32) -> (i32, i32) {
    %c0_i32 = arith.constant 0 : i32
    %c0_i32_0 = arith.constant 0 : i32
    return %arg0, %c0_i32 : i32, i32
  }
}

</mosaic_0001>

<llo_original>
// kernel: vae_forward.1
$region0: #{vae_forward.1}
  #allocation0 [shape = 'u32[]', space=smem, size = 0x4, offset = 0x4, fixed_abs, tag = 'smem constant byte address 0x4 - core index']
  #allocation1 [shape = 'u32[144,128]{1,0:T(1,128)}', space=vmem, size = 0x12000, scoped, tag = 'internal scratch']
  %s0 = inlined_call_operand.hbm [shape: bf16[8,256], index: 0, kind: input, shape index: {}]
  %s1 = inlined_call_operand.hbm [shape: f32[8,128], index: 1, kind: input, shape index: {}]
  %s2 = inlined_call_operand.hbm [shape: bf16[256,512], index: 2, kind: input, shape index: {}]
  %s3 = inlined_call_operand.hbm [shape: f32[1,512], index: 3, kind: input, shape index: {}]
  %s4 = inlined_call_operand.hbm [shape: bf16[512,128], index: 4, kind: input, shape index: {}]
  %s5 = inlined_call_operand.hbm [shape: f32[1,128], index: 5, kind: input, shape index: {}]
  %s6 = inlined_call_operand.hbm [shape: bf16[128,512], index: 6, kind: input, shape index: {}]
  %s7 = inlined_call_operand.hbm [shape: f32[1,512], index: 7, kind: input, shape index: {}]
  %s8 = inlined_call_operand.hbm [shape: bf16[512,256], index: 8, kind: input, shape index: {}]
  %s9 = inlined_call_operand.hbm [shape: f32[1,256], index: 9, kind: input, shape index: {}]
  %s10 = inlined_call_operand.hbm [shape: f32[8,256], index: 10, kind: output, shape index: {0}]
  %s11 = inlined_call_operand.hbm [shape: f32[8,128], index: 11, kind: output, shape index: {1}]
  %12 = xla_tuple %s10, %s11
  %s13 = sld [smem:[#allocation0]]
  $region98: #{vae_forward.1} parent=0
    _
  %s15 = ssub.s32 1, %s13
  %s16 = scalar_select 0, %s15, %s13
  $region1: #{vae_forward.1} parent=0
    #allocation2 [shape = 'u8[4096]{0}', space=vmem, size = 0x1000, scoped, tag = 'input window, operand 0, single buffered']
    #allocation3 [shape = 's32[1]{0}', space=sflag, size = 0x4, scoped, tag = 'scoped memory for vae_forward.1']
    #allocation4 [shape = 's32[1]{0}', space=sflag, size = 0x4, scoped, tag = 'scoped memory for vae_forward.1']
    #allocation5 [shape = 'u8[4096]{0}', space=vmem, size = 0x1000, scoped, tag = 'input window, operand 1, single buffered']
    #allocation6 [shape = 's32[1]{0}', space=sflag, size = 0x4, scoped, tag = 'scoped memory for vae_forward.1']
    #allocation7 [shape = 'u8[262144]{0}', space=vmem, size = 0x40000, scoped, tag = 'input window, operand 2, single buffered']
    #allocation8 [shape = 'u8[2048]{0}', space=vmem, size = 0x800, scoped, tag = 'input window, operand 3, single buffered']
    #allocation9 [shape = 's32[1]{0}', space=sflag, size = 0x4, scoped, tag = 'scoped memory for vae_forward.1']
    #allocation10 [shape = 'u8[131072]{0}', space=vmem, size = 0x20000, scoped, tag = 'input window, operand 4, single buffered']
    #allocation11 [shape = 'u8[512]{0}', space=vmem, size = 0x400, scoped, tag = 'input window, operand 5, single buffered']
    #allocation12 [shape = 's32[1]{0}', space=sflag, size = 0x4, scoped, tag = 'scoped memory for vae_forward.1']
    #allocation13 [shape = 'u8[131072]{0}', space=vmem, size = 0x20000, scoped, tag = 'input window, operand 6, single buffered']
    #allocation14 [shape = 'u8[2048]{0}', space=vmem, size = 0x800, scoped, tag = 'input window, operand 7, single buffered']
    #allocation15 [shape = 's32[1]{0}', space=sflag, size = 0x4, scoped, tag = 'scoped memory for vae_forward.1']
    #allocation16 [shape = 'u8[262144]{0}', space=vmem, size = 0x40000, scoped, tag = 'input window, operand 8, single buffered']
    #allocation17 [shape = 'u8[1024]{0}', space=vmem, size = 0x400, scoped, tag = 'input window, operand 9, single buffered']
    #allocation18 [shape = 's32[1]{0}', space=sflag, size = 0x4, scoped, tag = 'scoped memory for vae_forward.1']
    #allocation19 [shape = 'u8[8192]{0}', space=vmem, size = 0x2000, scoped, tag = 'output window, operand 0, single buffered']
    #allocation20 [shape = 'u8[4096]{0}', space=vmem, size = 0x1000, scoped, tag = 'output window, operand 1, single buffered']
    #allocation21 [shape = 's32[1]{0}', space=sflag, size = 0x4, scoped, tag = 'scoped memory for vae_forward.1']
    %17 = vsyncpa [#allocation3], 0
    %18 = vsyncpa [#allocation6], 0
    %19 = vsyncpa [#allocation9], 0
    %20 = vsyncpa [#allocation12], 0
    %21 = vsyncpa [#allocation15], 0
    %22 = vsyncpa [#allocation18], 0
    %23 = vsyncpa [#allocation4], 0
    %24 = vsyncpa [#allocation21], 0
    // Predicated region
    $region2: #{vae_forward.1} parent=1 // pred_check
      _
    $region3: #{vae_forward.1} parent=1 // pred_check_branch
      %26 = sbr.rel (0) target = $region5
    $region4: #{vae_forward.1} parent=1 // pred_region
      %s28 = ssub.s32 128, 128
      %29 = vsyncadd [#allocation3], %s28
      %s31 = sshll.u32 [#allocation2], 4
      %s32 = int_to_ptr.vmem [resolvable:$true] %s31
      %34 = dma.hbm_to_vmem [thread:$0]  %s0, 128, %s32, [#allocation3]
    $region5: #{vae_forward.1} parent=1 // pred_fallthru
      _
    // Predicated region
    $region6: #{vae_forward.1} parent=1 // pred_check
      _
    $region7: #{vae_forward.1} parent=1 // pred_check_branch
      %36 = sbr.rel (0) target = $region9
    $region8: #{vae_forward.1} parent=1 // pred_region
      %s38 = ssub.s32 128, 128
      %39 = vsyncadd [#allocation6], %s38
      %s41 = sshll.u32 [#allocation5], 4
      %s42 = int_to_ptr.vmem [resolvable:$true] %s41
      %44 = dma.hbm_to_vmem [thread:$0]  %s1, 128, %s42, [#allocation6]
    $region9: #{vae_forward.1} parent=1 // pred_fallthru
      _
    // Predicated region
    $region10: #{vae_forward.1} parent=1 // pred_check
      _
    $region11: #{vae_forward.1} parent=1 // pred_check_branch
      %46 = sbr.rel (0) target = $region13
    $region12: #{vae_forward.1} parent=1 // pred_region
      %s48 = ssub.s32 8192, 8192
      %49 = vsyncadd [#allocation6], %s48
      %s50 = sshll.u32 [#allocation7], 4
      %s51 = int_to_ptr.vmem [resolvable:$true] %s50
      %56 = dma.hbm_to_vmem [thread:$0]  %s2, 8192, %s51, [#allocation6], 256, 256, 16
    $region13: #{vae_forward.1} parent=1 // pred_fallthru
      _
    // Predicated region
    $region14: #{vae_forward.1} parent=1 // pred_check
      _
    $region15: #{vae_forward.1} parent=1 // pred_check_branch
      %58 = sbr.rel (0) target = $region17
    $region16: #{vae_forward.1} parent=1 // pred_region
      %s60 = ssub.s32 64, 64
      %61 = vsyncadd [#allocation9], %s60
      %s63 = sshll.u32 [#allocation8], 4
      %s64 = int_to_ptr.vmem [resolvable:$true] %s63
      %66 = dma.hbm_to_vmem [thread:$0]  %s3, 64, %s64, [#allocation9]
    $region17: #{vae_forward.1} parent=1 // pred_fallthru
      _
    // Predicated region
    $region18: #{vae_forward.1} parent=1 // pred_check
      _
    $region19: #{vae_forward.1} parent=1 // pred_check_branch
      %68 = sbr.rel (0) target = $region21
    $region20: #{vae_forward.1} parent=1 // pred_region
      %s70 = ssub.s32 4096, 4096
      %71 = vsyncadd [#allocation9], %s70
      %s72 = sshll.u32 [#allocation10], 4
      %s73 = int_to_ptr.vmem [resolvable:$true] %s72
      %78 = dma.hbm_to_vmem [thread:$0]  %s4, 4096, %s73, [#allocation9], 64, 64, 4
    $region21: #{vae_forward.1} parent=1 // pred_fallthru
      _
    // Predicated region
    $region22: #{vae_forward.1} parent=1 // pred_check
      _
    $region23: #{vae_forward.1} parent=1 // pred_check_branch
      %80 = sbr.rel (0) target = $region25
    $region24: #{vae_forward.1} parent=1 // pred_region
      %s82 = ssub.s32 16, 16
      %83 = vsyncadd [#allocation12], %s82
      %s85 = sshll.u32 [#allocation11], 4
      %s86 = int_to_ptr.vmem [resolvable:$true] %s85
      %88 = dma.hbm_to_vmem [thread:$0]  %s5, 16, %s86, [#allocation12]
    $region25: #{vae_forward.1} parent=1 // pred_fallthru
      _
    // Predicated region
    $region26: #{vae_forward.1} parent=1 // pred_check
      _
    $region27: #{vae_forward.1} parent=1 // pred_check_branch
      %90 = sbr.rel (0) target = $region29
    $region28: #{vae_forward.1} parent=1 // pred_region
      %s92 = ssub.s32 4096, 4096
      %93 = vsyncadd [#allocation12], %s92
      %s94 = sshll.u32 [#allocation13], 4
      %s95 = int_to_ptr.vmem [resolvable:$true] %s94
      %100 = dma.hbm_to_vmem [thread:$0]  %s6, 4096, %s95, [#allocation12], 256, 256, 16
    $region29: #{vae_forward.1} parent=1 // pred_fallthru
      _
    // Predicated region
    $region30: #{vae_forward.1} parent=1 // pred_check
      _
    $region31: #{vae_forward.1} parent=1 // pred_check_branch
      %102 = sbr.rel (0) target = $region33
    $region32: #{vae_forward.1} parent=1 // pred_region
      %s104 = ssub.s32 64, 64
      %105 = vsyncadd [#allocation15], %s104
      %s107 = sshll.u32 [#allocation14], 4
      %s108 = int_to_ptr.vmem [resolvable:$true] %s107
      %110 = dma.hbm_to_vmem [thread:$0]  %s7, 64, %s108, [#allocation15]
    $region33: #{vae_forward.1} parent=1 // pred_fallthru
      _
    // Predicated region
    $region34: #{vae_forward.1} parent=1 // pred_check
      _
    $region35: #{vae_forward.1} parent=1 // pred_check_branch
      %112 = sbr.rel (0) target = $region37
    $region36: #{vae_forward.1} parent=1 // pred_region
      %s114 = ssub.s32 8192, 8192
      %115 = vsyncadd [#allocation15], %s114
      %s116 = sshll.u32 [#allocation16], 4
      %s117 = int_to_ptr.vmem [resolvable:$true] %s116
      %122 = dma.hbm_to_vmem [thread:$0]  %s8, 8192, %s117, [#allocation15], 128, 128, 8
    $region37: #{vae_forward.1} parent=1 // pred_fallthru
      _
    // Predicated region
    $region38: #{vae_forward.1} parent=1 // pred_check
      _
    $region39: #{vae_forward.1} parent=1 // pred_check_branch
      %124 = sbr.rel (0) target = $region41
    $region40: #{vae_forward.1} parent=1 // pred_region
      %s126 = ssub.s32 32, 32
      %127 = vsyncadd [#allocation18], %s126
      %s129 = sshll.u32 [#allocation17], 4
      %s130 = int_to_ptr.vmem [resolvable:$true] %s129
      %132 = dma.hbm_to_vmem [thread:$0]  %s9, 32, %s130, [#allocation18]
    $region41: #{vae_forward.1} parent=1 // pred_fallthru
      _
    // Predicated region
    $region42: #{vae_forward.1} parent=1 // pred_check
      _
    $region43: #{vae_forward.1} parent=1 // pred_check_branch
      %134 = sbr.rel (0) target = $region45
    $region44: #{vae_forward.1} parent=1 // pred_region
      %135 = dma.done [#allocation3], 128
    $region45: #{vae_forward.1} parent=1 // pred_fallthru
      _
    // Predicated region
    $region46: #{vae_forward.1} parent=1 // pred_check
      _
    $region47: #{vae_forward.1} parent=1 // pred_check_branch
      %137 = sbr.rel (0) target = $region49
    $region48: #{vae_forward.1} parent=1 // pred_region
      %138 = dma.done [#allocation6], 128
    $region49: #{vae_forward.1} parent=1 // pred_fallthru
      _
    // Predicated region
    $region50: #{vae_forward.1} parent=1 // pred_check
      _
    $region51: #{vae_forward.1} parent=1 // pred_check_branch
      %140 = sbr.rel (0) target = $region53
    $region52: #{vae_forward.1} parent=1 // pred_region
      %141 = dma.done [#allocation6], 8192
    $region53: #{vae_forward.1} parent=1 // pred_fallthru
      _
    // Predicated region
    $region54: #{vae_forward.1} parent=1 // pred_check
      _
    $region55: #{vae_forward.1} parent=1 // pred_check_branch
      %143 = sbr.rel (0) target = $region57
    $region56: #{vae_forward.1} parent=1 // pred_region
      %144 = dma.done [#allocation9], 64
    $region57: #{vae_forward.1} parent=1 // pred_fallthru
      _
    // Predicated region
    $region58: #{vae_forward.1} parent=1 // pred_check
      _
    $region59: #{vae_forward.1} parent=1 // pred_check_branch
      %146 = sbr.rel (0) target = $region61
    $region60: #{vae_forward.1} parent=1 // pred_region
      %147 = dma.done [#allocation9], 4096
    $region61: #{vae_forward.1} parent=1 // pred_fallthru
      _
    // Predicated region
    $region62: #{vae_forward.1} parent=1 // pred_check
      _
    $region63: #{vae_forward.1} parent=1 // pred_check_branch
      %149 = sbr.rel (0) target = $region65
    $region64: #{vae_forward.1} parent=1 // pred_region
      %150 = dma.done [#allocation12], 16
    $region65: #{vae_forward.1} parent=1 // pred_fallthru
      _
    // Predicated region
    $region66: #{vae_forward.1} parent=1 // pred_check
      _
    $region67: #{vae_forward.1} parent=1 // pred_check_branch
      %152 = sbr.rel (0) target = $region69
    $region68: #{vae_forward.1} parent=1 // pred_region
      %153 = dma.done [#allocation12], 4096
    $region69: #{vae_forward.1} parent=1 // pred_fallthru
      _
    // Predicated region
    $region70: #{vae_forward.1} parent=1 // pred_check
      _
    $region71: #{vae_forward.1} parent=1 // pred_check_branch
      %155 = sbr.rel (0) target = $region73
    $region72: #{vae_forward.1} parent=1 // pred_region
      %156 = dma.done [#allocation15], 64
    $region73: #{vae_forward.1} parent=1 // pred_fallthru
      _
    // Predicated region
    $region74: #{vae_forward.1} parent=1 // pred_check
      _
    $region75: #{vae_forward.1} parent=1 // pred_check_branch
      %158 = sbr.rel (0) target = $region77
    $region76: #{vae_forward.1} parent=1 // pred_region
      %159 = dma.done [#allocation15], 8192
    $region77: #{vae_forward.1} parent=1 // pred_fallthru
      _
    // Predicated region
    $region78: #{vae_forward.1} parent=1 // pred_check
      _
    $region79: #{vae_forward.1} parent=1 // pred_check_branch
      %161 = sbr.rel (0) target = $region81
    $region80: #{vae_forward.1} parent=1 // pred_region
      %162 = dma.done [#allocation18], 32
    $region81: #{vae_forward.1} parent=1 // pred_fallthru
      _
    %v164 = vld [vmem:[#allocation2] sm:$0xff]
    %v165 = vld [vmem:[#allocation5] sm:$0xff]
    %v166 = vld [vmem:[#allocation7] sm:$0xff]
    %v167 = vld [vmem:[#allocation7 + $0x8] sm:$0xff]
    %v168 = vld [vmem:[#allocation7 + $0x10] sm:$0xff]
    %v169 = vld [vmem:[#allocation7 + $0x18] sm:$0xff]
    %v170 = vld [vmem:[#allocation7 + $0x20] sm:$0xff]
    %v171 = vld [vmem:[#allocation7 + $0x28] sm:$0xff]
    %v172 = vld [vmem:[#allocation7 + $0x30] sm:$0xff]
    %v173 = vld [vmem:[#allocation7 + $0x38] sm:$0xff]
    %v174 = vld [vmem:[#allocation7 + $0x40] sm:$0xff]
    %v175 = vld [vmem:[#allocation7 + $0x48] sm:$0xff]
    %v176 = vld [vmem:[#allocation7 + $0x50] sm:$0xff]
    %v177 = vld [vmem:[#allocation7 + $0x58] sm:$0xff]
    %v178 = vld [vmem:[#allocation7 + $0x60] sm:$0xff]
    %v179 = vld [vmem:[#allocation7 + $0x68] sm:$0xff]
    %v180 = vld [vmem:[#allocation7 + $0x70] sm:$0xff]
    %v181 = vld [vmem:[#allocation7 + $0x78] sm:$0xff]
    %v182 = vld [vmem:[#allocation7 + $0x80] sm:$0xff]
    %v183 = vld [vmem:[#allocation7 + $0x88] sm:$0xff]
    %v184 = vld [vmem:[#allocation7 + $0x90] sm:$0xff]
    %v185 = vld [vmem:[#allocation7 + $0x98] sm:$0xff]
    %v186 = vld [vmem:[#allocation7 + $0xa0] sm:$0xff]
    %v187 = vld [vmem:[#allocation7 + $0xa8] sm:$0xff]
    %v188 = vld [vmem:[#allocation7 + $0xb0] sm:$0xff]
    %v189 = vld [vmem:[#allocation7 + $0xb8] sm:$0xff]
    %v190 = vld [vmem:[#allocation7 + $0xc0] sm:$0xff]
    %v191 = vld [vmem:[#allocation7 + $0xc8] sm:$0xff]
    %v192 = vld [vmem:[#allocation7 + $0xd0] sm:$0xff]
    %v193 = vld [vmem:[#allocation7 + $0xd8] sm:$0xff]
    %v194 = vld [vmem:[#allocation7 + $0xe0] sm:$0xff]
    %v195 = vld [vmem:[#allocation7 + $0xe8] sm:$0xff]
    %v196 = vld [vmem:[#allocation7 + $0xf0] sm:$0xff]
    %v197 = vld [vmem:[#allocation7 + $0xf8] sm:$0xff]
    %v198 = vld [vmem:[#allocation7 + $0x100] sm:$0xff]
    %v199 = vld [vmem:[#allocation7 + $0x108] sm:$0xff]
    %v200 = vld [vmem:[#allocation7 + $0x110] sm:$0xff]
    %v201 = vld [vmem:[#allocation7 + $0x118] sm:$0xff]
    %v202 = vld [vmem:[#allocation7 + $0x120] sm:$0xff]
    %v203 = vld [vmem:[#allocation7 + $0x128] sm:$0xff]
    %v204 = vld [vmem:[#allocation7 + $0x130] sm:$0xff]
    %v205 = vld [vmem:[#allocation7 + $0x138] sm:$0xff]
    %v206 = vld [vmem:[#allocation7 + $0x140] sm:$0xff]
    %v207 = vld [vmem:[#allocation7 + $0x148] sm:$0xff]
    %v208 = vld [vmem:[#allocation7 + $0x150] sm:$0xff]
    %v209 = vld [vmem:[#allocation7 + $0x158] sm:$0xff]
    %v210 = vld [vmem:[#allocation7 + $0x160] sm:$0xff]
    %v211 = vld [vmem:[#allocation7 + $0x168] sm:$0xff]
    %v212 = vld [vmem:[#allocation7 + $0x170] sm:$0xff]
    %v213 = vld [vmem:[#allocation7 + $0x178] sm:$0xff]
    %v214 = vld [vmem:[#allocation7 + $0x180] sm:$0xff]
    %v215 = vld [vmem:[#allocation7 + $0x188] sm:$0xff]
    %v216 = vld [vmem:[#allocation7 + $0x190] sm:$0xff]
    %v217 = vld [vmem:[#allocation7 + $0x198] sm:$0xff]
    %v218 = vld [vmem:[#allocation7 + $0x1a0] sm:$0xff]
    %v219 = vld [vmem:[#allocation7 + $0x1a8] sm:$0xff]
    %v220 = vld [vmem:[#allocation7 + $0x1b0] sm:$0xff]
    %v221 = vld [vmem:[#allocation7 + $0x1b8] sm:$0xff]
    %v222 = vld [vmem:[#allocation7 + $0x1c0] sm:$0xff]
    %v223 = vld [vmem:[#allocation7 + $0x1c8] sm:$0xff]
    %v224 = vld [vmem:[#allocation7 + $0x1d0] sm:$0xff]
    %v225 = vld [vmem:[#allocation7 + $0x1d8] sm:$0xff]
    %v226 = vld [vmem:[#allocation7 + $0x1e0] sm:$0xff]
    %v227 = vld [vmem:[#allocation7 + $0x1e8] sm:$0xff]
    %v228 = vld [vmem:[#allocation7 + $0x1f0] sm:$0xff]
    %v229 = vld [vmem:[#allocation7 + $0x1f8] sm:$0xff]
    %v230 = vld [vmem:[#allocation8] sm:$0xf]
    %v232 = vlaneseq
    %v233 = vshrl.u32 %v232, 7
    %v234 = vsub.s32 0, %v233
    %v235 = vrot.slane %v230, %v234
    %v236 = vlaneseq
    %v237 = vshrl.u32 %v236, 7
    %v238 = vsub.s32 1, %v237
    %v239 = vrot.slane %v230, %v238
    %v240 = vlaneseq
    %v241 = vshrl.u32 %v240, 7
    %v242 = vsub.s32 2, %v241
    %v243 = vrot.slane %v230, %v242
    %v244 = vlaneseq
    %v245 = vshrl.u32 %v244, 7
    %v246 = vsub.s32 3, %v245
    %v247 = vrot.slane %v230, %v246
    %v253 = vunpack.c.l.b16 %v164
    %v254 = vunpack.c.h.b16 %v164
    %v255 = vpack.c.b16 %v253, %v253
    %v256 = vpack.c.b16 %v254, %v254
    %v323 = vunpack.c.l.b16 %v166
    %v324 = vunpack.c.h.b16 %v166
    %v325 = vunpack.c.l.b16 %v167
    %v326 = vunpack.c.h.b16 %v167
    %v327 = vunpack.c.l.b16 %v168
    %v328 = vunpack.c.h.b16 %v168
    %v329 = vunpack.c.l.b16 %v169
    %v330 = vunpack.c.h.b16 %v169
    %v331 = vunpack.c.l.b16 %v170
    %v332 = vunpack.c.h.b16 %v170
    %v333 = vunpack.c.l.b16 %v171
    %v334 = vunpack.c.h.b16 %v171
    %v335 = vunpack.c.l.b16 %v172
    %v336 = vunpack.c.h.b16 %v172
    %v337 = vunpack.c.l.b16 %v173
    %v338 = vunpack.c.h.b16 %v173
    %v339 = vunpack.c.l.b16 %v174
    %v340 = vunpack.c.h.b16 %v174
    %v341 = vunpack.c.l.b16 %v175
    %v342 = vunpack.c.h.b16 %v175
    %v343 = vunpack.c.l.b16 %v176
    %v344 = vunpack.c.h.b16 %v176
    %v345 = vunpack.c.l.b16 %v177
    %v346 = vunpack.c.h.b16 %v177
    %v347 = vunpack.c.l.b16 %v178
    %v348 = vunpack.c.h.b16 %v178
    %v349 = vunpack.c.l.b16 %v179
    %v350 = vunpack.c.h.b16 %v179
    %v351 = vunpack.c.l.b16 %v180
    %v352 = vunpack.c.h.b16 %v180
    %v353 = vunpack.c.l.b16 %v181
    %v354 = vunpack.c.h.b16 %v181
    %v355 = vunpack.c.l.b16 %v182
    %v356 = vunpack.c.h.b16 %v182
    %v357 = vunpack.c.l.b16 %v183
    %v358 = vunpack.c.h.b16 %v183
    %v359 = vunpack.c.l.b16 %v184
    %v360 = vunpack.c.h.b16 %v184
    %v361 = vunpack.c.l.b16 %v185
    %v362 = vunpack.c.h.b16 %v185
    %v363 = vunpack.c.l.b16 %v186
    %v364 = vunpack.c.h.b16 %v186
    %v365 = vunpack.c.l.b16 %v187
    %v366 = vunpack.c.h.b16 %v187
    %v367 = vunpack.c.l.b16 %v188
    %v368 = vunpack.c.h.b16 %v188
    %v369 = vunpack.c.l.b16 %v189
    %v370 = vunpack.c.h.b16 %v189
    %v371 = vunpack.c.l.b16 %v190
    %v372 = vunpack.c.h.b16 %v190
    %v373 = vunpack.c.l.b16 %v191
    %v374 = vunpack.c.h.b16 %v191
    %v375 = vunpack.c.l.b16 %v192
    %v376 = vunpack.c.h.b16 %v192
    %v377 = vunpack.c.l.b16 %v193
    %v378 = vunpack.c.h.b16 %v193
    %v379 = vunpack.c.l.b16 %v194
    %v380 = vunpack.c.h.b16 %v194
    %v381 = vunpack.c.l.b16 %v195
    %v382 = vunpack.c.h.b16 %v195
    %v383 = vunpack.c.l.b16 %v196
    %v384 = vunpack.c.h.b16 %v196
    %v385 = vunpack.c.l.b16 %v197
    %v386 = vunpack.c.h.b16 %v197
    %v387 = vunpack.c.l.b16 %v198
    %v388 = vunpack.c.h.b16 %v198
    %v389 = vunpack.c.l.b16 %v199
    %v390 = vunpack.c.h.b16 %v199
    %v391 = vunpack.c.l.b16 %v200
    %v392 = vunpack.c.h.b16 %v200
    %v393 = vunpack.c.l.b16 %v201
    %v394 = vunpack.c.h.b16 %v201
    %v395 = vunpack.c.l.b16 %v202
    %v396 = vunpack.c.h.b16 %v202
    %v397 = vunpack.c.l.b16 %v203
    %v398 = vunpack.c.h.b16 %v203
    %v399 = vunpack.c.l.b16 %v204
    %v400 = vunpack.c.h.b16 %v204
    %v401 = vunpack.c.l.b16 %v205
    %v402 = vunpack.c.h.b16 %v205
    %v403 = vunpack.c.l.b16 %v206
    %v404 = vunpack.c.h.b16 %v206
    %v405 = vunpack.c.l.b16 %v207
    %v406 = vunpack.c.h.b16 %v207
    %v407 = vunpack.c.l.b16 %v208
    %v408 = vunpack.c.h.b16 %v208
    %v409 = vunpack.c.l.b16 %v209
    %v410 = vunpack.c.h.b16 %v209
    %v411 = vunpack.c.l.b16 %v210
    %v412 = vunpack.c.h.b16 %v210
    %v413 = vunpack.c.l.b16 %v211
    %v414 = vunpack.c.h.b16 %v211
    %v415 = vunpack.c.l.b16 %v212
    %v416 = vunpack.c.h.b16 %v212
    %v417 = vunpack.c.l.b16 %v213
    %v418 = vunpack.c.h.b16 %v213
    %v419 = vunpack.c.l.b16 %v214
    %v420 = vunpack.c.h.b16 %v214
    %v421 = vunpack.c.l.b16 %v215
    %v422 = vunpack.c.h.b16 %v215
    %v423 = vunpack.c.l.b16 %v216
    %v424 = vunpack.c.h.b16 %v216
    %v425 = vunpack.c.l.b16 %v217
    %v426 = vunpack.c.h.b16 %v217
    %v427 = vunpack.c.l.b16 %v218
    %v428 = vunpack.c.h.b16 %v218
    %v429 = vunpack.c.l.b16 %v219
    %v430 = vunpack.c.h.b16 %v219
    %v431 = vunpack.c.l.b16 %v220
    %v432 = vunpack.c.h.b16 %v220
    %v433 = vunpack.c.l.b16 %v221
    %v434 = vunpack.c.h.b16 %v221
    %v435 = vunpack.c.l.b16 %v222
    %v436 = vunpack.c.h.b16 %v222
    %v437 = vunpack.c.l.b16 %v223
    %v438 = vunpack.c.h.b16 %v223
    %v439 = vunpack.c.l.b16 %v224
    %v440 = vunpack.c.h.b16 %v224
    %v441 = vunpack.c.l.b16 %v225
    %v442 = vunpack.c.h.b16 %v225
    %v443 = vunpack.c.l.b16 %v226
    %v444 = vunpack.c.h.b16 %v226
    %v445 = vunpack.c.l.b16 %v227
    %v446 = vunpack.c.h.b16 %v227
    %v447 = vunpack.c.l.b16 %v228
    %v448 = vunpack.c.h.b16 %v228
    %v449 = vunpack.c.l.b16 %v229
    %v450 = vunpack.c.h.b16 %v229
    %v451 = vpack.c.b16 %v327, %v323
    %v452 = vpack.c.b16 %v328, %v324
    %v453 = vpack.c.b16 %v329, %v325
    %v454 = vpack.c.b16 %v330, %v326
    %v455 = vpack.c.b16 %v335, %v331
    %v456 = vpack.c.b16 %v336, %v332
    %v457 = vpack.c.b16 %v337, %v333
    %v458 = vpack.c.b16 %v338, %v334
    %v459 = vpack.c.b16 %v343, %v339
    %v460 = vpack.c.b16 %v344, %v340
    %v461 = vpack.c.b16 %v345, %v341
    %v462 = vpack.c.b16 %v346, %v342
    %v463 = vpack.c.b16 %v351, %v347
    %v464 = vpack.c.b16 %v352, %v348
    %v465 = vpack.c.b16 %v353, %v349
    %v466 = vpack.c.b16 %v354, %v350
    %v467 = vpack.c.b16 %v359, %v355
    %v468 = vpack.c.b16 %v360, %v356
    %v469 = vpack.c.b16 %v361, %v357
    %v470 = vpack.c.b16 %v362, %v358
    %v471 = vpack.c.b16 %v367, %v363
    %v472 = vpack.c.b16 %v368, %v364
    %v473 = vpack.c.b16 %v369, %v365
    %v474 = vpack.c.b16 %v370, %v366
    %v475 = vpack.c.b16 %v375, %v371
    %v476 = vpack.c.b16 %v376, %v372
    %v477 = vpack.c.b16 %v377, %v373
    %v478 = vpack.c.b16 %v378, %v374
    %v479 = vpack.c.b16 %v383, %v379
    %v480 = vpack.c.b16 %v384, %v380
    %v481 = vpack.c.b16 %v385, %v381
    %v482 = vpack.c.b16 %v386, %v382
    %v483 = vpack.c.b16 %v391, %v387
    %v484 = vpack.c.b16 %v392, %v388
    %v485 = vpack.c.b16 %v393, %v389
    %v486 = vpack.c.b16 %v394, %v390
    %v487 = vpack.c.b16 %v399, %v395
    %v488 = vpack.c.b16 %v400, %v396
    %v489 = vpack.c.b16 %v401, %v397
    %v490 = vpack.c.b16 %v402, %v398
    %v491 = vpack.c.b16 %v407, %v403
    %v492 = vpack.c.b16 %v408, %v404
    %v493 = vpack.c.b16 %v409, %v405
    %v494 = vpack.c.b16 %v410, %v406
    %v495 = vpack.c.b16 %v415, %v411
    %v496 = vpack.c.b16 %v416, %v412
    %v497 = vpack.c.b16 %v417, %v413
    %v498 = vpack.c.b16 %v418, %v414
    %v499 = vpack.c.b16 %v423, %v419
    %v500 = vpack.c.b16 %v424, %v420
    %v501 = vpack.c.b16 %v425, %v421
    %v502 = vpack.c.b16 %v426, %v422
    %v503 = vpack.c.b16 %v431, %v427
    %v504 = vpack.c.b16 %v432, %v428
    %v505 = vpack.c.b16 %v433, %v429
    %v506 = vpack.c.b16 %v434, %v430
    %v507 = vpack.c.b16 %v439, %v435
    %v508 = vpack.c.b16 %v440, %v436
    %v509 = vpack.c.b16 %v441, %v437
    %v510 = vpack.c.b16 %v442, %v438
    %v511 = vpack.c.b16 %v447, %v443
    %v512 = vpack.c.b16 %v448, %v444
    %v513 = vpack.c.b16 %v449, %v445
    %v514 = vpack.c.b16 %v450, %v446
    %579 = vmatprep.subr.bf16.mxu0 %v452
    %580 = vmatpush1.bf16.msra.mxu0 %v451
    %581 = vmatprep.subr.bf16.mxu0 %v456
    %582 = vmatpush1.bf16.msra.mxu0 %v455
    %583 = vmatprep.subr.bf16.mxu0 %v460
    %584 = vmatpush1.bf16.msra.mxu0 %v459
    %585 = vmatprep.subr.bf16.mxu0 %v464
    %586 = vmatpush1.bf16.msra.mxu0 %v463
    %587 = vmatprep.subr.bf16.mxu0 %v468
    %588 = vmatpush1.bf16.msra.mxu0 %v467
    %589 = vmatprep.subr.bf16.mxu0 %v472
    %590 = vmatpush1.bf16.msra.mxu0 %v471
    %591 = vmatprep.subr.bf16.mxu0 %v476
    %592 = vmatpush1.bf16.msra.mxu0 %v475
    %593 = vmatprep.subr.bf16.mxu0 %v480
    %594 = vmatpush1.bf16.msra.mxu0 %v479
    %595 = vmatprep.subr.bf16.mxu0 %v484
    %596 = vmatpush1.bf16.msra.mxu0 %v483
    %597 = vmatprep.subr.bf16.mxu0 %v488
    %598 = vmatpush1.bf16.msra.mxu0 %v487
    %599 = vmatprep.subr.bf16.mxu0 %v492
    %600 = vmatpush1.bf16.msra.mxu0 %v491
    %601 = vmatprep.subr.bf16.mxu0 %v496
    %602 = vmatpush1.bf16.msra.mxu0 %v495
    %603 = vmatprep.subr.bf16.mxu0 %v500
    %604 = vmatpush1.bf16.msra.mxu0 %v499
    %605 = vmatprep.subr.bf16.mxu0 %v504
    %606 = vmatpush1.bf16.msra.mxu0 %v503
    %607 = vmatprep.subr.bf16.mxu0 %v508
    %608 = vmatpush1.bf16.msra.mxu0 %v507
    %609 = vmatprep.subr.bf16.mxu0 %v512
    %610 = vmatpush1.bf16.msra.mxu0 %v511
    %611 = vmatprep.mubr.bf16.mxu0 %v256
    %612 = vmatmul.mubr.bf16.gmra.mrb[0].mxu0 %v255
    %v613 = vpop.f32.mrb[0].mxu0
    %v614 = vadd.f32 %v235, %v613
    %v615 = vpop.f32.mrb[0].mxu0
    %v616 = vadd.f32 %v239, %v615
    %v617 = vpop.f32.mrb[0].mxu0
    %v618 = vpop.f32.mrb[0].mxu0
    %619 = vdwg.mxu0
    %620 = vmatprep.subr.bf16.mxu0 %v454
    %621 = vmatpush1.bf16.msra.mxu0 %v453
    %622 = vmatprep.subr.bf16.mxu0 %v458
    %623 = vmatpush1.bf16.msra.mxu0 %v457
    %624 = vmatprep.subr.bf16.mxu0 %v462
    %625 = vmatpush1.bf16.msra.mxu0 %v461
    %626 = vmatprep.subr.bf16.mxu0 %v466
    %627 = vmatpush1.bf16.msra.mxu0 %v465
    %628 = vmatprep.subr.bf16.mxu0 %v470
    %629 = vmatpush1.bf16.msra.mxu0 %v469
    %630 = vmatprep.subr.bf16.mxu0 %v474
    %631 = vmatpush1.bf16.msra.mxu0 %v473
    %632 = vmatprep.subr.bf16.mxu0 %v478
    %633 = vmatpush1.bf16.msra.mxu0 %v477
    %634 = vmatprep.subr.bf16.mxu0 %v482
    %635 = vmatpush1.bf16.msra.mxu0 %v481
    %636 = vmatprep.subr.bf16.mxu0 %v486
    %637 = vmatpush1.bf16.msra.mxu0 %v485
    %638 = vmatprep.subr.bf16.mxu0 %v490
    %639 = vmatpush1.bf16.msra.mxu0 %v489
    %640 = vmatprep.subr.bf16.mxu0 %v494
    %641 = vmatpush1.bf16.msra.mxu0 %v493
    %642 = vmatprep.subr.bf16.mxu0 %v498
    %643 = vmatpush1.bf16.msra.mxu0 %v497
    %644 = vmatprep.subr.bf16.mxu0 %v502
    %645 = vmatpush1.bf16.msra.mxu0 %v501
    %646 = vmatprep.subr.bf16.mxu0 %v506
    %647 = vmatpush1.bf16.msra.mxu0 %v505
    %648 = vmatprep.subr.bf16.mxu0 %v510
    %649 = vmatpush1.bf16.msra.mxu0 %v509
    %650 = vmatprep.subr.bf16.mxu0 %v514
    %651 = vmatpush1.bf16.msra.mxu0 %v513
    %652 = vmatprep.mubr.bf16.mxu0 %v256
    %653 = vmatmul.mubr.bf16.gmra.mrb[0].mxu0 %v255
    %v654 = vpop.f32.mrb[0].mxu0
    %v655 = vadd.f32 %v243, %v654
    %v656 = vpop.f32.mrb[0].mxu0
    %v657 = vadd.f32 %v247, %v656
    %v658 = vpop.f32.mrb[0].mxu0
    %v659 = vpop.f32.mrb[0].mxu0
    %660 = vdwg.mxu0
    %v661 = vmax.f32 %v614, 0.0
    %v662 = vmax.f32 %v616, 0.0
    %v663 = vmax.f32 %v655, 0.0
    %v664 = vmax.f32 %v657, 0.0
    %v665 = vpack.c.bf16 %v661, %v661
    %v666 = vpack.c.bf16 %v662, %v662
    %v667 = vpack.c.bf16 %v663, %v663
    %v668 = vpack.c.bf16 %v664, %v664
    %v669 = vld [vmem:[#allocation10] sm:$0xf]
    %v670 = vld [vmem:[#allocation10 + $0x4] sm:$0xf]
    %v671 = vld [vmem:[#allocation10 + $0x8] sm:$0xf]
    %v672 = vld [vmem:[#allocation10 + $0xc] sm:$0xf]
    %v673 = vld [vmem:[#allocation10 + $0x10] sm:$0xf]
    %v674 = vld [vmem:[#allocation10 + $0x14] sm:$0xf]
    %v675 = vld [vmem:[#allocation10 + $0x18] sm:$0xf]
    %v676 = vld [vmem:[#allocation10 + $0x1c] sm:$0xf]
    %v677 = vld [vmem:[#allocation10 + $0x20] sm:$0xf]
    %v678 = vld [vmem:[#allocation10 + $0x24] sm:$0xf]
    %v679 = vld [vmem:[#allocation10 + $0x28] sm:$0xf]
    %v680 = vld [vmem:[#allocation10 + $0x2c] sm:$0xf]
    %v681 = vld [vmem:[#allocation10 + $0x30] sm:$0xf]
    %v682 = vld [vmem:[#allocation10 + $0x34] sm:$0xf]
    %v683 = vld [vmem:[#allocation10 + $0x38] sm:$0xf]
    %v684 = vld [vmem:[#allocation10 + $0x3c] sm:$0xf]
    %v685 = vld [vmem:[#allocation10 + $0x40] sm:$0xf]
    %v686 = vld [vmem:[#allocation10 + $0x44] sm:$0xf]
    %v687 = vld [vmem:[#allocation10 + $0x48] sm:$0xf]
    %v688 = vld [vmem:[#allocation10 + $0x4c] sm:$0xf]
    %v689 = vld [vmem:[#allocation10 + $0x50] sm:$0xf]
    %v690 = vld [vmem:[#allocation10 + $0x54] sm:$0xf]
    %v691 = vld [vmem:[#allocation10 + $0x58] sm:$0xf]
    %v692 = vld [vmem:[#allocation10 + $0x5c] sm:$0xf]
    %v693 = vld [vmem:[#allocation10 + $0x60] sm:$0xf]
    %v694 = vld [vmem:[#allocation10 + $0x64] sm:$0xf]
    %v695 = vld [vmem:[#allocation10 + $0x68] sm:$0xf]
    %v696 = vld [vmem:[#allocation10 + $0x6c] sm:$0xf]
    %v697 = vld [vmem:[#allocation10 + $0x70] sm:$0xf]
    %v698 = vld [vmem:[#allocation10 + $0x74] sm:$0xf]
    %v699 = vld [vmem:[#allocation10 + $0x78] sm:$0xf]
    %v700 = vld [vmem:[#allocation10 + $0x7c] sm:$0xf]
    %v701 = vld [vmem:[#allocation10 + $0x80] sm:$0xf]
    %v702 = vld [vmem:[#allocation10 + $0x84] sm:$0xf]
    %v703 = vld [vmem:[#allocation10 + $0x88] sm:$0xf]
    %v704 = vld [vmem:[#allocation10 + $0x8c] sm:$0xf]
    %v705 = vld [vmem:[#allocation10 + $0x90] sm:$0xf]
    %v706 = vld [vmem:[#allocation10 + $0x94] sm:$0xf]
    %v707 = vld [vmem:[#allocation10 + $0x98] sm:$0xf]
    %v708 = vld [vmem:[#allocation10 + $0x9c] sm:$0xf]
    %v709 = vld [vmem:[#allocation10 + $0xa0] sm:$0xf]
    %v710 = vld [vmem:[#allocation10 + $0xa4] sm:$0xf]
    %v711 = vld [vmem:[#allocation10 + $0xa8] sm:$0xf]
    %v712 = vld [vmem:[#allocation10 + $0xac] sm:$0xf]
    %v713 = vld [vmem:[#allocation10 + $0xb0] sm:$0xf]
    %v714 = vld [vmem:[#allocation10 + $0xb4] sm:$0xf]
    %v715 = vld [vmem:[#allocation10 + $0xb8] sm:$0xf]
    %v716 = vld [vmem:[#allocation10 + $0xbc] sm:$0xf]
    %v717 = vld [vmem:[#allocation10 + $0xc0] sm:$0xf]
    %v718 = vld [vmem:[#allocation10 + $0xc4] sm:$0xf]
    %v719 = vld [vmem:[#allocation10 + $0xc8] sm:$0xf]
    %v720 = vld [vmem:[#allocation10 + $0xcc] sm:$0xf]
    %v721 = vld [vmem:[#allocation10 + $0xd0] sm:$0xf]
    %v722 = vld [vmem:[#allocation10 + $0xd4] sm:$0xf]
    %v723 = vld [vmem:[#allocation10 + $0xd8] sm:$0xf]
    %v724 = vld [vmem:[#allocation10 + $0xdc] sm:$0xf]
    %v725 = vld [vmem:[#allocation10 + $0xe0] sm:$0xf]
    %v726 = vld [vmem:[#allocation10 + $0xe4] sm:$0xf]
    %v727 = vld [vmem:[#allocation10 + $0xe8] sm:$0xf]
    %v728 = vld [vmem:[#allocation10 + $0xec] sm:$0xf]
    %v729 = vld [vmem:[#allocation10 + $0xf0] sm:$0xf]
    %v730 = vld [vmem:[#allocation10 + $0xf4] sm:$0xf]
    %v731 = vld [vmem:[#allocation10 + $0xf8] sm:$0xf]
    %v732 = vld [vmem:[#allocation10 + $0xfc] sm:$0xf]
    %v733 = vld [vmem:[#allocation11] sm:$0x1]
    %v735 = vlaneseq
    %v736 = vshrl.u32 %v735, 7
    %v737 = vsub.s32 0, %v736
    %v738 = vrot.slane %v733, %v737
    %v804 = vunpack.c.l.b16 %v669
    %v805 = vunpack.c.l.b16 %v670
    %v806 = vunpack.c.l.b16 %v671
    %v807 = vunpack.c.l.b16 %v672
    %v808 = vunpack.c.l.b16 %v673
    %v809 = vunpack.c.l.b16 %v674
    %v810 = vunpack.c.l.b16 %v675
    %v811 = vunpack.c.l.b16 %v676
    %v812 = vunpack.c.l.b16 %v677
    %v813 = vunpack.c.l.b16 %v678
    %v814 = vunpack.c.l.b16 %v679
    %v815 = vunpack.c.l.b16 %v680
    %v816 = vunpack.c.l.b16 %v681
    %v817 = vunpack.c.l.b16 %v682
    %v818 = vunpack.c.l.b16 %v683
    %v819 = vunpack.c.l.b16 %v684
    %v820 = vunpack.c.l.b16 %v685
    %v821 = vunpack.c.l.b16 %v686
    %v822 = vunpack.c.l.b16 %v687
    %v823 = vunpack.c.l.b16 %v688
    %v824 = vunpack.c.l.b16 %v689
    %v825 = vunpack.c.l.b16 %v690
    %v826 = vunpack.c.l.b16 %v691
    %v827 = vunpack.c.l.b16 %v692
    %v828 = vunpack.c.l.b16 %v693
    %v829 = vunpack.c.l.b16 %v694
    %v830 = vunpack.c.l.b16 %v695
    %v831 = vunpack.c.l.b16 %v696
    %v832 = vunpack.c.l.b16 %v697
    %v833 = vunpack.c.l.b16 %v698
    %v834 = vunpack.c.l.b16 %v699
    %v835 = vunpack.c.l.b16 %v700
    %v836 = vunpack.c.l.b16 %v701
    %v837 = vunpack.c.l.b16 %v702
    %v838 = vunpack.c.l.b16 %v703
    %v839 = vunpack.c.l.b16 %v704
    %v840 = vunpack.c.l.b16 %v705
    %v841 = vunpack.c.l.b16 %v706
    %v842 = vunpack.c.l.b16 %v707
    %v843 = vunpack.c.l.b16 %v708
    %v844 = vunpack.c.l.b16 %v709
    %v845 = vunpack.c.l.b16 %v710
    %v846 = vunpack.c.l.b16 %v711
    %v847 = vunpack.c.l.b16 %v712
    %v848 = vunpack.c.l.b16 %v713
    %v849 = vunpack.c.l.b16 %v714
    %v850 = vunpack.c.l.b16 %v715
    %v851 = vunpack.c.l.b16 %v716
    %v852 = vunpack.c.l.b16 %v717
    %v853 = vunpack.c.l.b16 %v718
    %v854 = vunpack.c.l.b16 %v719
    %v855 = vunpack.c.l.b16 %v720
    %v856 = vunpack.c.l.b16 %v721
    %v857 = vunpack.c.l.b16 %v722
    %v858 = vunpack.c.l.b16 %v723
    %v859 = vunpack.c.l.b16 %v724
    %v860 = vunpack.c.l.b16 %v725
    %v861 = vunpack.c.l.b16 %v726
    %v862 = vunpack.c.l.b16 %v727
    %v863 = vunpack.c.l.b16 %v728
    %v864 = vunpack.c.l.b16 %v729
    %v865 = vunpack.c.l.b16 %v730
    %v866 = vunpack.c.l.b16 %v731
    %v867 = vunpack.c.l.b16 %v732
    %v868 = vpack.c.b16 %v805, %v804
    %v869 = vpack.c.b16 %v807, %v806
    %v870 = vpack.c.b16 %v809, %v808
    %v871 = vpack.c.b16 %v811, %v810
    %v872 = vpack.c.b16 %v813, %v812
    %v873 = vpack.c.b16 %v815, %v814
    %v874 = vpack.c.b16 %v817, %v816
    %v875 = vpack.c.b16 %v819, %v818
    %v876 = vpack.c.b16 %v821, %v820
    %v877 = vpack.c.b16 %v823, %v822
    %v878 = vpack.c.b16 %v825, %v824
    %v879 = vpack.c.b16 %v827, %v826
    %v880 = vpack.c.b16 %v829, %v828
    %v881 = vpack.c.b16 %v831, %v830
    %v882 = vpack.c.b16 %v833, %v832
    %v883 = vpack.c.b16 %v835, %v834
    %v884 = vpack.c.b16 %v837, %v836
    %v885 = vpack.c.b16 %v839, %v838
    %v886 = vpack.c.b16 %v841, %v840
    %v887 = vpack.c.b16 %v843, %v842
    %v888 = vpack.c.b16 %v845, %v844
    %v889 = vpack.c.b16 %v847, %v846
    %v890 = vpack.c.b16 %v849, %v848
    %v891 = vpack.c.b16 %v851, %v850
    %v892 = vpack.c.b16 %v853, %v852
    %v893 = vpack.c.b16 %v855, %v854
    %v894 = vpack.c.b16 %v857, %v856
    %v895 = vpack.c.b16 %v859, %v858
    %v896 = vpack.c.b16 %v861, %v860
    %v897 = vpack.c.b16 %v863, %v862
    %v898 = vpack.c.b16 %v865, %v864
    %v899 = vpack.c.b16 %v867, %v866
    %932 = vmatprep.subr.bf16.mxu0 0
    %933 = vmatpush1.bf16.msra.mxu0 %v868
    %934 = vmatprep.subr.bf16.mxu0 0
    %935 = vmatpush1.bf16.msra.mxu0 %v869
    %936 = vmatprep.subr.bf16.mxu0 0
    %937 = vmatpush1.bf16.msra.mxu0 %v870
    %938 = vmatprep.subr.bf16.mxu0 0
    %939 = vmatpush1.bf16.msra.mxu0 %v871
    %940 = vmatprep.subr.bf16.mxu0 0
    %941 = vmatpush1.bf16.msra.mxu0 %v872
    %942 = vmatprep.subr.bf16.mxu0 0
    %943 = vmatpush1.bf16.msra.mxu0 %v873
    %944 = vmatprep.subr.bf16.mxu0 0
    %945 = vmatpush1.bf16.msra.mxu0 %v874
    %946 = vmatprep.subr.bf16.mxu0 0
    %947 = vmatpush1.bf16.msra.mxu0 %v875
    %948 = vmatprep.subr.bf16.mxu0 0
    %949 = vmatpush1.bf16.msra.mxu0 %v876
    %950 = vmatprep.subr.bf16.mxu0 0
    %951 = vmatpush1.bf16.msra.mxu0 %v877
    %952 = vmatprep.subr.bf16.mxu0 0
    %953 = vmatpush1.bf16.msra.mxu0 %v878
    %954 = vmatprep.subr.bf16.mxu0 0
    %955 = vmatpush1.bf16.msra.mxu0 %v879
    %956 = vmatprep.subr.bf16.mxu0 0
    %957 = vmatpush1.bf16.msra.mxu0 %v880
    %958 = vmatprep.subr.bf16.mxu0 0
    %959 = vmatpush1.bf16.msra.mxu0 %v881
    %960 = vmatprep.subr.bf16.mxu0 0
    %961 = vmatpush1.bf16.msra.mxu0 %v882
    %962 = vmatprep.subr.bf16.mxu0 0
    %963 = vmatpush1.bf16.msra.mxu0 %v883
    %964 = vmatprep.mubr.bf16.mxu0 %v666
    %965 = vmatmul.mubr.bf16.gmra.mrb[0].mxu0 %v665
    %v966 = vpop.f32.mrb[0].mxu0
    %v967 = vadd.f32 %v738, %v966
    %v968 = vpop.f32.mrb[0].mxu0
    %v969 = vpop.f32.mrb[0].mxu0
    %v970 = vpop.f32.mrb[0].mxu0
    %971 = vdwg.mxu0
    %972 = vmatprep.subr.bf16.mxu0 0
    %973 = vmatpush1.bf16.msra.mxu0 %v884
    %974 = vmatprep.subr.bf16.mxu0 0
    %975 = vmatpush1.bf16.msra.mxu0 %v885
    %976 = vmatprep.subr.bf16.mxu0 0
    %977 = vmatpush1.bf16.msra.mxu0 %v886
    %978 = vmatprep.subr.bf16.mxu0 0
    %979 = vmatpush1.bf16.msra.mxu0 %v887
    %980 = vmatprep.subr.bf16.mxu0 0
    %981 = vmatpush1.bf16.msra.mxu0 %v888
    %982 = vmatprep.subr.bf16.mxu0 0
    %983 = vmatpush1.bf16.msra.mxu0 %v889
    %984 = vmatprep.subr.bf16.mxu0 0
    %985 = vmatpush1.bf16.msra.mxu0 %v890
    %986 = vmatprep.subr.bf16.mxu0 0
    %987 = vmatpush1.bf16.msra.mxu0 %v891
    %988 = vmatprep.subr.bf16.mxu0 0
    %989 = vmatpush1.bf16.msra.mxu0 %v892
    %990 = vmatprep.subr.bf16.mxu0 0
    %991 = vmatpush1.bf16.msra.mxu0 %v893
    %992 = vmatprep.subr.bf16.mxu0 0
    %993 = vmatpush1.bf16.msra.mxu0 %v894
    %994 = vmatprep.subr.bf16.mxu0 0
    %995 = vmatpush1.bf16.msra.mxu0 %v895
    %996 = vmatprep.subr.bf16.mxu0 0
    %997 = vmatpush1.bf16.msra.mxu0 %v896
    %998 = vmatprep.subr.bf16.mxu0 0
    %999 = vmatpush1.bf16.msra.mxu0 %v897
    %1000 = vmatprep.subr.bf16.mxu0 0
    %1001 = vmatpush1.bf16.msra.mxu0 %v898
    %1002 = vmatprep.subr.bf16.mxu0 0
    %1003 = vmatpush1.bf16.msra.mxu0 %v899
    %1004 = vmatprep.mubr.bf16.mxu0 %v668
    %1005 = vmatmul.mubr.bf16.gmra.mrb[0].mxu0 %v667
    %v1006 = vpop.f32.mrb[0].mxu0
    %v1007 = vadd.f32 %v967, %v1006
    %v1008 = vpop.f32.mrb[0].mxu0
    %v1009 = vpop.f32.mrb[0].mxu0
    %v1010 = vpop.f32.mrb[0].mxu0
    %1011 = vdwg.mxu0
    %1012 = vrot.lane.b32.xlu0 %v1007, 64
    %v1013 = vpop.permute.xlu0 %1012
    %v1014 = vmul.f32 %v1013, 0.5
    %v1015 = vmul.f32 %v1014, 1.442695
    %v1016 = vpow.pop %v1015
    %v1017 = vmul.f32 %v165, %v1016
    %v1018 = vadd.f32 %v1007, %v1017
    %v1019 = vpack.c.bf16 %v1018, %v1018
    %v1020 = vld [vmem:[#allocation13] sm:$0xff]
    %v1021 = vld [vmem:[#allocation13 + $0x8] sm:$0xff]
    %v1022 = vld [vmem:[#allocation13 + $0x10] sm:$0xff]
    %v1023 = vld [vmem:[#allocation13 + $0x18] sm:$0xff]
    %v1024 = vld [vmem:[#allocation13 + $0x20] sm:$0xff]
    %v1025 = vld [vmem:[#allocation13 + $0x28] sm:$0xff]
    %v1026 = vld [vmem:[#allocation13 + $0x30] sm:$0xff]
    %v1027 = vld [vmem:[#allocation13 + $0x38] sm:$0xff]
    %v1028 = vld [vmem:[#allocation13 + $0x40] sm:$0xff]
    %v1029 = vld [vmem:[#allocation13 + $0x48] sm:$0xff]
    %v1030 = vld [vmem:[#allocation13 + $0x50] sm:$0xff]
    %v1031 = vld [vmem:[#allocation13 + $0x58] sm:$0xff]
    %v1032 = vld [vmem:[#allocation13 + $0x60] sm:$0xff]
    %v1033 = vld [vmem:[#allocation13 + $0x68] sm:$0xff]
    %v1034 = vld [vmem:[#allocation13 + $0x70] sm:$0xff]
    %v1035 = vld [vmem:[#allocation13 + $0x78] sm:$0xff]
    %v1036 = vld [vmem:[#allocation13 + $0x80] sm:$0xff]
    %v1037 = vld [vmem:[#allocation13 + $0x88] sm:$0xff]
    %v1038 = vld [vmem:[#allocation13 + $0x90] sm:$0xff]
    %v1039 = vld [vmem:[#allocation13 + $0x98] sm:$0xff]
    %v1040 = vld [vmem:[#allocation13 + $0xa0] sm:$0xff]
    %v1041 = vld [vmem:[#allocation13 + $0xa8] sm:$0xff]
    %v1042 = vld [vmem:[#allocation13 + $0xb0] sm:$0xff]
    %v1043 = vld [vmem:[#allocation13 + $0xb8] sm:$0xff]
    %v1044 = vld [vmem:[#allocation13 + $0xc0] sm:$0xff]
    %v1045 = vld [vmem:[#allocation13 + $0xc8] sm:$0xff]
    %v1046 = vld [vmem:[#allocation13 + $0xd0] sm:$0xff]
    %v1047 = vld [vmem:[#allocation13 + $0xd8] sm:$0xff]
    %v1048 = vld [vmem:[#allocation13 + $0xe0] sm:$0xff]
    %v1049 = vld [vmem:[#allocation13 + $0xe8] sm:$0xff]
    %v1050 = vld [vmem:[#allocation13 + $0xf0] sm:$0xff]
    %v1051 = vld [vmem:[#allocation13 + $0xf8] sm:$0xff]
    %v1052 = vld [vmem:[#allocation14] sm:$0xf]
    %v1054 = vlaneseq
    %v1055 = vshrl.u32 %v1054, 7
    %v1056 = vsub.s32 0, %v1055
    %v1057 = vrot.slane %v1052, %v1056
    %v1058 = vlaneseq
    %v1059 = vshrl.u32 %v1058, 7
    %v1060 = vsub.s32 1, %v1059
    %v1061 = vrot.slane %v1052, %v1060
    %v1062 = vlaneseq
    %v1063 = vshrl.u32 %v1062, 7
    %v1064 = vsub.s32 2, %v1063
    %v1065 = vrot.slane %v1052, %v1064
    %v1066 = vlaneseq
    %v1067 = vshrl.u32 %v1066, 7
    %v1068 = vsub.s32 3, %v1067
    %v1069 = vrot.slane %v1052, %v1068
    %v1106 = vunpack.c.l.b16 %v1020
    %v1107 = vunpack.c.h.b16 %v1020
    %v1108 = vunpack.c.l.b16 %v1021
    %v1109 = vunpack.c.h.b16 %v1021
    %v1110 = vunpack.c.l.b16 %v1022
    %v1111 = vunpack.c.h.b16 %v1022
    %v1112 = vunpack.c.l.b16 %v1023
    %v1113 = vunpack.c.h.b16 %v1023
    %v1114 = vunpack.c.l.b16 %v1024
    %v1115 = vunpack.c.h.b16 %v1024
    %v1116 = vunpack.c.l.b16 %v1025
    %v1117 = vunpack.c.h.b16 %v1025
    %v1118 = vunpack.c.l.b16 %v1026
    %v1119 = vunpack.c.h.b16 %v1026
    %v1120 = vunpack.c.l.b16 %v1027
    %v1121 = vunpack.c.h.b16 %v1027
    %v1122 = vunpack.c.l.b16 %v1028
    %v1123 = vunpack.c.h.b16 %v1028
    %v1124 = vunpack.c.l.b16 %v1029
    %v1125 = vunpack.c.h.b16 %v1029
    %v1126 = vunpack.c.l.b16 %v1030
    %v1127 = vunpack.c.h.b16 %v1030
    %v1128 = vunpack.c.l.b16 %v1031
    %v1129 = vunpack.c.h.b16 %v1031
    %v1130 = vunpack.c.l.b16 %v1032
    %v1131 = vunpack.c.h.b16 %v1032
    %v1132 = vunpack.c.l.b16 %v1033
    %v1133 = vunpack.c.h.b16 %v1033
    %v1134 = vunpack.c.l.b16 %v1034
    %v1135 = vunpack.c.h.b16 %v1034
    %v1136 = vunpack.c.l.b16 %v1035
    %v1137 = vunpack.c.h.b16 %v1035
    %v1138 = vunpack.c.l.b16 %v1036
    %v1139 = vunpack.c.h.b16 %v1036
    %v1140 = vunpack.c.l.b16 %v1037
    %v1141 = vunpack.c.h.b16 %v1037
    %v1142 = vunpack.c.l.b16 %v1038
    %v1143 = vunpack.c.h.b16 %v1038
    %v1144 = vunpack.c.l.b16 %v1039
    %v1145 = vunpack.c.h.b16 %v1039
    %v1146 = vunpack.c.l.b16 %v1040
    %v1147 = vunpack.c.h.b16 %v1040
    %v1148 = vunpack.c.l.b16 %v1041
    %v1149 = vunpack.c.h.b16 %v1041
    %v1150 = vunpack.c.l.b16 %v1042
    %v1151 = vunpack.c.h.b16 %v1042
    %v1152 = vunpack.c.l.b16 %v1043
    %v1153 = vunpack.c.h.b16 %v1043
    %v1154 = vunpack.c.l.b16 %v1044
    %v1155 = vunpack.c.h.b16 %v1044
    %v1156 = vunpack.c.l.b16 %v1045
    %v1157 = vunpack.c.h.b16 %v1045
    %v1158 = vunpack.c.l.b16 %v1046
    %v1159 = vunpack.c.h.b16 %v1046
    %v1160 = vunpack.c.l.b16 %v1047
    %v1161 = vunpack.c.h.b16 %v1047
    %v1162 = vunpack.c.l.b16 %v1048
    %v1163 = vunpack.c.h.b16 %v1048
    %v1164 = vunpack.c.l.b16 %v1049
    %v1165 = vunpack.c.h.b16 %v1049
    %v1166 = vunpack.c.l.b16 %v1050
    %v1167 = vunpack.c.h.b16 %v1050
    %v1168 = vunpack.c.l.b16 %v1051
    %v1169 = vunpack.c.h.b16 %v1051
    %v1170 = vpack.c.b16 %v1110, %v1106
    %v1171 = vpack.c.b16 %v1111, %v1107
    %v1172 = vpack.c.b16 %v1112, %v1108
    %v1173 = vpack.c.b16 %v1113, %v1109
    %v1174 = vpack.c.b16 %v1118, %v1114
    %v1175 = vpack.c.b16 %v1119, %v1115
    %v1176 = vpack.c.b16 %v1120, %v1116
    %v1177 = vpack.c.b16 %v1121, %v1117
    %v1178 = vpack.c.b16 %v1126, %v1122
    %v1179 = vpack.c.b16 %v1127, %v1123
    %v1180 = vpack.c.b16 %v1128, %v1124
    %v1181 = vpack.c.b16 %v1129, %v1125
    %v1182 = vpack.c.b16 %v1134, %v1130
    %v1183 = vpack.c.b16 %v1135, %v1131
    %v1184 = vpack.c.b16 %v1136, %v1132
    %v1185 = vpack.c.b16 %v1137, %v1133
    %v1186 = vpack.c.b16 %v1142, %v1138
    %v1187 = vpack.c.b16 %v1143, %v1139
    %v1188 = vpack.c.b16 %v1144, %v1140
    %v1189 = vpack.c.b16 %v1145, %v1141
    %v1190 = vpack.c.b16 %v1150, %v1146
    %v1191 = vpack.c.b16 %v1151, %v1147
    %v1192 = vpack.c.b16 %v1152, %v1148
    %v1193 = vpack.c.b16 %v1153, %v1149
    %v1194 = vpack.c.b16 %v1158, %v1154
    %v1195 = vpack.c.b16 %v1159, %v1155
    %v1196 = vpack.c.b16 %v1160, %v1156
    %v1197 = vpack.c.b16 %v1161, %v1157
    %v1198 = vpack.c.b16 %v1166, %v1162
    %v1199 = vpack.c.b16 %v1167, %v1163
    %v1200 = vpack.c.b16 %v1168, %v1164
    %v1201 = vpack.c.b16 %v1169, %v1165
    %1234 = vmatprep.subr.bf16.mxu0 %v1171
    %1235 = vmatpush1.bf16.msra.mxu0 %v1170
    %1236 = vmatprep.subr.bf16.mxu0 %v1175
    %1237 = vmatpush1.bf16.msra.mxu0 %v1174
    %1238 = vmatprep.subr.bf16.mxu0 %v1179
    %1239 = vmatpush1.bf16.msra.mxu0 %v1178
    %1240 = vmatprep.subr.bf16.mxu0 %v1183
    %1241 = vmatpush1.bf16.msra.mxu0 %v1182
    %1242 = vmatprep.subr.bf16.mxu0 %v1187
    %1243 = vmatpush1.bf16.msra.mxu0 %v1186
    %1244 = vmatprep.subr.bf16.mxu0 %v1191
    %1245 = vmatpush1.bf16.msra.mxu0 %v1190
    %1246 = vmatprep.subr.bf16.mxu0 %v1195
    %1247 = vmatpush1.bf16.msra.mxu0 %v1194
    %1248 = vmatprep.subr.bf16.mxu0 %v1199
    %1249 = vmatpush1.bf16.msra.mxu0 %v1198
    %1250 = vmatprep.subr.bf16.mxu0 0
    %1251 = vmatpush1.bf16.msra.mxu0 0
    %1252 = vmatprep.subr.bf16.mxu0 0
    %1253 = vmatpush1.bf16.msra.mxu0 0
    %1254 = vmatprep.subr.bf16.mxu0 0
    %1255 = vmatpush1.bf16.msra.mxu0 0
    %1256 = vmatprep.subr.bf16.mxu0 0
    %1257 = vmatpush1.bf16.msra.mxu0 0
    %1258 = vmatprep.subr.bf16.mxu0 0
    %1259 = vmatpush1.bf16.msra.mxu0 0
    %1260 = vmatprep.subr.bf16.mxu0 0
    %1261 = vmatpush1.bf16.msra.mxu0 0
    %1262 = vmatprep.subr.bf16.mxu0 0
    %1263 = vmatpush1.bf16.msra.mxu0 0
    %1264 = vmatprep.subr.bf16.mxu0 0
    %1265 = vmatpush1.bf16.msra.mxu0 0
    %1266 = vmatprep.mubr.bf16.mxu0 0
    %1267 = vmatmul.mubr.bf16.gmra.mrb[0].mxu0 %v1019
    %v1268 = vpop.f32.mrb[0].mxu0
    %v1269 = vadd.f32 %v1057, %v1268
    %v1270 = vpop.f32.mrb[0].mxu0
    %v1271 = vadd.f32 %v1061, %v1270
    %v1272 = vpop.f32.mrb[0].mxu0
    %v1273 = vpop.f32.mrb[0].mxu0
    %1274 = vdwg.mxu0
    %1275 = vmatprep.subr.bf16.mxu0 %v1173
    %1276 = vmatpush1.bf16.msra.mxu0 %v1172
    %1277 = vmatprep.subr.bf16.mxu0 %v1177
    %1278 = vmatpush1.bf16.msra.mxu0 %v1176
    %1279 = vmatprep.subr.bf16.mxu0 %v1181
    %1280 = vmatpush1.bf16.msra.mxu0 %v1180
    %1281 = vmatprep.subr.bf16.mxu0 %v1185
    %1282 = vmatpush1.bf16.msra.mxu0 %v1184
    %1283 = vmatprep.subr.bf16.mxu0 %v1189
    %1284 = vmatpush1.bf16.msra.mxu0 %v1188
    %1285 = vmatprep.subr.bf16.mxu0 %v1193
    %1286 = vmatpush1.bf16.msra.mxu0 %v1192
    %1287 = vmatprep.subr.bf16.mxu0 %v1197
    %1288 = vmatpush1.bf16.msra.mxu0 %v1196
    %1289 = vmatprep.subr.bf16.mxu0 %v1201
    %1290 = vmatpush1.bf16.msra.mxu0 %v1200
    %1291 = vmatprep.subr.bf16.mxu0 0
    %1292 = vmatpush1.bf16.msra.mxu0 0
    %1293 = vmatprep.subr.bf16.mxu0 0
    %1294 = vmatpush1.bf16.msra.mxu0 0
    %1295 = vmatprep.subr.bf16.mxu0 0
    %1296 = vmatpush1.bf16.msra.mxu0 0
    %1297 = vmatprep.subr.bf16.mxu0 0
    %1298 = vmatpush1.bf16.msra.mxu0 0
    %1299 = vmatprep.subr.bf16.mxu0 0
    %1300 = vmatpush1.bf16.msra.mxu0 0
    %1301 = vmatprep.subr.bf16.mxu0 0
    %1302 = vmatpush1.bf16.msra.mxu0 0
    %1303 = vmatprep.subr.bf16.mxu0 0
    %1304 = vmatpush1.bf16.msra.mxu0 0
    %1305 = vmatprep.subr.bf16.mxu0 0
    %1306 = vmatpush1.bf16.msra.mxu0 0
    %1307 = vmatprep.mubr.bf16.mxu0 0
    %1308 = vmatmul.mubr.bf16.gmra.mrb[0].mxu0 %v1019
    %v1309 = vpop.f32.mrb[0].mxu0
    %v1310 = vadd.f32 %v1065, %v1309
    %v1311 = vpop.f32.mrb[0].mxu0
    %v1312 = vadd.f32 %v1069, %v1311
    %v1313 = vpop.f32.mrb[0].mxu0
    %v1314 = vpop.f32.mrb[0].mxu0
    %1315 = vdwg.mxu0
    %v1316 = vmax.f32 %v1269, 0.0
    %v1317 = vmax.f32 %v1271, 0.0
    %v1318 = vmax.f32 %v1310, 0.0
    %v1319 = vmax.f32 %v1312, 0.0
    %v1320 = vpack.c.bf16 %v1316, %v1316
    %v1321 = vpack.c.bf16 %v1317, %v1317
    %v1322 = vpack.c.bf16 %v1318, %v1318
    %v1323 = vpack.c.bf16 %v1319, %v1319
    %v1324 = vld [vmem:[#allocation16] sm:$0xff]
    %v1325 = vld [vmem:[#allocation16 + $0x8] sm:$0xff]
    %v1326 = vld [vmem:[#allocation16 + $0x10] sm:$0xff]
    %v1327 = vld [vmem:[#allocation16 + $0x18] sm:$0xff]
    %v1328 = vld [vmem:[#allocation16 + $0x20] sm:$0xff]
    %v1329 = vld [vmem:[#allocation16 + $0x28] sm:$0xff]
    %v1330 = vld [vmem:[#allocation16 + $0x30] sm:$0xff]
    %v1331 = vld [vmem:[#allocation16 + $0x38] sm:$0xff]
    %v1332 = vld [vmem:[#allocation16 + $0x40] sm:$0xff]
    %v1333 = vld [vmem:[#allocation16 + $0x48] sm:$0xff]
    %v1334 = vld [vmem:[#allocation16 + $0x50] sm:$0xff]
    %v1335 = vld [vmem:[#allocation16 + $0x58] sm:$0xff]
    %v1336 = vld [vmem:[#allocation16 + $0x60] sm:$0xff]
    %v1337 = vld [vmem:[#allocation16 + $0x68] sm:$0xff]
    %v1338 = vld [vmem:[#allocation16 + $0x70] sm:$0xff]
    %v1339 = vld [vmem:[#allocation16 + $0x78] sm:$0xff]
    %v1340 = vld [vmem:[#allocation16 + $0x80] sm:$0xff]
    %v1341 = vld [vmem:[#allocation16 + $0x88] sm:$0xff]
    %v1342 = vld [vmem:[#allocation16 + $0x90] sm:$0xff]
    %v1343 = vld [vmem:[#allocation16 + $0x98] sm:$0xff]
    %v1344 = vld [vmem:[#allocation16 + $0xa0] sm:$0xff]
    %v1345 = vld [vmem:[#allocation16 + $0xa8] sm:$0xff]
    %v1346 = vld [vmem:[#allocation16 + $0xb0] sm:$0xff]
    %v1347 = vld [vmem:[#allocation16 + $0xb8] sm:$0xff]
    %v1348 = vld [vmem:[#allocation16 + $0xc0] sm:$0xff]
    %v1349 = vld [vmem:[#allocation16 + $0xc8] sm:$0xff]
    %v1350 = vld [vmem:[#allocation16 + $0xd0] sm:$0xff]
    %v1351 = vld [vmem:[#allocation16 + $0xd8] sm:$0xff]
    %v1352 = vld [vmem:[#allocation16 + $0xe0] sm:$0xff]
    %v1353 = vld [vmem:[#allocation16 + $0xe8] sm:$0xff]
    %v1354 = vld [vmem:[#allocation16 + $0xf0] sm:$0xff]
    %v1355 = vld [vmem:[#allocation16 + $0xf8] sm:$0xff]
    %v1356 = vld [vmem:[#allocation16 + $0x100] sm:$0xff]
    %v1357 = vld [vmem:[#allocation16 + $0x108] sm:$0xff]
    %v1358 = vld [vmem:[#allocation16 + $0x110] sm:$0xff]
    %v1359 = vld [vmem:[#allocation16 + $0x118] sm:$0xff]
    %v1360 = vld [vmem:[#allocation16 + $0x120] sm:$0xff]
    %v1361 = vld [vmem:[#allocation16 + $0x128] sm:$0xff]
    %v1362 = vld [vmem:[#allocation16 + $0x130] sm:$0xff]
    %v1363 = vld [vmem:[#allocation16 + $0x138] sm:$0xff]
    %v1364 = vld [vmem:[#allocation16 + $0x140] sm:$0xff]
    %v1365 = vld [vmem:[#allocation16 + $0x148] sm:$0xff]
    %v1366 = vld [vmem:[#allocation16 + $0x150] sm:$0xff]
    %v1367 = vld [vmem:[#allocation16 + $0x158] sm:$0xff]
    %v1368 = vld [vmem:[#allocation16 + $0x160] sm:$0xff]
    %v1369 = vld [vmem:[#allocation16 + $0x168] sm:$0xff]
    %v1370 = vld [vmem:[#allocation16 + $0x170] sm:$0xff]
    %v1371 = vld [vmem:[#allocation16 + $0x178] sm:$0xff]
    %v1372 = vld [vmem:[#allocation16 + $0x180] sm:$0xff]
    %v1373 = vld [vmem:[#allocation16 + $0x188] sm:$0xff]
    %v1374 = vld [vmem:[#allocation16 + $0x190] sm:$0xff]
    %v1375 = vld [vmem:[#allocation16 + $0x198] sm:$0xff]
    %v1376 = vld [vmem:[#allocation16 + $0x1a0] sm:$0xff]
    %v1377 = vld [vmem:[#allocation16 + $0x1a8] sm:$0xff]
    %v1378 = vld [vmem:[#allocation16 + $0x1b0] sm:$0xff]
    %v1379 = vld [vmem:[#allocation16 + $0x1b8] sm:$0xff]
    %v1380 = vld [vmem:[#allocation16 + $0x1c0] sm:$0xff]
    %v1381 = vld [vmem:[#allocation16 + $0x1c8] sm:$0xff]
    %v1382 = vld [vmem:[#allocation16 + $0x1d0] sm:$0xff]
    %v1383 = vld [vmem:[#allocation16 + $0x1d8] sm:$0xff]
    %v1384 = vld [vmem:[#allocation16 + $0x1e0] sm:$0xff]
    %v1385 = vld [vmem:[#allocation16 + $0x1e8] sm:$0xff]
    %v1386 = vld [vmem:[#allocation16 + $0x1f0] sm:$0xff]
    %v1387 = vld [vmem:[#allocation16 + $0x1f8] sm:$0xff]
    %v1388 = vld [vmem:[#allocation17] sm:$0x3]
    %v1390 = vlaneseq
    %v1391 = vshrl.u32 %v1390, 7
    %v1392 = vsub.s32 0, %v1391
    %v1393 = vrot.slane %v1388, %v1392
    %v1394 = vlaneseq
    %v1395 = vshrl.u32 %v1394, 7
    %v1396 = vsub.s32 1, %v1395
    %v1397 = vrot.slane %v1388, %v1396
    %v1464 = vunpack.c.l.b16 %v1324
    %v1465 = vunpack.c.h.b16 %v1324
    %v1466 = vunpack.c.l.b16 %v1325
    %v1467 = vunpack.c.h.b16 %v1325
    %v1468 = vunpack.c.l.b16 %v1326
    %v1469 = vunpack.c.h.b16 %v1326
    %v1470 = vunpack.c.l.b16 %v1327
    %v1471 = vunpack.c.h.b16 %v1327
    %v1472 = vunpack.c.l.b16 %v1328
    %v1473 = vunpack.c.h.b16 %v1328
    %v1474 = vunpack.c.l.b16 %v1329
    %v1475 = vunpack.c.h.b16 %v1329
    %v1476 = vunpack.c.l.b16 %v1330
    %v1477 = vunpack.c.h.b16 %v1330
    %v1478 = vunpack.c.l.b16 %v1331
    %v1479 = vunpack.c.h.b16 %v1331
    %v1480 = vunpack.c.l.b16 %v1332
    %v1481 = vunpack.c.h.b16 %v1332
    %v1482 = vunpack.c.l.b16 %v1333
    %v1483 = vunpack.c.h.b16 %v1333
    %v1484 = vunpack.c.l.b16 %v1334
    %v1485 = vunpack.c.h.b16 %v1334
    %v1486 = vunpack.c.l.b16 %v1335
    %v1487 = vunpack.c.h.b16 %v1335
    %v1488 = vunpack.c.l.b16 %v1336
    %v1489 = vunpack.c.h.b16 %v1336
    %v1490 = vunpack.c.l.b16 %v1337
    %v1491 = vunpack.c.h.b16 %v1337
    %v1492 = vunpack.c.l.b16 %v1338
    %v1493 = vunpack.c.h.b16 %v1338
    %v1494 = vunpack.c.l.b16 %v1339
    %v1495 = vunpack.c.h.b16 %v1339
    %v1496 = vunpack.c.l.b16 %v1340
    %v1497 = vunpack.c.h.b16 %v1340
    %v1498 = vunpack.c.l.b16 %v1341
    %v1499 = vunpack.c.h.b16 %v1341
    %v1500 = vunpack.c.l.b16 %v1342
    %v1501 = vunpack.c.h.b16 %v1342
    %v1502 = vunpack.c.l.b16 %v1343
    %v1503 = vunpack.c.h.b16 %v1343
    %v1504 = vunpack.c.l.b16 %v1344
    %v1505 = vunpack.c.h.b16 %v1344
    %v1506 = vunpack.c.l.b16 %v1345
    %v1507 = vunpack.c.h.b16 %v1345
    %v1508 = vunpack.c.l.b16 %v1346
    %v1509 = vunpack.c.h.b16 %v1346
    %v1510 = vunpack.c.l.b16 %v1347
    %v1511 = vunpack.c.h.b16 %v1347
    %v1512 = vunpack.c.l.b16 %v1348
    %v1513 = vunpack.c.h.b16 %v1348
    %v1514 = vunpack.c.l.b16 %v1349
    %v1515 = vunpack.c.h.b16 %v1349
    %v1516 = vunpack.c.l.b16 %v1350
    %v1517 = vunpack.c.h.b16 %v1350
    %v1518 = vunpack.c.l.b16 %v1351
    %v1519 = vunpack.c.h.b16 %v1351
    %v1520 = vunpack.c.l.b16 %v1352
    %v1521 = vunpack.c.h.b16 %v1352
    %v1522 = vunpack.c.l.b16 %v1353
    %v1523 = vunpack.c.h.b16 %v1353
    %v1524 = vunpack.c.l.b16 %v1354
    %v1525 = vunpack.c.h.b16 %v1354
    %v1526 = vunpack.c.l.b16 %v1355
    %v1527 = vunpack.c.h.b16 %v1355
    %v1528 = vunpack.c.l.b16 %v1356
    %v1529 = vunpack.c.h.b16 %v1356
    %v1530 = vunpack.c.l.b16 %v1357
    %v1531 = vunpack.c.h.b16 %v1357
    %v1532 = vunpack.c.l.b16 %v1358
    %v1533 = vunpack.c.h.b16 %v1358
    %v1534 = vunpack.c.l.b16 %v1359
    %v1535 = vunpack.c.h.b16 %v1359
    %v1536 = vunpack.c.l.b16 %v1360
    %v1537 = vunpack.c.h.b16 %v1360
    %v1538 = vunpack.c.l.b16 %v1361
    %v1539 = vunpack.c.h.b16 %v1361
    %v1540 = vunpack.c.l.b16 %v1362
    %v1541 = vunpack.c.h.b16 %v1362
    %v1542 = vunpack.c.l.b16 %v1363
    %v1543 = vunpack.c.h.b16 %v1363
    %v1544 = vunpack.c.l.b16 %v1364
    %v1545 = vunpack.c.h.b16 %v1364
    %v1546 = vunpack.c.l.b16 %v1365
    %v1547 = vunpack.c.h.b16 %v1365
    %v1548 = vunpack.c.l.b16 %v1366
    %v1549 = vunpack.c.h.b16 %v1366
    %v1550 = vunpack.c.l.b16 %v1367
    %v1551 = vunpack.c.h.b16 %v1367
    %v1552 = vunpack.c.l.b16 %v1368
    %v1553 = vunpack.c.h.b16 %v1368
    %v1554 = vunpack.c.l.b16 %v1369
    %v1555 = vunpack.c.h.b16 %v1369
    %v1556 = vunpack.c.l.b16 %v1370
    %v1557 = vunpack.c.h.b16 %v1370
    %v1558 = vunpack.c.l.b16 %v1371
    %v1559 = vunpack.c.h.b16 %v1371
    %v1560 = vunpack.c.l.b16 %v1372
    %v1561 = vunpack.c.h.b16 %v1372
    %v1562 = vunpack.c.l.b16 %v1373
    %v1563 = vunpack.c.h.b16 %v1373
    %v1564 = vunpack.c.l.b16 %v1374
    %v1565 = vunpack.c.h.b16 %v1374
    %v1566 = vunpack.c.l.b16 %v1375
    %v1567 = vunpack.c.h.b16 %v1375
    %v1568 = vunpack.c.l.b16 %v1376
    %v1569 = vunpack.c.h.b16 %v1376
    %v1570 = vunpack.c.l.b16 %v1377
    %v1571 = vunpack.c.h.b16 %v1377
    %v1572 = vunpack.c.l.b16 %v1378
    %v1573 = vunpack.c.h.b16 %v1378
    %v1574 = vunpack.c.l.b16 %v1379
    %v1575 = vunpack.c.h.b16 %v1379
    %v1576 = vunpack.c.l.b16 %v1380
    %v1577 = vunpack.c.h.b16 %v1380
    %v1578 = vunpack.c.l.b16 %v1381
    %v1579 = vunpack.c.h.b16 %v1381
    %v1580 = vunpack.c.l.b16 %v1382
    %v1581 = vunpack.c.h.b16 %v1382
    %v1582 = vunpack.c.l.b16 %v1383
    %v1583 = vunpack.c.h.b16 %v1383
    %v1584 = vunpack.c.l.b16 %v1384
    %v1585 = vunpack.c.h.b16 %v1384
    %v1586 = vunpack.c.l.b16 %v1385
    %v1587 = vunpack.c.h.b16 %v1385
    %v1588 = vunpack.c.l.b16 %v1386
    %v1589 = vunpack.c.h.b16 %v1386
    %v1590 = vunpack.c.l.b16 %v1387
    %v1591 = vunpack.c.h.b16 %v1387
    %v1592 = vpack.c.b16 %v1466, %v1464
    %v1593 = vpack.c.b16 %v1467, %v1465
    %v1594 = vpack.c.b16 %v1470, %v1468
    %v1595 = vpack.c.b16 %v1471, %v1469
    %v1596 = vpack.c.b16 %v1474, %v1472
    %v1597 = vpack.c.b16 %v1475, %v1473
    %v1598 = vpack.c.b16 %v1478, %v1476
    %v1599 = vpack.c.b16 %v1479, %v1477
    %v1600 = vpack.c.b16 %v1482, %v1480
    %v1601 = vpack.c.b16 %v1483, %v1481
    %v1602 = vpack.c.b16 %v1486, %v1484
    %v1603 = vpack.c.b16 %v1487, %v1485
    %v1604 = vpack.c.b16 %v1490, %v1488
    %v1605 = vpack.c.b16 %v1491, %v1489
    %v1606 = vpack.c.b16 %v1494, %v1492
    %v1607 = vpack.c.b16 %v1495, %v1493
    %v1608 = vpack.c.b16 %v1498, %v1496
    %v1609 = vpack.c.b16 %v1499, %v1497
    %v1610 = vpack.c.b16 %v1502, %v1500
    %v1611 = vpack.c.b16 %v1503, %v1501
    %v1612 = vpack.c.b16 %v1506, %v1504
    %v1613 = vpack.c.b16 %v1507, %v1505
    %v1614 = vpack.c.b16 %v1510, %v1508
    %v1615 = vpack.c.b16 %v1511, %v1509
    %v1616 = vpack.c.b16 %v1514, %v1512
    %v1617 = vpack.c.b16 %v1515, %v1513
    %v1618 = vpack.c.b16 %v1518, %v1516
    %v1619 = vpack.c.b16 %v1519, %v1517
    %v1620 = vpack.c.b16 %v1522, %v1520
    %v1621 = vpack.c.b16 %v1523, %v1521
    %v1622 = vpack.c.b16 %v1526, %v1524
    %v1623 = vpack.c.b16 %v1527, %v1525
    %v1624 = vpack.c.b16 %v1530, %v1528
    %v1625 = vpack.c.b16 %v1531, %v1529
    %v1626 = vpack.c.b16 %v1534, %v1532
    %v1627 = vpack.c.b16 %v1535, %v1533
    %v1628 = vpack.c.b16 %v1538, %v1536
    %v1629 = vpack.c.b16 %v1539, %v1537
    %v1630 = vpack.c.b16 %v1542, %v1540
    %v1631 = vpack.c.b16 %v1543, %v1541
    %v1632 = vpack.c.b16 %v1546, %v1544
    %v1633 = vpack.c.b16 %v1547, %v1545
    %v1634 = vpack.c.b16 %v1550, %v1548
    %v1635 = vpack.c.b16 %v1551, %v1549
    %v1636 = vpack.c.b16 %v1554, %v1552
    %v1637 = vpack.c.b16 %v1555, %v1553
    %v1638 = vpack.c.b16 %v1558, %v1556
    %v1639 = vpack.c.b16 %v1559, %v1557
    %v1640 = vpack.c.b16 %v1562, %v1560
    %v1641 = vpack.c.b16 %v1563, %v1561
    %v1642 = vpack.c.b16 %v1566, %v1564
    %v1643 = vpack.c.b16 %v1567, %v1565
    %v1644 = vpack.c.b16 %v1570, %v1568
    %v1645 = vpack.c.b16 %v1571, %v1569
    %v1646 = vpack.c.b16 %v1574, %v1572
    %v1647 = vpack.c.b16 %v1575, %v1573
    %v1648 = vpack.c.b16 %v1578, %v1576
    %v1649 = vpack.c.b16 %v1579, %v1577
    %v1650 = vpack.c.b16 %v1582, %v1580
    %v1651 = vpack.c.b16 %v1583, %v1581
    %v1652 = vpack.c.b16 %v1586, %v1584
    %v1653 = vpack.c.b16 %v1587, %v1585
    %v1654 = vpack.c.b16 %v1590, %v1588
    %v1655 = vpack.c.b16 %v1591, %v1589
    %1720 = vmatprep.subr.bf16.mxu0 %v1593
    %1721 = vmatpush1.bf16.msra.mxu0 %v1592
    %1722 = vmatprep.subr.bf16.mxu0 %v1595
    %1723 = vmatpush1.bf16.msra.mxu0 %v1594
    %1724 = vmatprep.subr.bf16.mxu0 %v1597
    %1725 = vmatpush1.bf16.msra.mxu0 %v1596
    %1726 = vmatprep.subr.bf16.mxu0 %v1599
    %1727 = vmatpush1.bf16.msra.mxu0 %v1598
    %1728 = vmatprep.subr.bf16.mxu0 %v1601
    %1729 = vmatpush1.bf16.msra.mxu0 %v1600
    %1730 = vmatprep.subr.bf16.mxu0 %v1603
    %1731 = vmatpush1.bf16.msra.mxu0 %v1602
    %1732 = vmatprep.subr.bf16.mxu0 %v1605
    %1733 = vmatpush1.bf16.msra.mxu0 %v1604
    %1734 = vmatprep.subr.bf16.mxu0 %v1607
    %1735 = vmatpush1.bf16.msra.mxu0 %v1606
    %1736 = vmatprep.subr.bf16.mxu0 %v1609
    %1737 = vmatpush1.bf16.msra.mxu0 %v1608
    %1738 = vmatprep.subr.bf16.mxu0 %v1611
    %1739 = vmatpush1.bf16.msra.mxu0 %v1610
    %1740 = vmatprep.subr.bf16.mxu0 %v1613
    %1741 = vmatpush1.bf16.msra.mxu0 %v1612
    %1742 = vmatprep.subr.bf16.mxu0 %v1615
    %1743 = vmatpush1.bf16.msra.mxu0 %v1614
    %1744 = vmatprep.subr.bf16.mxu0 %v1617
    %1745 = vmatpush1.bf16.msra.mxu0 %v1616
    %1746 = vmatprep.subr.bf16.mxu0 %v1619
    %1747 = vmatpush1.bf16.msra.mxu0 %v1618
    %1748 = vmatprep.subr.bf16.mxu0 %v1621
    %1749 = vmatpush1.bf16.msra.mxu0 %v1620
    %1750 = vmatprep.subr.bf16.mxu0 %v1623
    %1751 = vmatpush1.bf16.msra.mxu0 %v1622
    %1752 = vmatprep.mubr.bf16.mxu0 %v1321
    %1753 = vmatmul.mubr.bf16.gmra.mrb[0].mxu0 %v1320
    %v1754 = vpop.f32.mrb[0].mxu0
    %v1755 = vadd.f32 %v1393, %v1754
    %v1756 = vpop.f32.mrb[0].mxu0
    %v1757 = vadd.f32 %v1397, %v1756
    %v1758 = vpop.f32.mrb[0].mxu0
    %v1759 = vpop.f32.mrb[0].mxu0
    %1760 = vdwg.mxu0
    %1761 = vmatprep.subr.bf16.mxu0 %v1625
    %1762 = vmatpush1.bf16.msra.mxu0 %v1624
    %1763 = vmatprep.subr.bf16.mxu0 %v1627
    %1764 = vmatpush1.bf16.msra.mxu0 %v1626
    %1765 = vmatprep.subr.bf16.mxu0 %v1629
    %1766 = vmatpush1.bf16.msra.mxu0 %v1628
    %1767 = vmatprep.subr.bf16.mxu0 %v1631
    %1768 = vmatpush1.bf16.msra.mxu0 %v1630
    %1769 = vmatprep.subr.bf16.mxu0 %v1633
    %1770 = vmatpush1.bf16.msra.mxu0 %v1632
    %1771 = vmatprep.subr.bf16.mxu0 %v1635
    %1772 = vmatpush1.bf16.msra.mxu0 %v1634
    %1773 = vmatprep.subr.bf16.mxu0 %v1637
    %1774 = vmatpush1.bf16.msra.mxu0 %v1636
    %1775 = vmatprep.subr.bf16.mxu0 %v1639
    %1776 = vmatpush1.bf16.msra.mxu0 %v1638
    %1777 = vmatprep.subr.bf16.mxu0 %v1641
    %1778 = vmatpush1.bf16.msra.mxu0 %v1640
    %1779 = vmatprep.subr.bf16.mxu0 %v1643
    %1780 = vmatpush1.bf16.msra.mxu0 %v1642
    %1781 = vmatprep.subr.bf16.mxu0 %v1645
    %1782 = vmatpush1.bf16.msra.mxu0 %v1644
    %1783 = vmatprep.subr.bf16.mxu0 %v1647
    %1784 = vmatpush1.bf16.msra.mxu0 %v1646
    %1785 = vmatprep.subr.bf16.mxu0 %v1649
    %1786 = vmatpush1.bf16.msra.mxu0 %v1648
    %1787 = vmatprep.subr.bf16.mxu0 %v1651
    %1788 = vmatpush1.bf16.msra.mxu0 %v1650
    %1789 = vmatprep.subr.bf16.mxu0 %v1653
    %1790 = vmatpush1.bf16.msra.mxu0 %v1652
    %1791 = vmatprep.subr.bf16.mxu0 %v1655
    %1792 = vmatpush1.bf16.msra.mxu0 %v1654
    %1793 = vmatprep.mubr.bf16.mxu0 %v1323
    %1794 = vmatmul.mubr.bf16.gmra.mrb[0].mxu0 %v1322
    %v1795 = vpop.f32.mrb[0].mxu0
    %v1796 = vadd.f32 %v1755, %v1795
    %v1797 = vpop.f32.mrb[0].mxu0
    %v1798 = vadd.f32 %v1757, %v1797
    %v1799 = vpop.f32.mrb[0].mxu0
    %v1800 = vpop.f32.mrb[0].mxu0
    %1801 = vdwg.mxu0
    %v1802 = vmul.f32 %v1796, 0.5
    %v1803 = vmul.f32 %v1798, 0.5
    %v1804 = vtanh.pop %v1802
    %v1805 = vtanh.pop %v1803
    %v1806 = vadd.f32 %v1804, 1.0
    %v1807 = vadd.f32 %v1805, 1.0
    %v1808 = vmul.f32 %v1806, 0.5
    %v1809 = vmul.f32 %v1807, 0.5
    %1810 = vst [vmem:[#allocation19] sm:$0xff] %v1808
    %1811 = vst [vmem:[#allocation19 + $0x8] sm:$0xff] %v1809
    %1812 = vst [vmem:[#allocation20] sm:$0xff] %v1007
    // Predicated region
    $region82: #{vae_forward.1} parent=1 // pred_check
      _
    $region83: #{vae_forward.1} parent=1 // pred_check_branch
      %1814 = sbr.rel (0) target = $region85
    $region84: #{vae_forward.1} parent=1 // pred_region
      %s1816 = ssub.s32 256, 256
      %1817 = vsyncadd [#allocation4], %s1816
      %s1819 = sshll.u32 [#allocation19], 4
      %s1820 = int_to_ptr.vmem [resolvable:$true] %s1819
      %1822 = dma.vmem_to_hbm [thread:$0]  %s1820, 256, %s10, [#allocation4]
    $region85: #{vae_forward.1} parent=1 // pred_fallthru
      _
    // Predicated region
    $region86: #{vae_forward.1} parent=1 // pred_check
      _
    $region87: #{vae_forward.1} parent=1 // pred_check_branch
      %1824 = sbr.rel (0) target = $region89
    $region88: #{vae_forward.1} parent=1 // pred_region
      %s1826 = ssub.s32 128, 128
      %1827 = vsyncadd [#allocation21], %s1826
      %s1829 = sshll.u32 [#allocation20], 4
      %s1830 = int_to_ptr.vmem [resolvable:$true] %s1829
      %1832 = dma.vmem_to_hbm [thread:$0]  %s1830, 128, %s11, [#allocation21]
    $region89: #{vae_forward.1} parent=1 // pred_fallthru
      _
    // Predicated region
    $region90: #{vae_forward.1} parent=1 // pred_check
      _
    $region91: #{vae_forward.1} parent=1 // pred_check_branch
      %1834 = sbr.rel (0) target = $region93
    $region92: #{vae_forward.1} parent=1 // pred_region
      %1835 = dma.done [#allocation4], 256
    $region93: #{vae_forward.1} parent=1 // pred_fallthru
      _
    // Predicated region
    $region94: #{vae_forward.1} parent=1 // pred_check
      _
    $region95: #{vae_forward.1} parent=1 // pred_check_branch
      %1837 = sbr.rel (0) target = $region97
    $region96: #{vae_forward.1} parent=1 // pred_region
      %1838 = dma.done [#allocation21], 128
    $region97: #{vae_forward.1} parent=1 // pred_fallthru
      _
    %1839 = vsyncpa [#allocation3], 1
    %1840 = vsyncpa [#allocation6], 1
    %1841 = vsyncpa [#allocation9], 1
    %1842 = vsyncpa [#allocation12], 1
    %1843 = vsyncpa [#allocation15], 1
    %1844 = vsyncpa [#allocation18], 1
    %1845 = vsyncpa [#allocation4], 1
    %1846 = vsyncpa [#allocation21], 1

// kernel: vae_forward.1
$region0: #{vae_forward.1}
  #allocation0 [shape = 'u32[]', space=smem, size = 0x4, offset = 0x4, fixed_abs, tag = 'smem constant byte address 0x4 - core index']
  #allocation1 [shape = 'u32[144,128]{1,0:T(1,128)}', space=vmem, size = 0x12000, scoped, tag = 'internal scratch']
  %s0 = inlined_call_operand.hbm [shape: bf16[8,256], index: 0, kind: input, shape index: {}]
  %s1 = inlined_call_operand.hbm [shape: f32[8,128], index: 1, kind: input, shape index: {}]
  %s2 = inlined_call_operand.hbm [shape: bf16[256,512], index: 2, kind: input, shape index: {}]
  %s3 = inlined_call_operand.hbm [shape: f32[1,512], index: 3, kind: input, shape index: {}]
  %s4 = inlined_call_operand.hbm [shape: bf16[512,128], index: 4, kind: input, shape index: {}]
  %s5 = inlined_call_operand.hbm [shape: f32[1,128], index: 5, kind: input, shape index: {}]
  %s6 = inlined_call_operand.hbm [shape: bf16[128,512], index: 6, kind: input, shape index: {}]
  %s7 = inlined_call_operand.hbm [shape: f32[1,512], index: 7, kind: input, shape index: {}]
  %s8 = inlined_call_operand.hbm [shape: bf16[512,256], index: 8, kind: input, shape index: {}]
  %s9 = inlined_call_operand.hbm [shape: f32[1,256], index: 9, kind: input, shape index: {}]
  %s10 = inlined_call_operand.hbm [shape: f32[8,256], index: 10, kind: output, shape index: {0}]
  %s11 = inlined_call_operand.hbm [shape: f32[8,128], index: 11, kind: output, shape index: {1}]
  %12 = xla_tuple %s10, %s11
  %s13 = sld [smem:[#allocation0]]
  $region98: #{vae_forward.1} parent=0
    _
  %s15 = ssub.s32 1, %s13
  %s16 = scalar_select 0, %s15, %s13
  $region1: #{vae_forward.1} parent=0
    #allocation2 [shape = 'u8[4096]{0}', space=vmem, size = 0x1000, scoped, tag = 'input window, operand 0, single buffered']
    #allocation3 [shape = 's32[1]{0}', space=sflag, size = 0x4, scoped, tag = 'scoped memory for vae_forward.1']
    #allocation4 [shape = 's32[1]{0}', space=sflag, size = 0x4, scoped, tag = 'scoped memory for vae_forward.1']
    #allocation5 [shape = 'u8[4096]{0}', space=vmem, size = 0x1000, scoped, tag = 'input window, operand 1, single buffered']
    #allocation6 [shape = 's32[1]{0}', space=sflag, size = 0x4, scoped, tag = 'scoped memory for vae_forward.1']
    #allocation7 [shape = 'u8[262144]{0}', space=vmem, size = 0x40000, scoped, tag = 'input window, operand 2, single buffered']
    #allocation8 [shape = 'u8[2048]{0}', space=vmem, size = 0x800, scoped, tag = 'input window, operand 3, single buffered']
    #allocation9 [shape = 's32[1]{0}', space=sflag, size = 0x4, scoped, tag = 'scoped memory for vae_forward.1']
    #allocation10 [shape = 'u8[131072]{0}', space=vmem, size = 0x20000, scoped, tag = 'input window, operand 4, single buffered']
    #allocation11 [shape = 'u8[512]{0}', space=vmem, size = 0x400, scoped, tag = 'input window, operand 5, single buffered']
    #allocation12 [shape = 's32[1]{0}', space=sflag, size = 0x4, scoped, tag = 'scoped memory for vae_forward.1']
    #allocation13 [shape = 'u8[131072]{0}', space=vmem, size = 0x20000, scoped, tag = 'input window, operand 6, single buffered']
    #allocation14 [shape = 'u8[2048]{0}', space=vmem, size = 0x800, scoped, tag = 'input window, operand 7, single buffered']
    #allocation15 [shape = 's32[1]{0}', space=sflag, size = 0x4, scoped, tag = 'scoped memory for vae_forward.1']
    #allocation16 [shape = 'u8[262144]{0}', space=vmem, size = 0x40000, scoped, tag = 'input window, operand 8, single buffered']
    #allocation17 [shape = 'u8[1024]{0}', space=vmem, size = 0x400, scoped, tag = 'input window, operand 9, single buffered']
    #allocation18 [shape = 's32[1]{0}', space=sflag, size = 0x4, scoped, tag = 'scoped memory for vae_forward.1']
    #allocation19 [shape = 'u8[8192]{0}', space=vmem, size = 0x2000, scoped, tag = 'output window, operand 0, single buffered']
    #allocation20 [shape = 'u8[4096]{0}', space=vmem, size = 0x1000, scoped, tag = 'output window, operand 1, single buffered']
    #allocation21 [shape = 's32[1]{0}', space=sflag, size = 0x4, scoped, tag = 'scoped memory for vae_forward.1']
    %17 = vsyncpa [#allocation3], 0
    %18 = vsyncpa [#allocation6], 0
    %19 = vsyncpa [#allocation9], 0
    %20 = vsyncpa [#allocation12], 0
    %21 = vsyncpa [#allocation15], 0
    %22 = vsyncpa [#allocation18], 0
    %23 = vsyncpa [#allocation4], 0
    %24 = vsyncpa [#allocation21], 0
    // Predicated region
    $region2: #{vae_forward.1} parent=1 // pred_check
      _
    $region3: #{vae_forward.1} parent=1 // pred_check_branch
      %26 = sbr.rel (0) target = $region5
    $region4: #{vae_forward.1} parent=1 // pred_region
      %s28 = ssub.s32 128, 128
      %29 = vsyncadd [#allocation3], %s28
      %s31 = sshll.u32 [#allocation2], 4
      %s32 = int_to_ptr.vmem [resolvable:$true] %s31
      %34 = dma.hbm_to_vmem [thread:$0]  %s0, 128, %s32, [#allocation3]
    $region5: #{vae_forward.1} parent=1 // pred_fallthru
      _
    // Predicated region
    $region6: #{vae_forward.1} parent=1 // pred_check
      _
    $region7: #{vae_forward.1} parent=1 // pred_check_branch
      %36 = sbr.rel (0) target = $region9
    $region8: #{vae_forward.1} parent=1 // pred_region
      %s38 = ssub.s32 128, 128
      %39 = vsyncadd [#allocation6], %s38
      %s41 = sshll.u32 [#allocation5], 4
      %s42 = int_to_ptr.vmem [resolvable:$true] %s41
      %44 = dma.hbm_to_vmem [thread:$0]  %s1, 128, %s42, [#allocation6]
    $region9: #{vae_forward.1} parent=1 // pred_fallthru
      _
    // Predicated region
    $region10: #{vae_forward.1} parent=1 // pred_check
      _
    $region11: #{vae_forward.1} parent=1 // pred_check_branch
      %46 = sbr.rel (0) target = $region13
    $region12: #{vae_forward.1} parent=1 // pred_region
      %s48 = ssub.s32 8192, 8192
      %49 = vsyncadd [#allocation6], %s48
      %s50 = sshll.u32 [#allocation7], 4
      %s51 = int_to_ptr.vmem [resolvable:$true] %s50
      %56 = dma.hbm_to_vmem [thread:$0]  %s2, 8192, %s51, [#allocation6], 256, 256, 16
    $region13: #{vae_forward.1} parent=1 // pred_fallthru
      _
    // Predicated region
    $region14: #{vae_forward.1} parent=1 // pred_check
      _
    $region15: #{vae_forward.1} parent=1 // pred_check_branch
      %58 = sbr.rel (0) target = $region17
    $region16: #{vae_forward.1} parent=1 // pred_region
      %s60 = ssub.s32 64, 64
      %61 = vsyncadd [#allocation9], %s60
      %s63 = sshll.u32 [#allocation8], 4
      %s64 = int_to_ptr.vmem [resolvable:$true] %s63
      %66 = dma.hbm_to_vmem [thread:$0]  %s3, 64, %s64, [#allocation9]
    $region17: #{vae_forward.1} parent=1 // pred_fallthru
      _
    // Predicated region
    $region18: #{vae_forward.1} parent=1 // pred_check
      _
    $region19: #{vae_forward.1} parent=1 // pred_check_branch
      %68 = sbr.rel (0) target = $region21
    $region20: #{vae_forward.1} parent=1 // pred_region
      %s70 = ssub.s32 4096, 4096
      %71 = vsyncadd [#allocation9], %s70
      %s72 = sshll.u32 [#allocation10], 4
      %s73 = int_to_ptr.vmem [resolvable:$true] %s72
      %78 = dma.hbm_to_vmem [thread:$0]  %s4, 4096, %s73, [#allocation9], 64, 64, 4
    $region21: #{vae_forward.1} parent=1 // pred_fallthru
      _
    // Predicated region
    $region22: #{vae_forward.1} parent=1 // pred_check
      _
    $region23: #{vae_forward.1} parent=1 // pred_check_branch
      %80 = sbr.rel (0) target = $region25
    $region24: #{vae_forward.1} parent=1 // pred_region
      %s82 = ssub.s32 16, 16
      %83 = vsyncadd [#allocation12], %s82
      %s85 = sshll.u32 [#allocation11], 4
      %s86 = int_to_ptr.vmem [resolvable:$true] %s85
      %88 = dma.hbm_to_vmem [thread:$0]  %s5, 16, %s86, [#allocation12]
    $region25: #{vae_forward.1} parent=1 // pred_fallthru
      _
    // Predicated region
    $region26: #{vae_forward.1} parent=1 // pred_check
      _
    $region27: #{vae_forward.1} parent=1 // pred_check_branch
      %90 = sbr.rel (0) target = $region29
    $region28: #{vae_forward.1} parent=1 // pred_region
      %s92 = ssub.s32 4096, 4096
      %93 = vsyncadd [#allocation12], %s92
      %s94 = sshll.u32 [#allocation13], 4
      %s95 = int_to_ptr.vmem [resolvable:$true] %s94
      %100 = dma.hbm_to_vmem [thread:$0]  %s6, 4096, %s95, [#allocation12], 256, 256, 16
    $region29: #{vae_forward.1} parent=1 // pred_fallthru
      _
    // Predicated region
    $region30: #{vae_forward.1} parent=1 // pred_check
      _
    $region31: #{vae_forward.1} parent=1 // pred_check_branch
      %102 = sbr.rel (0) target = $region33
    $region32: #{vae_forward.1} parent=1 // pred_region
      %s104 = ssub.s32 64, 64
      %105 = vsyncadd [#allocation15], %s104
      %s107 = sshll.u32 [#allocation14], 4
      %s108 = int_to_ptr.vmem [resolvable:$true] %s107
      %110 = dma.hbm_to_vmem [thread:$0]  %s7, 64, %s108, [#allocation15]
    $region33: #{vae_forward.1} parent=1 // pred_fallthru
      _
    // Predicated region
    $region34: #{vae_forward.1} parent=1 // pred_check
      _
    $region35: #{vae_forward.1} parent=1 // pred_check_branch
      %112 = sbr.rel (0) target = $region37
    $region36: #{vae_forward.1} parent=1 // pred_region
      %s114 = ssub.s32 8192, 8192
      %115 = vsyncadd [#allocation15], %s114
      %s116 = sshll.u32 [#allocation16], 4
      %s117 = int_to_ptr.vmem [resolvable:$true] %s116
      %122 = dma.hbm_to_vmem [thread:$0]  %s8, 8192, %s117, [#allocation15], 128, 128, 8
    $region37: #{vae_forward.1} parent=1 // pred_fallthru
      _
    // Predicated region
    $region38: #{vae_forward.1} parent=1 // pred_check
      _
    $region39: #{vae_forward.1} parent=1 // pred_check_branch
      %124 = sbr.rel (0) target = $region41
    $region40: #{vae_forward.1} parent=1 // pred_region
      %s126 = ssub.s32 32, 32
      %127 = vsyncadd [#allocation18], %s126
      %s129 = sshll.u32 [#allocation17], 4
      %s130 = int_to_ptr.vmem [resolvable:$true] %s129
      %132 = dma.hbm_to_vmem [thread:$0]  %s9, 32, %s130, [#allocation18]
    $region41: #{vae_forward.1} parent=1 // pred_fallthru
      _
    // Predicated region
    $region42: #{vae_forward.1} parent=1 // pred_check
      _
    $region43: #{vae_forward.1} parent=1 // pred_check_branch
      %134 = sbr.rel (0) target = $region45
    $region44: #{vae_forward.1} parent=1 // pred_region
      %135 = dma.done [#allocation3], 128
    $region45: #{vae_forward.1} parent=1 // pred_fallthru
      _
    // Predicated region
    $region46: #{vae_forward.1} parent=1 // pred_check
      _
    $region47: #{vae_forward.1} parent=1 // pred_check_branch
      %137 = sbr.rel (0) target = $region49
    $region48: #{vae_forward.1} parent=1 // pred_region
      %138 = dma.done [#allocation6], 128
    $region49: #{vae_forward.1} parent=1 // pred_fallthru
      _
    // Predicated region
    $region50: #{vae_forward.1} parent=1 // pred_check
      _
    $region51: #{vae_forward.1} parent=1 // pred_check_branch
      %140 = sbr.rel (0) target = $region53
    $region52: #{vae_forward.1} parent=1 // pred_region
      %141 = dma.done [#allocation6], 8192
    $region53: #{vae_forward.1} parent=1 // pred_fallthru
      _
    // Predicated region
    $region54: #{vae_forward.1} parent=1 // pred_check
      _
    $region55: #{vae_forward.1} parent=1 // pred_check_branch
      %143 = sbr.rel (0) target = $region57
    $region56: #{vae_forward.1} parent=1 // pred_region
      %144 = dma.done [#allocation9], 64
    $region57: #{vae_forward.1} parent=1 // pred_fallthru
      _
    // Predicated region
    $region58: #{vae_forward.1} parent=1 // pred_check
      _
    $region59: #{vae_forward.1} parent=1 // pred_check_branch
      %146 = sbr.rel (0) target = $region61
    $region60: #{vae_forward.1} parent=1 // pred_region
      %147 = dma.done [#allocation9], 4096
    $region61: #{vae_forward.1} parent=1 // pred_fallthru
      _
    // Predicated region
    $region62: #{vae_forward.1} parent=1 // pred_check
      _
    $region63: #{vae_forward.1} parent=1 // pred_check_branch
      %149 = sbr.rel (0) target = $region65
    $region64: #{vae_forward.1} parent=1 // pred_region
      %150 = dma.done [#allocation12], 16
    $region65: #{vae_forward.1} parent=1 // pred_fallthru
      _
    // Predicated region
    $region66: #{vae_forward.1} parent=1 // pred_check
      _
    $region67: #{vae_forward.1} parent=1 // pred_check_branch
      %152 = sbr.rel (0) target = $region69
    $region68: #{vae_forward.1} parent=1 // pred_region
      %153 = dma.done [#allocation12], 4096
    $region69: #{vae_forward.1} parent=1 // pred_fallthru
      _
    // Predicated region
    $region70: #{vae_forward.1} parent=1 // pred_check
      _
    $region71: #{vae_forward.1} parent=1 // pred_check_branch
      %155 = sbr.rel (0) target = $region73
    $region72: #{vae_forward.1} parent=1 // pred_region
      %156 = dma.done [#allocation15], 64
    $region73: #{vae_forward.1} parent=1 // pred_fallthru
      _
    // Predicated region
    $region74: #{vae_forward.1} parent=1 // pred_check
      _
    $region75: #{vae_forward.1} parent=1 // pred_check_branch
      %158 = sbr.rel (0) target = $region77
    $region76: #{vae_forward.1} parent=1 // pred_region
      %159 = dma.done [#allocation15], 8192
    $region77: #{vae_forward.1} parent=1 // pred_fallthru
      _
    // Predicated region
    $region78: #{vae_forward.1} parent=1 // pred_check
      _
    $region79: #{vae_forward.1} parent=1 // pred_check_branch
      %161 = sbr.rel (0) target = $region81
    $region80: #{vae_forward.1} parent=1 // pred_region
      %162 = dma.done [#allocation18], 32
    $region81: #{vae_forward.1} parent=1 // pred_fallthru
      _
    %v164 = vld [vmem:[#allocation2] sm:$0xff]
    %v165 = vld [vmem:[#allocation5] sm:$0xff]
    %v166 = vld [vmem:[#allocation7] sm:$0xff]
    %v167 = vld [vmem:[#allocation7 + $0x8] sm:$0xff]
    %v168 = vld [vmem:[#allocation7 + $0x10] sm:$0xff]
    %v169 = vld [vmem:[#allocation7 + $0x18] sm:$0xff]
    %v170 = vld [vmem:[#allocation7 + $0x20] sm:$0xff]
    %v171 = vld [vmem:[#allocation7 + $0x28] sm:$0xff]
    %v172 = vld [vmem:[#allocation7 + $0x30] sm:$0xff]
    %v173 = vld [vmem:[#allocation7 + $0x38] sm:$0xff]
    %v174 = vld [vmem:[#allocation7 + $0x40] sm:$0xff]
    %v175 = vld [vmem:[#allocation7 + $0x48] sm:$0xff]
    %v176 = vld [vmem:[#allocation7 + $0x50] sm:$0xff]
    %v177 = vld [vmem:[#allocation7 + $0x58] sm:$0xff]
    %v178 = vld [vmem:[#allocation7 + $0x60] sm:$0xff]
    %v179 = vld [vmem:[#allocation7 + $0x68] sm:$0xff]
    %v180 = vld [vmem:[#allocation7 + $0x70] sm:$0xff]
    %v181 = vld [vmem:[#allocation7 + $0x78] sm:$0xff]
    %v182 = vld [vmem:[#allocation7 + $0x80] sm:$0xff]
    %v183 = vld [vmem:[#allocation7 + $0x88] sm:$0xff]
    %v184 = vld [vmem:[#allocation7 + $0x90] sm:$0xff]
    %v185 = vld [vmem:[#allocation7 + $0x98] sm:$0xff]
    %v186 = vld [vmem:[#allocation7 + $0xa0] sm:$0xff]
    %v187 = vld [vmem:[#allocation7 + $0xa8] sm:$0xff]
    %v188 = vld [vmem:[#allocation7 + $0xb0] sm:$0xff]
    %v189 = vld [vmem:[#allocation7 + $0xb8] sm:$0xff]
    %v190 = vld [vmem:[#allocation7 + $0xc0] sm:$0xff]
    %v191 = vld [vmem:[#allocation7 + $0xc8] sm:$0xff]
    %v192 = vld [vmem:[#allocation7 + $0xd0] sm:$0xff]
    %v193 = vld [vmem:[#allocation7 + $0xd8] sm:$0xff]
    %v194 = vld [vmem:[#allocation7 + $0xe0] sm:$0xff]
    %v195 = vld [vmem:[#allocation7 + $0xe8] sm:$0xff]
    %v196 = vld [vmem:[#allocation7 + $0xf0] sm:$0xff]
    %v197 = vld [vmem:[#allocation7 + $0xf8] sm:$0xff]
    %v198 = vld [vmem:[#allocation7 + $0x100] sm:$0xff]
    %v199 = vld [vmem:[#allocation7 + $0x108] sm:$0xff]
    %v200 = vld [vmem:[#allocation7 + $0x110] sm:$0xff]
    %v201 = vld [vmem:[#allocation7 + $0x118] sm:$0xff]
    %v202 = vld [vmem:[#allocation7 + $0x120] sm:$0xff]
    %v203 = vld [vmem:[#allocation7 + $0x128] sm:$0xff]
    %v204 = vld [vmem:[#allocation7 + $0x130] sm:$0xff]
    %v205 = vld [vmem:[#allocation7 + $0x138] sm:$0xff]
    %v206 = vld [vmem:[#allocation7 + $0x140] sm:$0xff]
    %v207 = vld [vmem:[#allocation7 + $0x148] sm:$0xff]
    %v208 = vld [vmem:[#allocation7 + $0x150] sm:$0xff]
    %v209 = vld [vmem:[#allocation7 + $0x158] sm:$0xff]
    %v210 = vld [vmem:[#allocation7 + $0x160] sm:$0xff]
    %v211 = vld [vmem:[#allocation7 + $0x168] sm:$0xff]
    %v212 = vld [vmem:[#allocation7 + $0x170] sm:$0xff]
    %v213 = vld [vmem:[#allocation7 + $0x178] sm:$0xff]
    %v214 = vld [vmem:[#allocation7 + $0x180] sm:$0xff]
    %v215 = vld [vmem:[#allocation7 + $0x188] sm:$0xff]
    %v216 = vld [vmem:[#allocation7 + $0x190] sm:$0xff]
    %v217 = vld [vmem:[#allocation7 + $0x198] sm:$0xff]
    %v218 = vld [vmem:[#allocation7 + $0x1a0] sm:$0xff]
    %v219 = vld [vmem:[#allocation7 + $0x1a8] sm:$0xff]
    %v220 = vld [vmem:[#allocation7 + $0x1b0] sm:$0xff]
    %v221 = vld [vmem:[#allocation7 + $0x1b8] sm:$0xff]
    %v222 = vld [vmem:[#allocation7 + $0x1c0] sm:$0xff]
    %v223 = vld [vmem:[#allocation7 + $0x1c8] sm:$0xff]
    %v224 = vld [vmem:[#allocation7 + $0x1d0] sm:$0xff]
    %v225 = vld [vmem:[#allocation7 + $0x1d8] sm:$0xff]
    %v226 = vld [vmem:[#allocation7 + $0x1e0] sm:$0xff]
    %v227 = vld [vmem:[#allocation7 + $0x1e8] sm:$0xff]
    %v228 = vld [vmem:[#allocation7 + $0x1f0] sm:$0xff]
    %v229 = vld [vmem:[#allocation7 + $0x1f8] sm:$0xff]
    %v230 = vld [vmem:[#allocation8] sm:$0xf]
    %v232 = vlaneseq
    %v233 = vshrl.u32 %v232, 7
    %v234 = vsub.s32 0, %v233
    %v235 = vrot.slane %v230, %v234
    %v236 = vlaneseq
    %v237 = vshrl.u32 %v236, 7
    %v238 = vsub.s32 1, %v237
    %v239 = vrot.slane %v230, %v238
    %v240 = vlaneseq
    %v241 = vshrl.u32 %v240, 7
    %v242 = vsub.s32 2, %v241
    %v243 = vrot.slane %v230, %v242
    %v244 = vlaneseq
    %v245 = vshrl.u32 %v244, 7
    %v246 = vsub.s32 3, %v245
    %v247 = vrot.slane %v230, %v246
    %v253 = vunpack.c.l.b16 %v164
    %v254 = vunpack.c.h.b16 %v164
    %v255 = vpack.c.b16 %v253, %v253
    %v256 = vpack.c.b16 %v254, %v254
    %v323 = vunpack.c.l.b16 %v166
    %v324 = vunpack.c.h.b16 %v166
    %v325 = vunpack.c.l.b16 %v167
    %v326 = vunpack.c.h.b16 %v167
    %v327 = vunpack.c.l.b16 %v168
    %v328 = vunpack.c.h.b16 %v168
    %v329 = vunpack.c.l.b16 %v169
    %v330 = vunpack.c.h.b16 %v169
    %v331 = vunpack.c.l.b16 %v170
    %v332 = vunpack.c.h.b16 %v170
    %v333 = vunpack.c.l.b16 %v171
    %v334 = vunpack.c.h.b16 %v171
    %v335 = vunpack.c.l.b16 %v172
    %v336 = vunpack.c.h.b16 %v172
    %v337 = vunpack.c.l.b16 %v173
    %v338 = vunpack.c.h.b16 %v173
    %v339 = vunpack.c.l.b16 %v174
    %v340 = vunpack.c.h.b16 %v174
    %v341 = vunpack.c.l.b16 %v175
    %v342 = vunpack.c.h.b16 %v175
    %v343 = vunpack.c.l.b16 %v176
    %v344 = vunpack.c.h.b16 %v176
    %v345 = vunpack.c.l.b16 %v177
    %v346 = vunpack.c.h.b16 %v177
    %v347 = vunpack.c.l.b16 %v178
    %v348 = vunpack.c.h.b16 %v178
    %v349 = vunpack.c.l.b16 %v179
    %v350 = vunpack.c.h.b16 %v179
    %v351 = vunpack.c.l.b16 %v180
    %v352 = vunpack.c.h.b16 %v180
    %v353 = vunpack.c.l.b16 %v181
    %v354 = vunpack.c.h.b16 %v181
    %v355 = vunpack.c.l.b16 %v182
    %v356 = vunpack.c.h.b16 %v182
    %v357 = vunpack.c.l.b16 %v183
    %v358 = vunpack.c.h.b16 %v183
    %v359 = vunpack.c.l.b16 %v184
    %v360 = vunpack.c.h.b16 %v184
    %v361 = vunpack.c.l.b16 %v185
    %v362 = vunpack.c.h.b16 %v185
    %v363 = vunpack.c.l.b16 %v186
    %v364 = vunpack.c.h.b16 %v186
    %v365 = vunpack.c.l.b16 %v187
    %v366 = vunpack.c.h.b16 %v187
    %v367 = vunpack.c.l.b16 %v188
    %v368 = vunpack.c.h.b16 %v188
    %v369 = vunpack.c.l.b16 %v189
    %v370 = vunpack.c.h.b16 %v189
    %v371 = vunpack.c.l.b16 %v190
    %v372 = vunpack.c.h.b16 %v190
    %v373 = vunpack.c.l.b16 %v191
    %v374 = vunpack.c.h.b16 %v191
    %v375 = vunpack.c.l.b16 %v192
    %v376 = vunpack.c.h.b16 %v192
    %v377 = vunpack.c.l.b16 %v193
    %v378 = vunpack.c.h.b16 %v193
    %v379 = vunpack.c.l.b16 %v194
    %v380 = vunpack.c.h.b16 %v194
    %v381 = vunpack.c.l.b16 %v195
    %v382 = vunpack.c.h.b16 %v195
    %v383 = vunpack.c.l.b16 %v196
    %v384 = vunpack.c.h.b16 %v196
    %v385 = vunpack.c.l.b16 %v197
    %v386 = vunpack.c.h.b16 %v197
    %v387 = vunpack.c.l.b16 %v198
    %v388 = vunpack.c.h.b16 %v198
    %v389 = vunpack.c.l.b16 %v199
    %v390 = vunpack.c.h.b16 %v199
    %v391 = vunpack.c.l.b16 %v200
    %v392 = vunpack.c.h.b16 %v200
    %v393 = vunpack.c.l.b16 %v201
    %v394 = vunpack.c.h.b16 %v201
    %v395 = vunpack.c.l.b16 %v202
    %v396 = vunpack.c.h.b16 %v202
    %v397 = vunpack.c.l.b16 %v203
    %v398 = vunpack.c.h.b16 %v203
    %v399 = vunpack.c.l.b16 %v204
    %v400 = vunpack.c.h.b16 %v204
    %v401 = vunpack.c.l.b16 %v205
    %v402 = vunpack.c.h.b16 %v205
    %v403 = vunpack.c.l.b16 %v206
    %v404 = vunpack.c.h.b16 %v206
    %v405 = vunpack.c.l.b16 %v207
    %v406 = vunpack.c.h.b16 %v207
    %v407 = vunpack.c.l.b16 %v208
    %v408 = vunpack.c.h.b16 %v208
    %v409 = vunpack.c.l.b16 %v209
    %v410 = vunpack.c.h.b16 %v209
    %v411 = vunpack.c.l.b16 %v210
    %v412 = vunpack.c.h.b16 %v210
    %v413 = vunpack.c.l.b16 %v211
    %v414 = vunpack.c.h.b16 %v211
    %v415 = vunpack.c.l.b16 %v212
    %v416 = vunpack.c.h.b16 %v212
    %v417 = vunpack.c.l.b16 %v213
    %v418 = vunpack.c.h.b16 %v213
    %v419 = vunpack.c.l.b16 %v214
    %v420 = vunpack.c.h.b16 %v214
    %v421 = vunpack.c.l.b16 %v215
    %v422 = vunpack.c.h.b16 %v215
    %v423 = vunpack.c.l.b16 %v216
    %v424 = vunpack.c.h.b16 %v216
    %v425 = vunpack.c.l.b16 %v217
    %v426 = vunpack.c.h.b16 %v217
    %v427 = vunpack.c.l.b16 %v218
    %v428 = vunpack.c.h.b16 %v218
    %v429 = vunpack.c.l.b16 %v219
    %v430 = vunpack.c.h.b16 %v219
    %v431 = vunpack.c.l.b16 %v220
    %v432 = vunpack.c.h.b16 %v220
    %v433 = vunpack.c.l.b16 %v221
    %v434 = vunpack.c.h.b16 %v221
    %v435 = vunpack.c.l.b16 %v222
    %v436 = vunpack.c.h.b16 %v222
    %v437 = vunpack.c.l.b16 %v223
    %v438 = vunpack.c.h.b16 %v223
    %v439 = vunpack.c.l.b16 %v224
    %v440 = vunpack.c.h.b16 %v224
    %v441 = vunpack.c.l.b16 %v225
    %v442 = vunpack.c.h.b16 %v225
    %v443 = vunpack.c.l.b16 %v226
    %v444 = vunpack.c.h.b16 %v226
    %v445 = vunpack.c.l.b16 %v227
    %v446 = vunpack.c.h.b16 %v227
    %v447 = vunpack.c.l.b16 %v228
    %v448 = vunpack.c.h.b16 %v228
    %v449 = vunpack.c.l.b16 %v229
    %v450 = vunpack.c.h.b16 %v229
    %v451 = vpack.c.b16 %v327, %v323
    %v452 = vpack.c.b16 %v328, %v324
    %v453 = vpack.c.b16 %v329, %v325
    %v454 = vpack.c.b16 %v330, %v326
    %v455 = vpack.c.b16 %v335, %v331
    %v456 = vpack.c.b16 %v336, %v332
    %v457 = vpack.c.b16 %v337, %v333
    %v458 = vpack.c.b16 %v338, %v334
    %v459 = vpack.c.b16 %v343, %v339
    %v460 = vpack.c.b16 %v344, %v340
    %v461 = vpack.c.b16 %v345, %v341
    %v462 = vpack.c.b16 %v346, %v342
    %v463 = vpack.c.b16 %v351, %v347
    %v464 = vpack.c.b16 %v352, %v348
    %v465 = vpack.c.b16 %v353, %v349
    %v466 = vpack.c.b16 %v354, %v350
    %v467 = vpack.c.b16 %v359, %v355
    %v468 = vpack.c.b16 %v360, %v356
    %v469 = vpack.c.b16 %v361, %v357
    %v470 = vpack.c.b16 %v362, %v358
    %v471 = vpack.c.b16 %v367, %v363
    %v472 = vpack.c.b16 %v368, %v364
    %v473 = vpack.c.b16 %v369, %v365
    %v474 = vpack.c.b16 %v370, %v366
    %v475 = vpack.c.b16 %v375, %v371
    %v476 = vpack.c.b16 %v376, %v372
    %v477 = vpack.c.b16 %v377, %v373
    %v478 = vpack.c.b16 %v378, %v374
    %v479 = vpack.c.b16 %v383, %v379
    %v480 = vpack.c.b16 %v384, %v380
    %v481 = vpack.c.b16 %v385, %v381
    %v482 = vpack.c.b16 %v386, %v382
    %v483 = vpack.c.b16 %v391, %v387
    %v484 = vpack.c.b16 %v392, %v388
    %v485 = vpack.c.b16 %v393, %v389
    %v486 = vpack.c.b16 %v394, %v390
    %v487 = vpack.c.b16 %v399, %v395
    %v488 = vpack.c.b16 %v400, %v396
    %v489 = vpack.c.b16 %v401, %v397
    %v490 = vpack.c.b16 %v402, %v398
    %v491 = vpack.c.b16 %v407, %v403
    %v492 = vpack.c.b16 %v408, %v404
    %v493 = vpack.c.b16 %v409, %v405
    %v494 = vpack.c.b16 %v410, %v406
    %v495 = vpack.c.b16 %v415, %v411
    %v496 = vpack.c.b16 %v416, %v412
    %v497 = vpack.c.b16 %v417, %v413
    %v498 = vpack.c.b16 %v418, %v414
    %v499 = vpack.c.b16 %v423, %v419
    %v500 = vpack.c.b16 %v424, %v420
    %v501 = vpack.c.b16 %v425, %v421
    %v502 = vpack.c.b16 %v426, %v422
    %v503 = vpack.c.b16 %v431, %v427
    %v504 = vpack.c.b16 %v432, %v428
    %v505 = vpack.c.b16 %v433, %v429
    %v506 = vpack.c.b16 %v434, %v430
    %v507 = vpack.c.b16 %v439, %v435
    %v508 = vpack.c.b16 %v440, %v436
    %v509 = vpack.c.b16 %v441, %v437
    %v510 = vpack.c.b16 %v442, %v438
    %v511 = vpack.c.b16 %v447, %v443
    %v512 = vpack.c.b16 %v448, %v444
    %v513 = vpack.c.b16 %v449, %v445
    %v514 = vpack.c.b16 %v450, %v446
    %579 = vmatprep.subr.bf16.mxu0 %v452
    %580 = vmatpush1.bf16.msra.mxu0 %v451
    %581 = vmatprep.subr.bf16.mxu0 %v456
    %582 = vmatpush1.bf16.msra.mxu0 %v455
    %583 = vmatprep.subr.bf16.mxu0 %v460
    %584 = vmatpush1.bf16.msra.mxu0 %v459
    %585 = vmatprep.subr.bf16.mxu0 %v464
    %586 = vmatpush1.bf16.msra.mxu0 %v463
    %587 = vmatprep.subr.bf16.mxu0 %v468
    %588 = vmatpush1.bf16.msra.mxu0 %v467
    %589 = vmatprep.subr.bf16.mxu0 %v472
    %590 = vmatpush1.bf16.msra.mxu0 %v471
    %591 = vmatprep.subr.bf16.mxu0 %v476
    %592 = vmatpush1.bf16.msra.mxu0 %v475
    %593 = vmatprep.subr.bf16.mxu0 %v480
    %594 = vmatpush1.bf16.msra.mxu0 %v479
    %595 = vmatprep.subr.bf16.mxu0 %v484
    %596 = vmatpush1.bf16.msra.mxu0 %v483
    %597 = vmatprep.subr.bf16.mxu0 %v488
    %598 = vmatpush1.bf16.msra.mxu0 %v487
    %599 = vmatprep.subr.bf16.mxu0 %v492
    %600 = vmatpush1.bf16.msra.mxu0 %v491
    %601 = vmatprep.subr.bf16.mxu0 %v496
    %602 = vmatpush1.bf16.msra.mxu0 %v495
    %603 = vmatprep.subr.bf16.mxu0 %v500
    %604 = vmatpush1.bf16.msra.mxu0 %v499
    %605 = vmatprep.subr.bf16.mxu0 %v504
    %606 = vmatpush1.bf16.msra.mxu0 %v503
    %607 = vmatprep.subr.bf16.mxu0 %v508
    %608 = vmatpush1.bf16.msra.mxu0 %v507
    %609 = vmatprep.subr.bf16.mxu0 %v512
    %610 = vmatpush1.bf16.msra.mxu0 %v511
    %611 = vmatprep.mubr.bf16.mxu0 %v256
    %612 = vmatmul.mubr.bf16.gmra.mrb[0].mxu0 %v255
    %v613 = vpop.f32.mrb[0].mxu0
    %v614 = vadd.f32 %v235, %v613
    %v615 = vpop.f32.mrb[0].mxu0
    %v616 = vadd.f32 %v239, %v615
    %v617 = vpop.f32.mrb[0].mxu0
    %v618 = vpop.f32.mrb[0].mxu0
    %619 = vdwg.mxu0
    %620 = vmatprep.subr.bf16.mxu0 %v454
    %621 = vmatpush1.bf16.msra.mxu0 %v453
    %622 = vmatprep.subr.bf16.mxu0 %v458
    %623 = vmatpush1.bf16.msra.mxu0 %v457
    %624 = vmatprep.subr.bf16.mxu0 %v462
    %625 = vmatpush1.bf16.msra.mxu0 %v461
    %626 = vmatprep.subr.bf16.mxu0 %v466
    %627 = vmatpush1.bf16.msra.mxu0 %v465
    %628 = vmatprep.subr.bf16.mxu0 %v470
    %629 = vmatpush1.bf16.msra.mxu0 %v469
    %630 = vmatprep.subr.bf16.mxu0 %v474
    %631 = vmatpush1.bf16.msra.mxu0 %v473
    %632 = vmatprep.subr.bf16.mxu0 %v478
    %633 = vmatpush1.bf16.msra.mxu0 %v477
    %634 = vmatprep.subr.bf16.mxu0 %v482
    %635 = vmatpush1.bf16.msra.mxu0 %v481
    %636 = vmatprep.subr.bf16.mxu0 %v486
    %637 = vmatpush1.bf16.msra.mxu0 %v485
    %638 = vmatprep.subr.bf16.mxu0 %v490
    %639 = vmatpush1.bf16.msra.mxu0 %v489
    %640 = vmatprep.subr.bf16.mxu0 %v494
    %641 = vmatpush1.bf16.msra.mxu0 %v493
    %642 = vmatprep.subr.bf16.mxu0 %v498
    %643 = vmatpush1.bf16.msra.mxu0 %v497
    %644 = vmatprep.subr.bf16.mxu0 %v502
    %645 = vmatpush1.bf16.msra.mxu0 %v501
    %646 = vmatprep.subr.bf16.mxu0 %v506
    %647 = vmatpush1.bf16.msra.mxu0 %v505
    %648 = vmatprep.subr.bf16.mxu0 %v510
    %649 = vmatpush1.bf16.msra.mxu0 %v509
    %650 = vmatprep.subr.bf16.mxu0 %v514
    %651 = vmatpush1.bf16.msra.mxu0 %v513
    %652 = vmatprep.mubr.bf16.mxu0 %v256
    %653 = vmatmul.mubr.bf16.gmra.mrb[0].mxu0 %v255
    %v654 = vpop.f32.mrb[0].mxu0
    %v655 = vadd.f32 %v243, %v654
    %v656 = vpop.f32.mrb[0].mxu0
    %v657 = vadd.f32 %v247, %v656
    %v658 = vpop.f32.mrb[0].mxu0
    %v659 = vpop.f32.mrb[0].mxu0
    %660 = vdwg.mxu0
    %v661 = vmax.f32 %v614, 0.0
    %v662 = vmax.f32 %v616, 0.0
    %v663 = vmax.f32 %v655, 0.0
    %v664 = vmax.f32 %v657, 0.0
    %v665 = vpack.c.bf16 %v661, %v661
    %v666 = vpack.c.bf16 %v662, %v662
    %v667 = vpack.c.bf16 %v663, %v663
    %v668 = vpack.c.bf16 %v664, %v664
    %v669 = vld [vmem:[#allocation10] sm:$0xf]
    %v670 = vld [vmem:[#allocation10 + $0x4] sm:$0xf]
    %v671 = vld [vmem:[#allocation10 + $0x8] sm:$0xf]
    %v672 = vld [vmem:[#allocation10 + $0xc] sm:$0xf]
    %v673 = vld [vmem:[#allocation10 + $0x10] sm:$0xf]
    %v674 = vld [vmem:[#allocation10 + $0x14] sm:$0xf]
    %v675 = vld [vmem:[#allocation10 + $0x18] sm:$0xf]
    %v676 = vld [vmem:[#allocation10 + $0x1c] sm:$0xf]
    %v677 = vld [vmem:[#allocation10 + $0x20] sm:$0xf]
    %v678 = vld [vmem:[#allocation10 + $0x24] sm:$0xf]
    %v679 = vld [vmem:[#allocation10 + $0x28] sm:$0xf]
    %v680 = vld [vmem:[#allocation10 + $0x2c] sm:$0xf]
    %v681 = vld [vmem:[#allocation10 + $0x30] sm:$0xf]
    %v682 = vld [vmem:[#allocation10 + $0x34] sm:$0xf]
    %v683 = vld [vmem:[#allocation10 + $0x38] sm:$0xf]
    %v684 = vld [vmem:[#allocation10 + $0x3c] sm:$0xf]
    %v685 = vld [vmem:[#allocation10 + $0x40] sm:$0xf]
    %v686 = vld [vmem:[#allocation10 + $0x44] sm:$0xf]
    %v687 = vld [vmem:[#allocation10 + $0x48] sm:$0xf]
    %v688 = vld [vmem:[#allocation10 + $0x4c] sm:$0xf]
    %v689 = vld [vmem:[#allocation10 + $0x50] sm:$0xf]
    %v690 = vld [vmem:[#allocation10 + $0x54] sm:$0xf]
    %v691 = vld [vmem:[#allocation10 + $0x58] sm:$0xf]
    %v692 = vld [vmem:[#allocation10 + $0x5c] sm:$0xf]
    %v693 = vld [vmem:[#allocation10 + $0x60] sm:$0xf]
    %v694 = vld [vmem:[#allocation10 + $0x64] sm:$0xf]
    %v695 = vld [vmem:[#allocation10 + $0x68] sm:$0xf]
    %v696 = vld [vmem:[#allocation10 + $0x6c] sm:$0xf]
    %v697 = vld [vmem:[#allocation10 + $0x70] sm:$0xf]
    %v698 = vld [vmem:[#allocation10 + $0x74] sm:$0xf]
    %v699 = vld [vmem:[#allocation10 + $0x78] sm:$0xf]
    %v700 = vld [vmem:[#allocation10 + $0x7c] sm:$0xf]
    %v701 = vld [vmem:[#allocation10 + $0x80] sm:$0xf]
    %v702 = vld [vmem:[#allocation10 + $0x84] sm:$0xf]
    %v703 = vld [vmem:[#allocation10 + $0x88] sm:$0xf]
    %v704 = vld [vmem:[#allocation10 + $0x8c] sm:$0xf]
    %v705 = vld [vmem:[#allocation10 + $0x90] sm:$0xf]
    %v706 = vld [vmem:[#allocation10 + $0x94] sm:$0xf]
    %v707 = vld [vmem:[#allocation10 + $0x98] sm:$0xf]
    %v708 = vld [vmem:[#allocation10 + $0x9c] sm:$0xf]
    %v709 = vld [vmem:[#allocation10 + $0xa0] sm:$0xf]
    %v710 = vld [vmem:[#allocation10 + $0xa4] sm:$0xf]
    %v711 = vld [vmem:[#allocation10 + $0xa8] sm:$0xf]
    %v712 = vld [vmem:[#allocation10 + $0xac] sm:$0xf]
    %v713 = vld [vmem:[#allocation10 + $0xb0] sm:$0xf]
    %v714 = vld [vmem:[#allocation10 + $0xb4] sm:$0xf]
    %v715 = vld [vmem:[#allocation10 + $0xb8] sm:$0xf]
    %v716 = vld [vmem:[#allocation10 + $0xbc] sm:$0xf]
    %v717 = vld [vmem:[#allocation10 + $0xc0] sm:$0xf]
    %v718 = vld [vmem:[#allocation10 + $0xc4] sm:$0xf]
    %v719 = vld [vmem:[#allocation10 + $0xc8] sm:$0xf]
    %v720 = vld [vmem:[#allocation10 + $0xcc] sm:$0xf]
    %v721 = vld [vmem:[#allocation10 + $0xd0] sm:$0xf]
    %v722 = vld [vmem:[#allocation10 + $0xd4] sm:$0xf]
    %v723 = vld [vmem:[#allocation10 + $0xd8] sm:$0xf]
    %v724 = vld [vmem:[#allocation10 + $0xdc] sm:$0xf]
    %v725 = vld [vmem:[#allocation10 + $0xe0] sm:$0xf]
    %v726 = vld [vmem:[#allocation10 + $0xe4] sm:$0xf]
    %v727 = vld [vmem:[#allocation10 + $0xe8] sm:$0xf]
    %v728 = vld [vmem:[#allocation10 + $0xec] sm:$0xf]
    %v729 = vld [vmem:[#allocation10 + $0xf0] sm:$0xf]
    %v730 = vld [vmem:[#allocation10 + $0xf4] sm:$0xf]
    %v731 = vld [vmem:[#allocation10 + $0xf8] sm:$0xf]
    %v732 = vld [vmem:[#allocation10 + $0xfc] sm:$0xf]
    %v733 = vld [vmem:[#allocation11] sm:$0x1]
    %v735 = vlaneseq
    %v736 = vshrl.u32 %v735, 7
    %v737 = vsub.s32 0, %v736
    %v738 = vrot.slane %v733, %v737
    %v804 = vunpack.c.l.b16 %v669
    %v805 = vunpack.c.l.b16 %v670
    %v806 = vunpack.c.l.b16 %v671
    %v807 = vunpack.c.l.b16 %v672
    %v808 = vunpack.c.l.b16 %v673
    %v809 = vunpack.c.l.b16 %v674
    %v810 = vunpack.c.l.b16 %v675
    %v811 = vunpack.c.l.b16 %v676
    %v812 = vunpack.c.l.b16 %v677
    %v813 = vunpack.c.l.b16 %v678
    %v814 = vunpack.c.l.b16 %v679
    %v815 = vunpack.c.l.b16 %v680
    %v816 = vunpack.c.l.b16 %v681
    %v817 = vunpack.c.l.b16 %v682
    %v818 = vunpack.c.l.b16 %v683
    %v819 = vunpack.c.l.b16 %v684
    %v820 = vunpack.c.l.b16 %v685
    %v821 = vunpack.c.l.b16 %v686
    %v822 = vunpack.c.l.b16 %v687
    %v823 = vunpack.c.l.b16 %v688
    %v824 = vunpack.c.l.b16 %v689
    %v825 = vunpack.c.l.b16 %v690
    %v826 = vunpack.c.l.b16 %v691
    %v827 = vunpack.c.l.b16 %v692
    %v828 = vunpack.c.l.b16 %v693
    %v829 = vunpack.c.l.b16 %v694
    %v830 = vunpack.c.l.b16 %v695
    %v831 = vunpack.c.l.b16 %v696
    %v832 = vunpack.c.l.b16 %v697
    %v833 = vunpack.c.l.b16 %v698
    %v834 = vunpack.c.l.b16 %v699
    %v835 = vunpack.c.l.b16 %v700
    %v836 = vunpack.c.l.b16 %v701
    %v837 = vunpack.c.l.b16 %v702
    %v838 = vunpack.c.l.b16 %v703
    %v839 = vunpack.c.l.b16 %v704
    %v840 = vunpack.c.l.b16 %v705
    %v841 = vunpack.c.l.b16 %v706
    %v842 = vunpack.c.l.b16 %v707
    %v843 = vunpack.c.l.b16 %v708
    %v844 = vunpack.c.l.b16 %v709
    %v845 = vunpack.c.l.b16 %v710
    %v846 = vunpack.c.l.b16 %v711
    %v847 = vunpack.c.l.b16 %v712
    %v848 = vunpack.c.l.b16 %v713
    %v849 = vunpack.c.l.b16 %v714
    %v850 = vunpack.c.l.b16 %v715
    %v851 = vunpack.c.l.b16 %v716
    %v852 = vunpack.c.l.b16 %v717
    %v853 = vunpack.c.l.b16 %v718
    %v854 = vunpack.c.l.b16 %v719
    %v855 = vunpack.c.l.b16 %v720
    %v856 = vunpack.c.l.b16 %v721
    %v857 = vunpack.c.l.b16 %v722
    %v858 = vunpack.c.l.b16 %v723
    %v859 = vunpack.c.l.b16 %v724
    %v860 = vunpack.c.l.b16 %v725
    %v861 = vunpack.c.l.b16 %v726
    %v862 = vunpack.c.l.b16 %v727
    %v863 = vunpack.c.l.b16 %v728
    %v864 = vunpack.c.l.b16 %v729
    %v865 = vunpack.c.l.b16 %v730
    %v866 = vunpack.c.l.b16 %v731
    %v867 = vunpack.c.l.b16 %v732
    %v868 = vpack.c.b16 %v805, %v804
    %v869 = vpack.c.b16 %v807, %v806
    %v870 = vpack.c.b16 %v809, %v808
    %v871 = vpack.c.b16 %v811, %v810
    %v872 = vpack.c.b16 %v813, %v812
    %v873 = vpack.c.b16 %v815, %v814
    %v874 = vpack.c.b16 %v817, %v816
    %v875 = vpack.c.b16 %v819, %v818
    %v876 = vpack.c.b16 %v821, %v820
    %v877 = vpack.c.b16 %v823, %v822
    %v878 = vpack.c.b16 %v825, %v824
    %v879 = vpack.c.b16 %v827, %v826
    %v880 = vpack.c.b16 %v829, %v828
    %v881 = vpack.c.b16 %v831, %v830
    %v882 = vpack.c.b16 %v833, %v832
    %v883 = vpack.c.b16 %v835, %v834
    %v884 = vpack.c.b16 %v837, %v836
    %v885 = vpack.c.b16 %v839, %v838
    %v886 = vpack.c.b16 %v841, %v840
    %v887 = vpack.c.b16 %v843, %v842
    %v888 = vpack.c.b16 %v845, %v844
    %v889 = vpack.c.b16 %v847, %v846
    %v890 = vpack.c.b16 %v849, %v848
    %v891 = vpack.c.b16 %v851, %v850
    %v892 = vpack.c.b16 %v853, %v852
    %v893 = vpack.c.b16 %v855, %v854
    %v894 = vpack.c.b16 %v857, %v856
    %v895 = vpack.c.b16 %v859, %v858
    %v896 = vpack.c.b16 %v861, %v860
    %v897 = vpack.c.b16 %v863, %v862
    %v898 = vpack.c.b16 %v865, %v864
    %v899 = vpack.c.b16 %v867, %v866
    %932 = vmatprep.subr.bf16.mxu0 0
    %933 = vmatpush1.bf16.msra.mxu0 %v868
    %934 = vmatprep.subr.bf16.mxu0 0
    %935 = vmatpush1.bf16.msra.mxu0 %v869
    %936 = vmatprep.subr.bf16.mxu0 0
    %937 = vmatpush1.bf16.msra.mxu0 %v870
    %938 = vmatprep.subr.bf16.mxu0 0
    %939 = vmatpush1.bf16.msra.mxu0 %v871
    %940 = vmatprep.subr.bf16.mxu0 0
    %941 = vmatpush1.bf16.msra.mxu0 %v872
    %942 = vmatprep.subr.bf16.mxu0 0
    %943 = vmatpush1.bf16.msra.mxu0 %v873
    %944 = vmatprep.subr.bf16.mxu0 0
    %945 = vmatpush1.bf16.msra.mxu0 %v874
    %946 = vmatprep.subr.bf16.mxu0 0
    %947 = vmatpush1.bf16.msra.mxu0 %v875
    %948 = vmatprep.subr.bf16.mxu0 0
    %949 = vmatpush1.bf16.msra.mxu0 %v876
    %950 = vmatprep.subr.bf16.mxu0 0
    %951 = vmatpush1.bf16.msra.mxu0 %v877
    %952 = vmatprep.subr.bf16.mxu0 0
    %953 = vmatpush1.bf16.msra.mxu0 %v878
    %954 = vmatprep.subr.bf16.mxu0 0
    %955 = vmatpush1.bf16.msra.mxu0 %v879
    %956 = vmatprep.subr.bf16.mxu0 0
    %957 = vmatpush1.bf16.msra.mxu0 %v880
    %958 = vmatprep.subr.bf16.mxu0 0
    %959 = vmatpush1.bf16.msra.mxu0 %v881
    %960 = vmatprep.subr.bf16.mxu0 0
    %961 = vmatpush1.bf16.msra.mxu0 %v882
    %962 = vmatprep.subr.bf16.mxu0 0
    %963 = vmatpush1.bf16.msra.mxu0 %v883
    %964 = vmatprep.mubr.bf16.mxu0 %v666
    %965 = vmatmul.mubr.bf16.gmra.mrb[0].mxu0 %v665
    %v966 = vpop.f32.mrb[0].mxu0
    %v967 = vadd.f32 %v738, %v966
    %v968 = vpop.f32.mrb[0].mxu0
    %v969 = vpop.f32.mrb[0].mxu0
    %v970 = vpop.f32.mrb[0].mxu0
    %971 = vdwg.mxu0
    %972 = vmatprep.subr.bf16.mxu0 0
    %973 = vmatpush1.bf16.msra.mxu0 %v884
    %974 = vmatprep.subr.bf16.mxu0 0
    %975 = vmatpush1.bf16.msra.mxu0 %v885
    %976 = vmatprep.subr.bf16.mxu0 0
    %977 = vmatpush1.bf16.msra.mxu0 %v886
    %978 = vmatprep.subr.bf16.mxu0 0
    %979 = vmatpush1.bf16.msra.mxu0 %v887
    %980 = vmatprep.subr.bf16.mxu0 0
    %981 = vmatpush1.bf16.msra.mxu0 %v888
    %982 = vmatprep.subr.bf16.mxu0 0
    %983 = vmatpush1.bf16.msra.mxu0 %v889
    %984 = vmatprep.subr.bf16.mxu0 0
    %985 = vmatpush1.bf16.msra.mxu0 %v890
    %986 = vmatprep.subr.bf16.mxu0 0
    %987 = vmatpush1.bf16.msra.mxu0 %v891
    %988 = vmatprep.subr.bf16.mxu0 0
    %989 = vmatpush1.bf16.msra.mxu0 %v892
    %990 = vmatprep.subr.bf16.mxu0 0
    %991 = vmatpush1.bf16.msra.mxu0 %v893
    %992 = vmatprep.subr.bf16.mxu0 0
    %993 = vmatpush1.bf16.msra.mxu0 %v894
    %994 = vmatprep.subr.bf16.mxu0 0
    %995 = vmatpush1.bf16.msra.mxu0 %v895
    %996 = vmatprep.subr.bf16.mxu0 0
    %997 = vmatpush1.bf16.msra.mxu0 %v896
    %998 = vmatprep.subr.bf16.mxu0 0
    %999 = vmatpush1.bf16.msra.mxu0 %v897
    %1000 = vmatprep.subr.bf16.mxu0 0
    %1001 = vmatpush1.bf16.msra.mxu0 %v898
    %1002 = vmatprep.subr.bf16.mxu0 0
    %1003 = vmatpush1.bf16.msra.mxu0 %v899
    %1004 = vmatprep.mubr.bf16.mxu0 %v668
    %1005 = vmatmul.mubr.bf16.gmra.mrb[0].mxu0 %v667
    %v1006 = vpop.f32.mrb[0].mxu0
    %v1007 = vadd.f32 %v967, %v1006
    %v1008 = vpop.f32.mrb[0].mxu0
    %v1009 = vpop.f32.mrb[0].mxu0
    %v1010 = vpop.f32.mrb[0].mxu0
    %1011 = vdwg.mxu0
    %1012 = vrot.lane.b32.xlu0 %v1007, 64
    %v1013 = vpop.permute.xlu0 %1012
    %v1014 = vmul.f32 %v1013, 0.5
    %v1015 = vmul.f32 %v1014, 1.442695
    %v1016 = vpow.pop %v1015
    %v1017 = vmul.f32 %v165, %v1016
    %v1018 = vadd.f32 %v1007, %v1017
    %v1019 = vpack.c.bf16 %v1018, %v1018
    %v1020 = vld [vmem:[#allocation13] sm:$0xff]
    %v1021 = vld [vmem:[#allocation13 + $0x8] sm:$0xff]
    %v1022 = vld [vmem:[#allocation13 + $0x10] sm:$0xff]
    %v1023 = vld [vmem:[#allocation13 + $0x18] sm:$0xff]
    %v1024 = vld [vmem:[#allocation13 + $0x20] sm:$0xff]
    %v1025 = vld [vmem:[#allocation13 + $0x28] sm:$0xff]
    %v1026 = vld [vmem:[#allocation13 + $0x30] sm:$0xff]
    %v1027 = vld [vmem:[#allocation13 + $0x38] sm:$0xff]
    %v1028 = vld [vmem:[#allocation13 + $0x40] sm:$0xff]
    %v1029 = vld [vmem:[#allocation13 + $0x48] sm:$0xff]
    %v1030 = vld [vmem:[#allocation13 + $0x50] sm:$0xff]
    %v1031 = vld [vmem:[#allocation13 + $0x58] sm:$0xff]
    %v1032 = vld [vmem:[#allocation13 + $0x60] sm:$0xff]
    %v1033 = vld [vmem:[#allocation13 + $0x68] sm:$0xff]
    %v1034 = vld [vmem:[#allocation13 + $0x70] sm:$0xff]
    %v1035 = vld [vmem:[#allocation13 + $0x78] sm:$0xff]
    %v1036 = vld [vmem:[#allocation13 + $0x80] sm:$0xff]
    %v1037 = vld [vmem:[#allocation13 + $0x88] sm:$0xff]
    %v1038 = vld [vmem:[#allocation13 + $0x90] sm:$0xff]
    %v1039 = vld [vmem:[#allocation13 + $0x98] sm:$0xff]
    %v1040 = vld [vmem:[#allocation13 + $0xa0] sm:$0xff]
    %v1041 = vld [vmem:[#allocation13 + $0xa8] sm:$0xff]
    %v1042 = vld [vmem:[#allocation13 + $0xb0] sm:$0xff]
    %v1043 = vld [vmem:[#allocation13 + $0xb8] sm:$0xff]
    %v1044 = vld [vmem:[#allocation13 + $0xc0] sm:$0xff]
    %v1045 = vld [vmem:[#allocation13 + $0xc8] sm:$0xff]
    %v1046 = vld [vmem:[#allocation13 + $0xd0] sm:$0xff]
    %v1047 = vld [vmem:[#allocation13 + $0xd8] sm:$0xff]
    %v1048 = vld [vmem:[#allocation13 + $0xe0] sm:$0xff]
    %v1049 = vld [vmem:[#allocation13 + $0xe8] sm:$0xff]
    %v1050 = vld [vmem:[#allocation13 + $0xf0] sm:$0xff]
    %v1051 = vld [vmem:[#allocation13 + $0xf8] sm:$0xff]
    %v1052 = vld [vmem:[#allocation14] sm:$0xf]
    %v1054 = vlaneseq
    %v1055 = vshrl.u32 %v1054, 7
    %v1056 = vsub.s32 0, %v1055
    %v1057 = vrot.slane %v1052, %v1056
    %v1058 = vlaneseq
    %v1059 = vshrl.u32 %v1058, 7
    %v1060 = vsub.s32 1, %v1059
    %v1061 = vrot.slane %v1052, %v1060
    %v1062 = vlaneseq
    %v1063 = vshrl.u32 %v1062, 7
    %v1064 = vsub.s32 2, %v1063
    %v1065 = vrot.slane %v1052, %v1064
    %v1066 = vlaneseq
    %v1067 = vshrl.u32 %v1066, 7
    %v1068 = vsub.s32 3, %v1067
    %v1069 = vrot.slane %v1052, %v1068
    %v1106 = vunpack.c.l.b16 %v1020
    %v1107 = vunpack.c.h.b16 %v1020
    %v1108 = vunpack.c.l.b16 %v1021
    %v1109 = vunpack.c.h.b16 %v1021
    %v1110 = vunpack.c.l.b16 %v1022
    %v1111 = vunpack.c.h.b16 %v1022
    %v1112 = vunpack.c.l.b16 %v1023
    %v1113 = vunpack.c.h.b16 %v1023
    %v1114 = vunpack.c.l.b16 %v1024
    %v1115 = vunpack.c.h.b16 %v1024
    %v1116 = vunpack.c.l.b16 %v1025
    %v1117 = vunpack.c.h.b16 %v1025
    %v1118 = vunpack.c.l.b16 %v1026
    %v1119 = vunpack.c.h.b16 %v1026
    %v1120 = vunpack.c.l.b16 %v1027
    %v1121 = vunpack.c.h.b16 %v1027
    %v1122 = vunpack.c.l.b16 %v1028
    %v1123 = vunpack.c.h.b16 %v1028
    %v1124 = vunpack.c.l.b16 %v1029
    %v1125 = vunpack.c.h.b16 %v1029
    %v1126 = vunpack.c.l.b16 %v1030
    %v1127 = vunpack.c.h.b16 %v1030
    %v1128 = vunpack.c.l.b16 %v1031
    %v1129 = vunpack.c.h.b16 %v1031
    %v1130 = vunpack.c.l.b16 %v1032
    %v1131 = vunpack.c.h.b16 %v1032
    %v1132 = vunpack.c.l.b16 %v1033
    %v1133 = vunpack.c.h.b16 %v1033
    %v1134 = vunpack.c.l.b16 %v1034
    %v1135 = vunpack.c.h.b16 %v1034
    %v1136 = vunpack.c.l.b16 %v1035
    %v1137 = vunpack.c.h.b16 %v1035
    %v1138 = vunpack.c.l.b16 %v1036
    %v1139 = vunpack.c.h.b16 %v1036
    %v1140 = vunpack.c.l.b16 %v1037
    %v1141 = vunpack.c.h.b16 %v1037
    %v1142 = vunpack.c.l.b16 %v1038
    %v1143 = vunpack.c.h.b16 %v1038
    %v1144 = vunpack.c.l.b16 %v1039
    %v1145 = vunpack.c.h.b16 %v1039
    %v1146 = vunpack.c.l.b16 %v1040
    %v1147 = vunpack.c.h.b16 %v1040
    %v1148 = vunpack.c.l.b16 %v1041
    %v1149 = vunpack.c.h.b16 %v1041
    %v1150 = vunpack.c.l.b16 %v1042
    %v1151 = vunpack.c.h.b16 %v1042
    %v1152 = vunpack.c.l.b16 %v1043
    %v1153 = vunpack.c.h.b16 %v1043
    %v1154 = vunpack.c.l.b16 %v1044
    %v1155 = vunpack.c.h.b16 %v1044
    %v1156 = vunpack.c.l.b16 %v1045
    %v1157 = vunpack.c.h.b16 %v1045
    %v1158 = vunpack.c.l.b16 %v1046
    %v1159 = vunpack.c.h.b16 %v1046
    %v1160 = vunpack.c.l.b16 %v1047
    %v1161 = vunpack.c.h.b16 %v1047
    %v1162 = vunpack.c.l.b16 %v1048
    %v1163 = vunpack.c.h.b16 %v1048
    %v1164 = vunpack.c.l.b16 %v1049
    %v1165 = vunpack.c.h.b16 %v1049
    %v1166 = vunpack.c.l.b16 %v1050
    %v1167 = vunpack.c.h.b16 %v1050
    %v1168 = vunpack.c.l.b16 %v1051
    %v1169 = vunpack.c.h.b16 %v1051
    %v1170 = vpack.c.b16 %v1110, %v1106
    %v1171 = vpack.c.b16 %v1111, %v1107
    %v1172 = vpack.c.b16 %v1112, %v1108
    %v1173 = vpack.c.b16 %v1113, %v1109
    %v1174 = vpack.c.b16 %v1118, %v1114
    %v1175 = vpack.c.b16 %v1119, %v1115
    %v1176 = vpack.c.b16 %v1120, %v1116
    %v1177 = vpack.c.b16 %v1121, %v1117
    %v1178 = vpack.c.b16 %v1126, %v1122
    %v1179 = vpack.c.b16 %v1127, %v1123
    %v1180 = vpack.c.b16 %v1128, %v1124
    %v1181 = vpack.c.b16 %v1129, %v1125
    %v1182 = vpack.c.b16 %v1134, %v1130
    %v1183 = vpack.c.b16 %v1135, %v1131
    %v1184 = vpack.c.b16 %v1136, %v1132
    %v1185 = vpack.c.b16 %v1137, %v1133
    %v1186 = vpack.c.b16 %v1142, %v1138
    %v1187 = vpack.c.b16 %v1143, %v1139
    %v1188 = vpack.c.b16 %v1144, %v1140
    %v1189 = vpack.c.b16 %v1145, %v1141
    %v1190 = vpack.c.b16 %v1150, %v1146
    %v1191 = vpack.c.b16 %v1151, %v1147
    %v1192 = vpack.c.b16 %v1152, %v1148
    %v1193 = vpack.c.b16 %v1153, %v1149
    %v1194 = vpack.c.b16 %v1158, %v1154
    %v1195 = vpack.c.b16 %v1159, %v1155
    %v1196 = vpack.c.b16 %v1160, %v1156
    %v1197 = vpack.c.b16 %v1161, %v1157
    %v1198 = vpack.c.b16 %v1166, %v1162
    %v1199 = vpack.c.b16 %v1167, %v1163
    %v1200 = vpack.c.b16 %v1168, %v1164
    %v1201 = vpack.c.b16 %v1169, %v1165
    %1234 = vmatprep.subr.bf16.mxu0 %v1171
    %1235 = vmatpush1.bf16.msra.mxu0 %v1170
    %1236 = vmatprep.subr.bf16.mxu0 %v1175
    %1237 = vmatpush1.bf16.msra.mxu0 %v1174
    %1238 = vmatprep.subr.bf16.mxu0 %v1179
    %1239 = vmatpush1.bf16.msra.mxu0 %v1178
    %1240 = vmatprep.subr.bf16.mxu0 %v1183
    %1241 = vmatpush1.bf16.msra.mxu0 %v1182
    %1242 = vmatprep.subr.bf16.mxu0 %v1187
    %1243 = vmatpush1.bf16.msra.mxu0 %v1186
    %1244 = vmatprep.subr.bf16.mxu0 %v1191
    %1245 = vmatpush1.bf16.msra.mxu0 %v1190
    %1246 = vmatprep.subr.bf16.mxu0 %v1195
    %1247 = vmatpush1.bf16.msra.mxu0 %v1194
    %1248 = vmatprep.subr.bf16.mxu0 %v1199
    %1249 = vmatpush1.bf16.msra.mxu0 %v1198
    %1250 = vmatprep.subr.bf16.mxu0 0
    %1251 = vmatpush1.bf16.msra.mxu0 0
    %1252 = vmatprep.subr.bf16.mxu0 0
    %1253 = vmatpush1.bf16.msra.mxu0 0
    %1254 = vmatprep.subr.bf16.mxu0 0
    %1255 = vmatpush1.bf16.msra.mxu0 0
    %1256 = vmatprep.subr.bf16.mxu0 0
    %1257 = vmatpush1.bf16.msra.mxu0 0
    %1258 = vmatprep.subr.bf16.mxu0 0
    %1259 = vmatpush1.bf16.msra.mxu0 0
    %1260 = vmatprep.subr.bf16.mxu0 0
    %1261 = vmatpush1.bf16.msra.mxu0 0
    %1262 = vmatprep.subr.bf16.mxu0 0
    %1263 = vmatpush1.bf16.msra.mxu0 0
    %1264 = vmatprep.subr.bf16.mxu0 0
    %1265 = vmatpush1.bf16.msra.mxu0 0
    %1266 = vmatprep.mubr.bf16.mxu0 0
    %1267 = vmatmul.mubr.bf16.gmra.mrb[0].mxu0 %v1019
    %v1268 = vpop.f32.mrb[0].mxu0
    %v1269 = vadd.f32 %v1057, %v1268
    %v1270 = vpop.f32.mrb[0].mxu0
    %v1271 = vadd.f32 %v1061, %v1270
    %v1272 = vpop.f32.mrb[0].mxu0
    %v1273 = vpop.f32.mrb[0].mxu0
    %1274 = vdwg.mxu0
    %1275 = vmatprep.subr.bf16.mxu0 %v1173
    %1276 = vmatpush1.bf16.msra.mxu0 %v1172
    %1277 = vmatprep.subr.bf16.mxu0 %v1177
    %1278 = vmatpush1.bf16.msra.mxu0 %v1176
    %1279 = vmatprep.subr.bf16.mxu0 %v1181
    %1280 = vmatpush1.bf16.msra.mxu0 %v1180
    %1281 = vmatprep.subr.bf16.mxu0 %v1185
    %1282 = vmatpush1.bf16.msra.mxu0 %v1184
    %1283 = vmatprep.subr.bf16.mxu0 %v1189
    %1284 = vmatpush1.bf16.msra.mxu0 %v1188
    %1285 = vmatprep.subr.bf16.mxu0 %v1193
    %1286 = vmatpush1.bf16.msra.mxu0 %v1192
    %1287 = vmatprep.subr.bf16.mxu0 %v1197
    %1288 = vmatpush1.bf16.msra.mxu0 %v1196
    %1289 = vmatprep.subr.bf16.mxu0 %v1201
    %1290 = vmatpush1.bf16.msra.mxu0 %v1200
    %1291 = vmatprep.subr.bf16.mxu0 0
    %1292 = vmatpush1.bf16.msra.mxu0 0
    %1293 = vmatprep.subr.bf16.mxu0 0
    %1294 = vmatpush1.bf16.msra.mxu0 0
    %1295 = vmatprep.subr.bf16.mxu0 0
    %1296 = vmatpush1.bf16.msra.mxu0 0
    %1297 = vmatprep.subr.bf16.mxu0 0
    %1298 = vmatpush1.bf16.msra.mxu0 0
    %1299 = vmatprep.subr.bf16.mxu0 0
    %1300 = vmatpush1.bf16.msra.mxu0 0
    %1301 = vmatprep.subr.bf16.mxu0 0
    %1302 = vmatpush1.bf16.msra.mxu0 0
    %1303 = vmatprep.subr.bf16.mxu0 0
    %1304 = vmatpush1.bf16.msra.mxu0 0
    %1305 = vmatprep.subr.bf16.mxu0 0
    %1306 = vmatpush1.bf16.msra.mxu0 0
    %1307 = vmatprep.mubr.bf16.mxu0 0
    %1308 = vmatmul.mubr.bf16.gmra.mrb[0].mxu0 %v1019
    %v1309 = vpop.f32.mrb[0].mxu0
    %v1310 = vadd.f32 %v1065, %v1309
    %v1311 = vpop.f32.mrb[0].mxu0
    %v1312 = vadd.f32 %v1069, %v1311
    %v1313 = vpop.f32.mrb[0].mxu0
    %v1314 = vpop.f32.mrb[0].mxu0
    %1315 = vdwg.mxu0
    %v1316 = vmax.f32 %v1269, 0.0
    %v1317 = vmax.f32 %v1271, 0.0
    %v1318 = vmax.f32 %v1310, 0.0
    %v1319 = vmax.f32 %v1312, 0.0
    %v1320 = vpack.c.bf16 %v1316, %v1316
    %v1321 = vpack.c.bf16 %v1317, %v1317
    %v1322 = vpack.c.bf16 %v1318, %v1318
    %v1323 = vpack.c.bf16 %v1319, %v1319
    %v1324 = vld [vmem:[#allocation16] sm:$0xff]
    %v1325 = vld [vmem:[#allocation16 + $0x8] sm:$0xff]
    %v1326 = vld [vmem:[#allocation16 + $0x10] sm:$0xff]
    %v1327 = vld [vmem:[#allocation16 + $0x18] sm:$0xff]
    %v1328 = vld [vmem:[#allocation16 + $0x20] sm:$0xff]
    %v1329 = vld [vmem:[#allocation16 + $0x28] sm:$0xff]
    %v1330 = vld [vmem:[#allocation16 + $0x30] sm:$0xff]
    %v1331 = vld [vmem:[#allocation16 + $0x38] sm:$0xff]
    %v1332 = vld [vmem:[#allocation16 + $0x40] sm:$0xff]
    %v1333 = vld [vmem:[#allocation16 + $0x48] sm:$0xff]
    %v1334 = vld [vmem:[#allocation16 + $0x50] sm:$0xff]
    %v1335 = vld [vmem:[#allocation16 + $0x58] sm:$0xff]
    %v1336 = vld [vmem:[#allocation16 + $0x60] sm:$0xff]
    %v1337 = vld [vmem:[#allocation16 + $0x68] sm:$0xff]
    %v1338 = vld [vmem:[#allocation16 + $0x70] sm:$0xff]
    %v1339 = vld [vmem:[#allocation16 + $0x78] sm:$0xff]
    %v1340 = vld [vmem:[#allocation16 + $0x80] sm:$0xff]
    %v1341 = vld [vmem:[#allocation16 + $0x88] sm:$0xff]
    %v1342 = vld [vmem:[#allocation16 + $0x90] sm:$0xff]
    %v1343 = vld [vmem:[#allocation16 + $0x98] sm:$0xff]
    %v1344 = vld [vmem:[#allocation16 + $0xa0] sm:$0xff]
    %v1345 = vld [vmem:[#allocation16 + $0xa8] sm:$0xff]
    %v1346 = vld [vmem:[#allocation16 + $0xb0] sm:$0xff]
    %v1347 = vld [vmem:[#allocation16 + $0xb8] sm:$0xff]
    %v1348 = vld [vmem:[#allocation16 + $0xc0] sm:$0xff]
    %v1349 = vld [vmem:[#allocation16 + $0xc8] sm:$0xff]
    %v1350 = vld [vmem:[#allocation16 + $0xd0] sm:$0xff]
    %v1351 = vld [vmem:[#allocation16 + $0xd8] sm:$0xff]
    %v1352 = vld [vmem:[#allocation16 + $0xe0] sm:$0xff]
    %v1353 = vld [vmem:[#allocation16 + $0xe8] sm:$0xff]
    %v1354 = vld [vmem:[#allocation16 + $0xf0] sm:$0xff]
    %v1355 = vld [vmem:[#allocation16 + $0xf8] sm:$0xff]
    %v1356 = vld [vmem:[#allocation16 + $0x100] sm:$0xff]
    %v1357 = vld [vmem:[#allocation16 + $0x108] sm:$0xff]
    %v1358 = vld [vmem:[#allocation16 + $0x110] sm:$0xff]
    %v1359 = vld [vmem:[#allocation16 + $0x118] sm:$0xff]
    %v1360 = vld [vmem:[#allocation16 + $0x120] sm:$0xff]
    %v1361 = vld [vmem:[#allocation16 + $0x128] sm:$0xff]
    %v1362 = vld [vmem:[#allocation16 + $0x130] sm:$0xff]
    %v1363 = vld [vmem:[#allocation16 + $0x138] sm:$0xff]
    %v1364 = vld [vmem:[#allocation16 + $0x140] sm:$0xff]
    %v1365 = vld [vmem:[#allocation16 + $0x148] sm:$0xff]
    %v1366 = vld [vmem:[#allocation16 + $0x150] sm:$0xff]
    %v1367 = vld [vmem:[#allocation16 + $0x158] sm:$0xff]
    %v1368 = vld [vmem:[#allocation16 + $0x160] sm:$0xff]
    %v1369 = vld [vmem:[#allocation16 + $0x168] sm:$0xff]
    %v1370 = vld [vmem:[#allocation16 + $0x170] sm:$0xff]
    %v1371 = vld [vmem:[#allocation16 + $0x178] sm:$0xff]
    %v1372 = vld [vmem:[#allocation16 + $0x180] sm:$0xff]
    %v1373 = vld [vmem:[#allocation16 + $0x188] sm:$0xff]
    %v1374 = vld [vmem:[#allocation16 + $0x190] sm:$0xff]
    %v1375 = vld [vmem:[#allocation16 + $0x198] sm:$0xff]
    %v1376 = vld [vmem:[#allocation16 + $0x1a0] sm:$0xff]
    %v1377 = vld [vmem:[#allocation16 + $0x1a8] sm:$0xff]
    %v1378 = vld [vmem:[#allocation16 + $0x1b0] sm:$0xff]
    %v1379 = vld [vmem:[#allocation16 + $0x1b8] sm:$0xff]
    %v1380 = vld [vmem:[#allocation16 + $0x1c0] sm:$0xff]
    %v1381 = vld [vmem:[#allocation16 + $0x1c8] sm:$0xff]
    %v1382 = vld [vmem:[#allocation16 + $0x1d0] sm:$0xff]
    %v1383 = vld [vmem:[#allocation16 + $0x1d8] sm:$0xff]
    %v1384 = vld [vmem:[#allocation16 + $0x1e0] sm:$0xff]
    %v1385 = vld [vmem:[#allocation16 + $0x1e8] sm:$0xff]
    %v1386 = vld [vmem:[#allocation16 + $0x1f0] sm:$0xff]
    %v1387 = vld [vmem:[#allocation16 + $0x1f8] sm:$0xff]
    %v1388 = vld [vmem:[#allocation17] sm:$0x3]
    %v1390 = vlaneseq
    %v1391 = vshrl.u32 %v1390, 7
    %v1392 = vsub.s32 0, %v1391
    %v1393 = vrot.slane %v1388, %v1392
    %v1394 = vlaneseq
    %v1395 = vshrl.u32 %v1394, 7
    %v1396 = vsub.s32 1, %v1395
    %v1397 = vrot.slane %v1388, %v1396
    %v1464 = vunpack.c.l.b16 %v1324
    %v1465 = vunpack.c.h.b16 %v1324
    %v1466 = vunpack.c.l.b16 %v1325
    %v1467 = vunpack.c.h.b16 %v1325
    %v1468 = vunpack.c.l.b16 %v1326
    %v1469 = vunpack.c.h.b16 %v1326
    %v1470 = vunpack.c.l.b16 %v1327
    %v1471 = vunpack.c.h.b16 %v1327
    %v1472 = vunpack.c.l.b16 %v1328
    %v1473 = vunpack.c.h.b16 %v1328
    %v1474 = vunpack.c.l.b16 %v1329
    %v1475 = vunpack.c.h.b16 %v1329
    %v1476 = vunpack.c.l.b16 %v1330
    %v1477 = vunpack.c.h.b16 %v1330
    %v1478 = vunpack.c.l.b16 %v1331
    %v1479 = vunpack.c.h.b16 %v1331
    %v1480 = vunpack.c.l.b16 %v1332
    %v1481 = vunpack.c.h.b16 %v1332
    %v1482 = vunpack.c.l.b16 %v1333
    %v1483 = vunpack.c.h.b16 %v1333
    %v1484 = vunpack.c.l.b16 %v1334
    %v1485 = vunpack.c.h.b16 %v1334
    %v1486 = vunpack.c.l.b16 %v1335
    %v1487 = vunpack.c.h.b16 %v1335
    %v1488 = vunpack.c.l.b16 %v1336
    %v1489 = vunpack.c.h.b16 %v1336
    %v1490 = vunpack.c.l.b16 %v1337
    %v1491 = vunpack.c.h.b16 %v1337
    %v1492 = vunpack.c.l.b16 %v1338
    %v1493 = vunpack.c.h.b16 %v1338
    %v1494 = vunpack.c.l.b16 %v1339
    %v1495 = vunpack.c.h.b16 %v1339
    %v1496 = vunpack.c.l.b16 %v1340
    %v1497 = vunpack.c.h.b16 %v1340
    %v1498 = vunpack.c.l.b16 %v1341
    %v1499 = vunpack.c.h.b16 %v1341
    %v1500 = vunpack.c.l.b16 %v1342
    %v1501 = vunpack.c.h.b16 %v1342
    %v1502 = vunpack.c.l.b16 %v1343
    %v1503 = vunpack.c.h.b16 %v1343
    %v1504 = vunpack.c.l.b16 %v1344
    %v1505 = vunpack.c.h.b16 %v1344
    %v1506 = vunpack.c.l.b16 %v1345
    %v1507 = vunpack.c.h.b16 %v1345
    %v1508 = vunpack.c.l.b16 %v1346
    %v1509 = vunpack.c.h.b16 %v1346
    %v1510 = vunpack.c.l.b16 %v1347
    %v1511 = vunpack.c.h.b16 %v1347
    %v1512 = vunpack.c.l.b16 %v1348
    %v1513 = vunpack.c.h.b16 %v1348
    %v1514 = vunpack.c.l.b16 %v1349
    %v1515 = vunpack.c.h.b16 %v1349
    %v1516 = vunpack.c.l.b16 %v1350
    %v1517 = vunpack.c.h.b16 %v1350
    %v1518 = vunpack.c.l.b16 %v1351
    %v1519 = vunpack.c.h.b16 %v1351
    %v1520 = vunpack.c.l.b16 %v1352
    %v1521 = vunpack.c.h.b16 %v1352
    %v1522 = vunpack.c.l.b16 %v1353
    %v1523 = vunpack.c.h.b16 %v1353
    %v1524 = vunpack.c.l.b16 %v1354
    %v1525 = vunpack.c.h.b16 %v1354
    %v1526 = vunpack.c.l.b16 %v1355
    %v1527 = vunpack.c.h.b16 %v1355
    %v1528 = vunpack.c.l.b16 %v1356
    %v1529 = vunpack.c.h.b16 %v1356
    %v1530 = vunpack.c.l.b16 %v1357
    %v1531 = vunpack.c.h.b16 %v1357
    %v1532 = vunpack.c.l.b16 %v1358
    %v1533 = vunpack.c.h.b16 %v1358
    %v1534 = vunpack.c.l.b16 %v1359
    %v1535 = vunpack.c.h.b16 %v1359
    %v1536 = vunpack.c.l.b16 %v1360
    %v1537 = vunpack.c.h.b16 %v1360
    %v1538 = vunpack.c.l.b16 %v1361
    %v1539 = vunpack.c.h.b16 %v1361
    %v1540 = vunpack.c.l.b16 %v1362
    %v1541 = vunpack.c.h.b16 %v1362
    %v1542 = vunpack.c.l.b16 %v1363
    %v1543 = vunpack.c.h.b16 %v1363
    %v1544 = vunpack.c.l.b16 %v1364
    %v1545 = vunpack.c.h.b16 %v1364
    %v1546 = vunpack.c.l.b16 %v1365
    %v1547 = vunpack.c.h.b16 %v1365
    %v1548 = vunpack.c.l.b16 %v1366
    %v1549 = vunpack.c.h.b16 %v1366
    %v1550 = vunpack.c.l.b16 %v1367
    %v1551 = vunpack.c.h.b16 %v1367
    %v1552 = vunpack.c.l.b16 %v1368
    %v1553 = vunpack.c.h.b16 %v1368
    %v1554 = vunpack.c.l.b16 %v1369
    %v1555 = vunpack.c.h.b16 %v1369
    %v1556 = vunpack.c.l.b16 %v1370
    %v1557 = vunpack.c.h.b16 %v1370
    %v1558 = vunpack.c.l.b16 %v1371
    %v1559 = vunpack.c.h.b16 %v1371
    %v1560 = vunpack.c.l.b16 %v1372
    %v1561 = vunpack.c.h.b16 %v1372
    %v1562 = vunpack.c.l.b16 %v1373
    %v1563 = vunpack.c.h.b16 %v1373
    %v1564 = vunpack.c.l.b16 %v1374
    %v1565 = vunpack.c.h.b16 %v1374
    %v1566 = vunpack.c.l.b16 %v1375
    %v1567 = vunpack.c.h.b16 %v1375
    %v1568 = vunpack.c.l.b16 %v1376
    %v1569 = vunpack.c.h.b16 %v1376
    %v1570 = vunpack.c.l.b16 %v1377
    %v1571 = vunpack.c.h.b16 %v1377
    %v1572 = vunpack.c.l.b16 %v1378
    %v1573 = vunpack.c.h.b16 %v1378
    %v1574 = vunpack.c.l.b16 %v1379
    %v1575 = vunpack.c.h.b16 %v1379
    %v1576 = vunpack.c.l.b16 %v1380
    %v1577 = vunpack.c.h.b16 %v1380
    %v1578 = vunpack.c.l.b16 %v1381
    %v1579 = vunpack.c.h.b16 %v1381
    %v1580 = vunpack.c.l.b16 %v1382
    %v1581 = vunpack.c.h.b16 %v1382
    %v1582 = vunpack.c.l.b16 %v1383
    %v1583 = vunpack.c.h.b16 %v1383
    %v1584 = vunpack.c.l.b16 %v1384
    %v1585 = vunpack.c.h.b16 %v1384
    %v1586 = vunpack.c.l.b16 %v1385
    %v1587 = vunpack.c.h.b16 %v1385
    %v1588 = vunpack.c.l.b16 %v1386
    %v1589 = vunpack.c.h.b16 %v1386
    %v1590 = vunpack.c.l.b16 %v1387
    %v1591 = vunpack.c.h.b16 %v1387
    %v1592 = vpack.c.b16 %v1466, %v1464
    %v1593 = vpack.c.b16 %v1467, %v1465
    %v1594 = vpack.c.b16 %v1470, %v1468
    %v1595 = vpack.c.b16 %v1471, %v1469
    %v1596 = vpack.c.b16 %v1474, %v1472
    %v1597 = vpack.c.b16 %v1475, %v1473
    %v1598 = vpack.c.b16 %v1478, %v1476
    %v1599 = vpack.c.b16 %v1479, %v1477
    %v1600 = vpack.c.b16 %v1482, %v1480
    %v1601 = vpack.c.b16 %v1483, %v1481
    %v1602 = vpack.c.b16 %v1486, %v1484
    %v1603 = vpack.c.b16 %v1487, %v1485
    %v1604 = vpack.c.b16 %v1490, %v1488
    %v1605 = vpack.c.b16 %v1491, %v1489
    %v1606 = vpack.c.b16 %v1494, %v1492
    %v1607 = vpack.c.b16 %v1495, %v1493
    %v1608 = vpack.c.b16 %v1498, %v1496
    %v1609 = vpack.c.b16 %v1499, %v1497
    %v1610 = vpack.c.b16 %v1502, %v1500
    %v1611 = vpack.c.b16 %v1503, %v1501
    %v1612 = vpack.c.b16 %v1506, %v1504
    %v1613 = vpack.c.b16 %v1507, %v1505
    %v1614 = vpack.c.b16 %v1510, %v1508
    %v1615 = vpack.c.b16 %v1511, %v1509
    %v1616 = vpack.c.b16 %v1514, %v1512
    %v1617 = vpack.c.b16 %v1515, %v1513
    %v1618 = vpack.c.b16 %v1518, %v1516
    %v1619 = vpack.c.b16 %v1519, %v1517
    %v1620 = vpack.c.b16 %v1522, %v1520
    %v1621 = vpack.c.b16 %v1523, %v1521
    %v1622 = vpack.c.b16 %v1526, %v1524
    %v1623 = vpack.c.b16 %v1527, %v1525
    %v1624 = vpack.c.b16 %v1530, %v1528
    %v1625 = vpack.c.b16 %v1531, %v1529
    %v1626 = vpack.c.b16 %v1534, %v1532
    %v1627 = vpack.c.b16 %v1535, %v1533
    %v1628 = vpack.c.b16 %v1538, %v1536
    %v1629 = vpack.c.b16 %v1539, %v1537
    %v1630 = vpack.c.b16 %v1542, %v1540
    %v1631 = vpack.c.b16 %v1543, %v1541
    %v1632 = vpack.c.b16 %v1546, %v1544
    %v1633 = vpack.c.b16 %v1547, %v1545
    %v1634 = vpack.c.b16 %v1550, %v1548
    %v1635 = vpack.c.b16 %v1551, %v1549
    %v1636 = vpack.c.b16 %v1554, %v1552
    %v1637 = vpack.c.b16 %v1555, %v1553
    %v1638 = vpack.c.b16 %v1558, %v1556
    %v1639 = vpack.c.b16 %v1559, %v1557
    %v1640 = vpack.c.b16 %v1562, %v1560
    %v1641 = vpack.c.b16 %v1563, %v1561
    %v1642 = vpack.c.b16 %v1566, %v1564
    %v1643 = vpack.c.b16 %v1567, %v1565
    %v1644 = vpack.c.b16 %v1570, %v1568
    %v1645 = vpack.c.b16 %v1571, %v1569
    %v1646 = vpack.c.b16 %v1574, %v1572
    %v1647 = vpack.c.b16 %v1575, %v1573
    %v1648 = vpack.c.b16 %v1578, %v1576
    %v1649 = vpack.c.b16 %v1579, %v1577
    %v1650 = vpack.c.b16 %v1582, %v1580
    %v1651 = vpack.c.b16 %v1583, %v1581
    %v1652 = vpack.c.b16 %v1586, %v1584
    %v1653 = vpack.c.b16 %v1587, %v1585
    %v1654 = vpack.c.b16 %v1590, %v1588
    %v1655 = vpack.c.b16 %v1591, %v1589
    %1720 = vmatprep.subr.bf16.mxu0 %v1593
    %1721 = vmatpush1.bf16.msra.mxu0 %v1592
    %1722 = vmatprep.subr.bf16.mxu0 %v1595
    %1723 = vmatpush1.bf16.msra.mxu0 %v1594
    %1724 = vmatprep.subr.bf16.mxu0 %v1597
    %1725 = vmatpush1.bf16.msra.mxu0 %v1596
    %1726 = vmatprep.subr.bf16.mxu0 %v1599
    %1727 = vmatpush1.bf16.msra.mxu0 %v1598
    %1728 = vmatprep.subr.bf16.mxu0 %v1601
    %1729 = vmatpush1.bf16.msra.mxu0 %v1600
    %1730 = vmatprep.subr.bf16.mxu0 %v1603
    %1731 = vmatpush1.bf16.msra.mxu0 %v1602
    %1732 = vmatprep.subr.bf16.mxu0 %v1605
    %1733 = vmatpush1.bf16.msra.mxu0 %v1604
    %1734 = vmatprep.subr.bf16.mxu0 %v1607
    %1735 = vmatpush1.bf16.msra.mxu0 %v1606
    %1736 = vmatprep.subr.bf16.mxu0 %v1609
    %1737 = vmatpush1.bf16.msra.mxu0 %v1608
    %1738 = vmatprep.subr.bf16.mxu0 %v1611
    %1739 = vmatpush1.bf16.msra.mxu0 %v1610
    %1740 = vmatprep.subr.bf16.mxu0 %v1613
    %1741 = vmatpush1.bf16.msra.mxu0 %v1612
    %1742 = vmatprep.subr.bf16.mxu0 %v1615
    %1743 = vmatpush1.bf16.msra.mxu0 %v1614
    %1744 = vmatprep.subr.bf16.mxu0 %v1617
    %1745 = vmatpush1.bf16.msra.mxu0 %v1616
    %1746 = vmatprep.subr.bf16.mxu0 %v1619
    %1747 = vmatpush1.bf16.msra.mxu0 %v1618
    %1748 = vmatprep.subr.bf16.mxu0 %v1621
    %1749 = vmatpush1.bf16.msra.mxu0 %v1620
    %1750 = vmatprep.subr.bf16.mxu0 %v1623
    %1751 = vmatpush1.bf16.msra.mxu0 %v1622
    %1752 = vmatprep.mubr.bf16.mxu0 %v1321
    %1753 = vmatmul.mubr.bf16.gmra.mrb[0].mxu0 %v1320
    %v1754 = vpop.f32.mrb[0].mxu0
    %v1755 = vadd.f32 %v1393, %v1754
    %v1756 = vpop.f32.mrb[0].mxu0
    %v1757 = vadd.f32 %v1397, %v1756
    %v1758 = vpop.f32.mrb[0].mxu0
    %v1759 = vpop.f32.mrb[0].mxu0
    %1760 = vdwg.mxu0
    %1761 = vmatprep.subr.bf16.mxu0 %v1625
    %1762 = vmatpush1.bf16.msra.mxu0 %v1624
    %1763 = vmatprep.subr.bf16.mxu0 %v1627
    %1764 = vmatpush1.bf16.msra.mxu0 %v1626
    %1765 = vmatprep.subr.bf16.mxu0 %v1629
    %1766 = vmatpush1.bf16.msra.mxu0 %v1628
    %1767 = vmatprep.subr.bf16.mxu0 %v1631
    %1768 = vmatpush1.bf16.msra.mxu0 %v1630
    %1769 = vmatprep.subr.bf16.mxu0 %v1633
    %1770 = vmatpush1.bf16.msra.mxu0 %v1632
    %1771 = vmatprep.subr.bf16.mxu0 %v1635
    %1772 = vmatpush1.bf16.msra.mxu0 %v1634
    %1773 = vmatprep.subr.bf16.mxu0 %v1637
    %1774 = vmatpush1.bf16.msra.mxu0 %v1636
    %1775 = vmatprep.subr.bf16.mxu0 %v1639
    %1776 = vmatpush1.bf16.msra.mxu0 %v1638
    %1777 = vmatprep.subr.bf16.mxu0 %v1641
    %1778 = vmatpush1.bf16.msra.mxu0 %v1640
    %1779 = vmatprep.subr.bf16.mxu0 %v1643
    %1780 = vmatpush1.bf16.msra.mxu0 %v1642
    %1781 = vmatprep.subr.bf16.mxu0 %v1645
    %1782 = vmatpush1.bf16.msra.mxu0 %v1644
    %1783 = vmatprep.subr.bf16.mxu0 %v1647
    %1784 = vmatpush1.bf16.msra.mxu0 %v1646
    %1785 = vmatprep.subr.bf16.mxu0 %v1649
    %1786 = vmatpush1.bf16.msra.mxu0 %v1648
    %1787 = vmatprep.subr.bf16.mxu0 %v1651
    %1788 = vmatpush1.bf16.msra.mxu0 %v1650
    %1789 = vmatprep.subr.bf16.mxu0 %v1653
    %1790 = vmatpush1.bf16.msra.mxu0 %v1652
    %1791 = vmatprep.subr.bf16.mxu0 %v1655
    %1792 = vmatpush1.bf16.msra.mxu0 %v1654
    %1793 = vmatprep.mubr.bf16.mxu0 %v1323
    %1794 = vmatmul.mubr.bf16.gmra.mrb[0].mxu0 %v1322
    %v1795 = vpop.f32.mrb[0].mxu0
    %v1796 = vadd.f32 %v1755, %v1795
    %v1797 = vpop.f32.mrb[0].mxu0
    %v1798 = vadd.f32 %v1757, %v1797
    %v1799 = vpop.f32.mrb[0].mxu0
    %v1800 = vpop.f32.mrb[0].mxu0
    %1801 = vdwg.mxu0
    %v1802 = vmul.f32 %v1796, 0.5
    %v1803 = vmul.f32 %v1798, 0.5
    %v1804 = vtanh.pop %v1802
    %v1805 = vtanh.pop %v1803
    %v1806 = vadd.f32 %v1804, 1.0
    %v1807 = vadd.f32 %v1805, 1.0
    %v1808 = vmul.f32 %v1806, 0.5
    %v1809 = vmul.f32 %v1807, 0.5
    %1810 = vst [vmem:[#allocation19] sm:$0xff] %v1808
    %1811 = vst [vmem:[#allocation19 + $0x8] sm:$0xff] %v1809
    %1812 = vst [vmem:[#allocation20] sm:$0xff] %v1007
    // Predicated region
    $region82: #{vae_forward.1} parent=1 // pred_check
      _
    $region83: #{vae_forward.1} parent=1 // pred_check_branch
      %1814 = sbr.rel (0) target = $region85
    $region84: #{vae_forward.1} parent=1 // pred_region
      %s1816 = ssub.s32 256, 256
      %1817 = vsyncadd [#allocation4], %s1816
      %s1819 = sshll.u32 [#allocation19], 4
      %s1820 = int_to_ptr.vmem [resolvable:$true] %s1819
      %1822 = dma.vmem_to_hbm [thread:$0]  %s1820, 256, %s10, [#allocation4]
    $region85: #{vae_forward.1} parent=1 // pred_fallthru
      _
    // Predicated region
    $region86: #{vae_forward.1} parent=1 // pred_check
      _
    $region87: #{vae_forward.1} parent=1 // pred_check_branch
      %1824 = sbr.rel (0) target = $region89
    $region88: #{vae_forward.1} parent=1 // pred_region
      %s1826 = ssub.s32 128, 128
      %1827 = vsyncadd [#allocation21], %s1826
      %s1829 = sshll.u32 [#allocation20], 4
      %s1830 = int_to_ptr.vmem [resolvable:$true] %s1829
      %1832 = dma.vmem_to_hbm [thread:$0]  %s1830, 128, %s11, [#allocation21]
    $region89: #{vae_forward.1} parent=1 // pred_fallthru
      _
    // Predicated region
    $region90: #{vae_forward.1} parent=1 // pred_check
      _
    $region91: #{vae_forward.1} parent=1 // pred_check_branch
      %1834 = sbr.rel (0) target = $region93
    $region92: #{vae_forward.1} parent=1 // pred_region
      %1835 = dma.done [#allocation4], 256
    $region93: #{vae_forward.1} parent=1 // pred_fallthru
      _
    // Predicated region
    $region94: #{vae_forward.1} parent=1 // pred_check
      _
    $region95: #{vae_forward.1} parent=1 // pred_check_branch
      %1837 = sbr.rel (0) target = $region97
    $region96: #{vae_forward.1} parent=1 // pred_region
      %1838 = dma.done [#allocation21], 128
    $region97: #{vae_forward.1} parent=1 // pred_fallthru
      _
    %1839 = vsyncpa [#allocation3], 1
    %1840 = vsyncpa [#allocation6], 1
    %1841 = vsyncpa [#allocation9], 1
    %1842 = vsyncpa [#allocation12], 1
    %1843 = vsyncpa [#allocation15], 1
    %1844 = vsyncpa [#allocation18], 1
    %1845 = vsyncpa [#allocation4], 1
    %1846 = vsyncpa [#allocation21], 1

</llo_original>
